<compile_context>
chip_gen: v7x
topology: tpu7x:2x2x1
jax: 0.10.0
libtpu: 0.0.40
codegen_flags: <defaults>
</compile_context>

<pallas_src>
import jax
import jax.numpy as jnp
from jax import lax
from jax.experimental import pallas as pl
from jax.experimental.pallas import tpu as pltpu


# ---------------------------------------------------------------------------
# Single fused kernel: conv(5/4/3) + ReLU + 2x Highway + BiLSTM final hidden.
# Whole (sublane-padded) batch per invocation, flattened time-major rows.
# ---------------------------------------------------------------------------
def make_cnn_rnn_kernel(seq_len, batch, n_taps, bwd_off, mm_dtype):
    T, Bp, S = seq_len, batch, n_taps
    rows = T * Bp

    def kernel(e_ref, wc_ref, bc_ref, w1_ref, b1_ref, w2_ref, b2_ref,
               len_ref, wih_ref, bih_ref, whh_ref, out_ref, pf_ref, pb_ref):
        c_pad = bc_ref.shape[1]          # conv/highway channel width (128)
        h_pad = whh_ref.shape[0]         # per-gate lane width, fwd|bwd packed (128)
        G = 4 * h_pad

        # ---- char-CNN (all widths fused) as accumulated per-tap matmuls ----
        # In the flattened time-major layout a shift of one timestep is a shift
        # of Bp rows, so every tap is a static sublane-aligned row slice.
        e = e_ref[...]                                         # ((T+S-1)*Bp, E)
        acc = jnp.dot(e[0:rows, :].astype(mm_dtype), wc_ref[0],
                      preferred_element_type=jnp.float32)
        for s in range(1, S):
            acc = acc + jnp.dot(e[s * Bp:s * Bp + rows, :].astype(mm_dtype),
                                wc_ref[s], preferred_element_type=jnp.float32)
        x = jnp.maximum(acc + bc_ref[...], 0.0)                # (rows, c_pad) ReLU

        # ---- 2 Highway layers, each ONE fused (c_pad -> 2*c_pad) matmul ----
        for w_ref, b_ref in ((w1_ref, b1_ref), (w2_ref, b2_ref)):
            proj = jnp.dot(x.astype(mm_dtype), w_ref[...],
                           preferred_element_type=jnp.float32) + b_ref[...]
            nl = jnp.maximum(proj[:, :c_pad], 0.0)             # activation = relu
            g = jax.nn.sigmoid(proj[:, c_pad:])
            x = g * x + (1.0 - g) * nl     # gate*linear + (1-gate)*nonlinear

        # ---- BiLSTM input projection, fwd+bwd fused, hoisted out of the
        #      recurrence: one (T*Bp, c_pad) x (c_pad, 8*h_pad) matmul ----
        proj = jnp.dot(x.astype(mm_dtype), wih_ref[...],
                       preferred_element_type=jnp.float32) + bih_ref[...]
        pf_ref[...] = proj[:, :G]        # fwd values live in lanes 0:H
        pb_ref[...] = proj[:, G:]        # bwd values live in lanes bwd_off:bwd_off+H

        # ---- recurrence: both directions share the same 128-lane gate groups
        #      -> one recurrent matmul + one set of nonlinearities per step.
        lens = len_ref[...]                                    # (Bp, 1) int32
        lane = lax.broadcasted_iota(jnp.int32, (Bp, h_pad), 1)
        is_fwd_lane = lane < bwd_off                           # loop-invariant

        h = jnp.zeros((Bp, h_pad), jnp.float32)
        c = jnp.zeros((Bp, h_pad), jnp.float32)
        # Short fixed T -> fully unrolled; all pf/pb slices are static & aligned.
        # TODO(synk): h is cast to bf16 each step for the MXU; negligible drift
        # for short T, diverges from torch's f32 recurrence for long sequences.
        for t in range(T):
            tb = T - 1 - t
            gates = (pf_ref[t * Bp:(t + 1) * Bp, :]
                     + pb_ref[tb * Bp:(tb + 1) * Bp, :]
                     + jnp.dot(h.astype(mm_dtype), whh_ref[...],
                               preferred_element_type=jnp.float32))
            # packed gate order (i, f, o, g): sigmoids are one contiguous slice.
            sg = jax.nn.sigmoid(gates[:, :3 * h_pad])
            i_g = sg[:, 0 * h_pad:1 * h_pad]
            f_g = sg[:, 1 * h_pad:2 * h_pad]
            o_g = sg[:, 2 * h_pad:3 * h_pad]
            g_g = jnp.tanh(gates[:, 3 * h_pad:])
            c_new = f_g * c + i_g * g_g
            h_new = o_g * jnp.tanh(c_new)
            # packed-sequence semantics: fwd lanes update while t < len,
            # bwd lanes while (T-1-t) < len — a single select per state.
            step = jnp.where(is_fwd_lane, t, tb)
            upd = step < lens
            h = jnp.where(upd, h_new, h)
            c = jnp.where(upd, c_new, c)

        # (Bp, 128) lane-dense store: fwd hidden in lanes 0:H, bwd in bwd_off:bwd_off+H.
        out_ref[...] = h

    return kernel


# ---------------------------------------------------------------------------
# Parameter initialization (synthetic, deterministic) + weight packing.
# ---------------------------------------------------------------------------
def init_params(key, emb_dims, cont_features, kernel_sizes=(5, 4, 3),
                out_channels=32, highway_layers=2, mm_dtype=jnp.bfloat16):
    E = sum(d for _, d in emb_dims) + cont_features
    C = len(kernel_sizes) * out_channels                 # 96
    H = C // 2                                           # 48
    c_pad = -(-C // 128) * 128                           # 128
    h_pad = -(-(2 * H) // 128) * 128                     # per-gate lane width (128)
    bwd_off = h_pad // 2                                 # bwd lanes start here (64)
    assert H <= bwd_off, "fwd/bwd lane packing needs 2*H <= h_pad"
    left = max(W // 2 - 1 for W in kernel_sizes)         # shared left pad
    taps = max(left - (W // 2 - 1) + W for W in kernel_sizes)   # im2col taps (5)

    keys = iter(jax.random.split(key, 64))
    p = {"cfg": dict(E=E, C=C, H=H, c_pad=c_pad, h_pad=h_pad, bwd_off=bwd_off,
                     taps=taps, pad_left=left)}

    # Embedding tables (padding_idx=0 -> row 0 is zero).
    tables = []
    for (n, d) in emb_dims:
        w = 0.1 * jax.random.normal(next(keys), (n, d), jnp.float32)
        tables.append(w.at[0].set(0.0))
    p["emb"] = tables

    # Packed conv weight: (taps, E, c_pad), one (E, c_pad) slab per tap.
    # torch Conv2d weight (OC, 1, E, W): out[t] = b + sum_k w[:,0,:,k]·emb[t+k-L].
    wc = jnp.zeros((taps, E, c_pad), jnp.float32)
    bc = jnp.zeros((1, c_pad), jnp.float32)
    col = 0
    for W in kernel_sizes:
        wt = 0.1 * jax.random.normal(next(keys), (out_channels, 1, E, W), jnp.float32)
        w_weo = jnp.transpose(wt[:, 0], (2, 1, 0))               # (W, E, OC)
        b = 0.1 * jax.random.normal(next(keys), (out_channels,), jnp.float32)
        s_off = left - (W // 2 - 1)                              # tap offset of width W
        for k in range(W):
            wc = wc.at[s_off + k, :, col:col + out_channels].set(w_weo[k])
        bc = bc.at[0, col:col + out_channels].set(b)
        col += out_channels
    p["wc"] = wc.astype(mm_dtype)
    p["bc"] = bc

    # Highway layers: torch Linear(C, 2C), gate bias init to 1; fused & padded.
    for l in range(1, highway_layers + 1):
        w = 0.1 * jax.random.normal(next(keys), (2 * C, C), jnp.float32)
        b = 0.1 * jax.random.normal(next(keys), (2 * C,), jnp.float32)
        b = b.at[C:].set(1.0)
        whw = jnp.zeros((c_pad, 2 * c_pad), jnp.float32)
        whw = whw.at[:C, :C].set(w[:C].T)                        # nonlinear part
        whw = whw.at[:C, c_pad:c_pad + C].set(w[C:].T)           # gate part
        bhw = jnp.zeros((1, 2 * c_pad), jnp.float32)
        bhw = bhw.at[0, :C].set(b[:C])
        bhw = bhw.at[0, c_pad:c_pad + C].set(b[C:])
        p[f"hw{l}_w"] = whw.astype(mm_dtype)
        p[f"hw{l}_b"] = bhw

    # BiLSTM: fwd and bwd packed into the SAME 128-lane gate groups.
    #   wih: (c_pad, 8*h_pad) -> first 4*h_pad cols feed the fwd lanes (0:H),
    #        next 4*h_pad cols feed the bwd lanes (bwd_off:bwd_off+H).
    #   whh: (h_pad, 4*h_pad) block-diagonal (fwd rows -> fwd lanes, bwd -> bwd).
    #   bias = b_ih + b_hh, baked into the corresponding input-proj columns.
    #   Gate column order (i, f, o, g): sigmoid gates contiguous.
    G = 4 * h_pad
    gate_perm = (0, 1, 3, 2)             # new (i,f,o,g) <- torch (i,f,g,o) index
    wih = jnp.zeros((c_pad, 2 * G), jnp.float32)
    bih = jnp.zeros((1, 2 * G), jnp.float32)
    whh = jnp.zeros((h_pad, G), jnp.float32)
    for d_idx, lane0 in enumerate((0, bwd_off)):   # 0: fwd direction, 1: bwd
        wih_t = 0.1 * jax.random.normal(next(keys), (4 * H, C), jnp.float32)
        whh_t = 0.1 * jax.random.normal(next(keys), (4 * H, H), jnp.float32)
        b_i = 0.1 * jax.random.normal(next(keys), (4 * H,), jnp.float32)
        b_h = 0.1 * jax.random.normal(next(keys), (4 * H,), jnp.float32)
        bsum = b_i + b_h
        for g_new, g_t in enumerate(gate_perm):
            src = slice(g_t * H, (g_t + 1) * H)
            colp = d_idx * G + g_new * h_pad + lane0             # wih / bias column
            wih = wih.at[:C, colp:colp + H].set(wih_t[src, :].T)
            bih = bih.at[0, colp:colp + H].set(bsum[src])
            colr = g_new * h_pad + lane0                         # whh column
            whh = whh.at[lane0:lane0 + H, colr:colr + H].set(whh_t[src, :].T)
    p["wih"] = wih.astype(mm_dtype)
    p["bih"] = bih
    p["whh"] = whh.astype(mm_dtype)
    return p


# ---------------------------------------------------------------------------
# Forward wrapper (embedding lookup, padding, one fused pallas_call).
# ---------------------------------------------------------------------------
def cnn_rnn_forward(params, cat_X, cont_X, lengths, unsort,
                    mm_dtype=jnp.bfloat16):
    cfg = params["cfg"]
    E, C, H = cfg["E"], cfg["C"], cfg["H"]
    c_pad, h_pad, bwd_off = cfg["c_pad"], cfg["h_pad"], cfg["bwd_off"]
    S, left = cfg["taps"], cfg["pad_left"]

    # Embedding lookup + continuous features, built directly TIME-MAJOR so the
    # kernel never transposes the (much larger) feature tensor.
    pieces = [params["emb"][i][jnp.transpose(cat_X[:, i])]       # (T, B, d_i)
              for i in range(len(params["emb"]))]
    if cont_X is not None:
        pieces.append(jnp.transpose(cont_X, (2, 0, 1)))          # (T, B, cont)
    emb = jnp.concatenate(pieces, axis=2)                        # (T, B, E)
    T, B, _ = emb.shape

    # Pad batch to a sublane multiple (in-kernel row slices stay aligned,
    # padded rows get length 0 so the LSTM never updates them); apply ONE
    # asymmetric time pad covering all kernel widths; flatten time-major.
    Bp = -(-B // 8) * 8
    emb = jnp.pad(emb, ((left, S - 1 - left), (0, Bp - B), (0, 0)))
    e_flat = emb.reshape((T + S - 1) * Bp, E)
    lens = jnp.pad(lengths.astype(jnp.int32), (0, Bp - B)).reshape(Bp, 1)

    vmem = lambda: pl.BlockSpec(memory_space=pltpu.MemorySpace.VMEM)

    # One fused kernel: conv(5/4/3)+ReLU -> 2x Highway -> BiLSTM final hidden.
    # (Whole batch per call amortizes all launch/DMA overhead at these sizes;
    #  for production B*T this call would get batch-blocked BlockSpecs sized
    #  per-generation, e.g. 64 MiB-aware on v7x.)
    hidden = pl.pallas_call(
        make_cnn_rnn_kernel(seq_len=T, batch=Bp, n_taps=S,
                            bwd_off=bwd_off, mm_dtype=mm_dtype),
        out_shape=jax.ShapeDtypeStruct((Bp, h_pad), jnp.float32),
        in_specs=[vmem() for _ in range(11)],
        out_specs=vmem(),
        scratch_shapes=[pltpu.VMEM((T * Bp, 4 * h_pad), jnp.float32),   # pf
                        pltpu.VMEM((T * Bp, 4 * h_pad), jnp.float32)],  # pb
    )(e_flat, params["wc"], params["bc"],
      params["hw1_w"], params["hw1_b"], params["hw2_w"], params["hw2_b"],
      lens, params["wih"], params["bih"], params["whh"])

    # Strip lane/batch padding, concat fwd|bwd, restore original batch order.
    out = jnp.concatenate([hidden[:B, :H], hidden[:B, bwd_off:bwd_off + H]],
                          axis=1)                                # (B, 2H) = (B, C)
    return out[unsort]


if __name__ == "__main__":
    emb_dims = [(10, 8), (12, 8)]   # summed embedding dim = 16
    cont_features = 4               # E = 20
    B, T = 4, 8

    root = jax.random.PRNGKey(0)
    kp, kc, kx = jax.random.split(root, 3)
    params = init_params(kp, emb_dims, cont_features)

    cat_X = jax.random.randint(kc, (B, len(emb_dims), T), 0, 10, dtype=jnp.int32)
    cont_X = jax.random.normal(kx, (B, cont_features, T), jnp.float32)
    # pack_padded_sequence semantics: lengths sorted descending; `unsort`
    # restores the original order of the batch.
    lengths = jnp.array([8, 6, 5, 3], dtype=jnp.int32)
    unsort = jnp.array([2, 0, 3, 1], dtype=jnp.int32)

    out = jax.block_until_ready(
        cnn_rnn_forward(params, cat_X, cont_X, lengths, unsort))
    C = params["cfg"]["C"]
    assert out.shape == (B, C), out.shape          # (4, 96)
    assert bool(jnp.all(jnp.isfinite(out)))
    print("KERNEL_OK")
</pallas_src>

<mosaic_0001>
module attributes {stable_mosaic.version = 11 : i64} {
  func.func @kernel(%arg0: memref<96x20xf32, #tpu.memory_space<vmem>>, %arg1: memref<5x20x128xbf16, #tpu.memory_space<vmem>>, %arg2: memref<1x128xf32, #tpu.memory_space<vmem>>, %arg3: memref<128x256xbf16, #tpu.memory_space<vmem>>, %arg4: memref<1x256xf32, #tpu.memory_space<vmem>>, %arg5: memref<128x256xbf16, #tpu.memory_space<vmem>>, %arg6: memref<1x256xf32, #tpu.memory_space<vmem>>, %arg7: memref<8x1xi32, #tpu.memory_space<vmem>>, %arg8: memref<128x1024xbf16, #tpu.memory_space<vmem>>, %arg9: memref<1x1024xf32, #tpu.memory_space<vmem>>, %arg10: memref<128x512xbf16, #tpu.memory_space<vmem>>, %arg11: memref<8x128xf32, #tpu.memory_space<vmem>>, %arg12: memref<64x512xf32, #tpu.memory_space<vmem>>, %arg13: memref<64x512xf32, #tpu.memory_space<vmem>>) attributes {dimension_semantics = [], scalar_prefetch = 0 : i64, scratch_operands = 2 : i64, tpu.core_type = #tpu.core_type<tc>} {
    %c0 = arith.constant 0 : index
    %c0_0 = arith.constant 0 : index
    %0 = vector.load %arg0[%c0, %c0_0] : memref<96x20xf32, #tpu.memory_space<vmem>>, vector<96x20xf32>
    %1 = vector.extract_strided_slice %0 {offsets = [0, 0], sizes = [64, 20], strides = [1, 1]} : vector<96x20xf32> to vector<64x20xf32>
    %2 = arith.truncf %1 : vector<64x20xf32> to vector<64x20xbf16>
    %c0_1 = arith.constant 0 : index
    %c0_2 = arith.constant 0 : index
    %c0_3 = arith.constant 0 : index
    %3 = vector.load %arg1[%c0_1, %c0_2, %c0_3] : memref<5x20x128xbf16, #tpu.memory_space<vmem>>, vector<1x20x128xbf16>
    %4 = vector.shape_cast %3 : vector<1x20x128xbf16> to vector<20x128xbf16>
    %cst = arith.constant dense<0.000000e+00> : vector<64x128xf32>
    %5 = tpu.matmul %2, %4, %cst {dimension_numbers = #tpu.dot_dimension_numbers<[1], [0], [0], [1], [0, 0, 1, 1], [], []>} : vector<64x20xbf16>, vector<20x128xbf16>, vector<64x128xf32> -> vector<64x128xf32>
    %6 = vector.extract_strided_slice %0 {offsets = [8, 0], sizes = [64, 20], strides = [1, 1]} : vector<96x20xf32> to vector<64x20xf32>
    %7 = arith.truncf %6 : vector<64x20xf32> to vector<64x20xbf16>
    %c1 = arith.constant 1 : index
    %c0_4 = arith.constant 0 : index
    %c0_5 = arith.constant 0 : index
    %8 = vector.load %arg1[%c1, %c0_4, %c0_5] : memref<5x20x128xbf16, #tpu.memory_space<vmem>>, vector<1x20x128xbf16>
    %9 = vector.shape_cast %8 : vector<1x20x128xbf16> to vector<20x128xbf16>
    %cst_6 = arith.constant dense<0.000000e+00> : vector<64x128xf32>
    %10 = tpu.matmul %7, %9, %cst_6 {dimension_numbers = #tpu.dot_dimension_numbers<[1], [0], [0], [1], [0, 0, 1, 1], [], []>} : vector<64x20xbf16>, vector<20x128xbf16>, vector<64x128xf32> -> vector<64x128xf32>
    %11 = arith.addf %5, %10 : vector<64x128xf32>
    %12 = vector.extract_strided_slice %0 {offsets = [16, 0], sizes = [64, 20], strides = [1, 1]} : vector<96x20xf32> to vector<64x20xf32>
    %13 = arith.truncf %12 : vector<64x20xf32> to vector<64x20xbf16>
    %c2 = arith.constant 2 : index
    %c0_7 = arith.constant 0 : index
    %c0_8 = arith.constant 0 : index
    %14 = vector.load %arg1[%c2, %c0_7, %c0_8] : memref<5x20x128xbf16, #tpu.memory_space<vmem>>, vector<1x20x128xbf16>
    %15 = vector.shape_cast %14 : vector<1x20x128xbf16> to vector<20x128xbf16>
    %cst_9 = arith.constant dense<0.000000e+00> : vector<64x128xf32>
    %16 = tpu.matmul %13, %15, %cst_9 {dimension_numbers = #tpu.dot_dimension_numbers<[1], [0], [0], [1], [0, 0, 1, 1], [], []>} : vector<64x20xbf16>, vector<20x128xbf16>, vector<64x128xf32> -> vector<64x128xf32>
    %17 = arith.addf %11, %16 : vector<64x128xf32>
    %18 = vector.extract_strided_slice %0 {offsets = [24, 0], sizes = [64, 20], strides = [1, 1]} : vector<96x20xf32> to vector<64x20xf32>
    %19 = arith.truncf %18 : vector<64x20xf32> to vector<64x20xbf16>
    %c3 = arith.constant 3 : index
    %c0_10 = arith.constant 0 : index
    %c0_11 = arith.constant 0 : index
    %20 = vector.load %arg1[%c3, %c0_10, %c0_11] : memref<5x20x128xbf16, #tpu.memory_space<vmem>>, vector<1x20x128xbf16>
    %21 = vector.shape_cast %20 : vector<1x20x128xbf16> to vector<20x128xbf16>
    %cst_12 = arith.constant dense<0.000000e+00> : vector<64x128xf32>
    %22 = tpu.matmul %19, %21, %cst_12 {dimension_numbers = #tpu.dot_dimension_numbers<[1], [0], [0], [1], [0, 0, 1, 1], [], []>} : vector<64x20xbf16>, vector<20x128xbf16>, vector<64x128xf32> -> vector<64x128xf32>
    %23 = arith.addf %17, %22 : vector<64x128xf32>
    %24 = vector.extract_strided_slice %0 {offsets = [32, 0], sizes = [64, 20], strides = [1, 1]} : vector<96x20xf32> to vector<64x20xf32>
    %25 = arith.truncf %24 : vector<64x20xf32> to vector<64x20xbf16>
    %c4 = arith.constant 4 : index
    %c0_13 = arith.constant 0 : index
    %c0_14 = arith.constant 0 : index
    %26 = vector.load %arg1[%c4, %c0_13, %c0_14] : memref<5x20x128xbf16, #tpu.memory_space<vmem>>, vector<1x20x128xbf16>
    %27 = vector.shape_cast %26 : vector<1x20x128xbf16> to vector<20x128xbf16>
    %cst_15 = arith.constant dense<0.000000e+00> : vector<64x128xf32>
    %28 = tpu.matmul %25, %27, %cst_15 {dimension_numbers = #tpu.dot_dimension_numbers<[1], [0], [0], [1], [0, 0, 1, 1], [], []>} : vector<64x20xbf16>, vector<20x128xbf16>, vector<64x128xf32> -> vector<64x128xf32>
    %29 = arith.addf %23, %28 : vector<64x128xf32>
    %c0_16 = arith.constant 0 : index
    %c0_17 = arith.constant 0 : index
    %30 = vector.load %arg2[%c0_16, %c0_17] : memref<1x128xf32, #tpu.memory_space<vmem>>, vector<1x128xf32>
    %31 = vector.broadcast %30 : vector<1x128xf32> to vector<64x128xf32>
    %32 = arith.addf %29, %31 : vector<64x128xf32>
    %cst_18 = arith.constant 0.000000e+00 : f32
    %33 = vector.broadcast %cst_18 : f32 to vector<64x128xf32>
    %34 = arith.maximumf %32, %33 : vector<64x128xf32>
    %35 = arith.truncf %34 : vector<64x128xf32> to vector<64x128xbf16>
    %c0_19 = arith.constant 0 : index
    %c0_20 = arith.constant 0 : index
    %36 = vector.load %arg3[%c0_19, %c0_20] : memref<128x256xbf16, #tpu.memory_space<vmem>>, vector<128x256xbf16>
    %cst_21 = arith.constant dense<0.000000e+00> : vector<64x256xf32>
    %37 = tpu.matmul %35, %36, %cst_21 {dimension_numbers = #tpu.dot_dimension_numbers<[1], [0], [0], [1], [0, 0, 1, 1], [], []>} : vector<64x128xbf16>, vector<128x256xbf16>, vector<64x256xf32> -> vector<64x256xf32>
    %c0_22 = arith.constant 0 : index
    %c0_23 = arith.constant 0 : index
    %38 = vector.load %arg4[%c0_22, %c0_23] : memref<1x256xf32, #tpu.memory_space<vmem>>, vector<1x256xf32>
    %39 = vector.broadcast %38 : vector<1x256xf32> to vector<64x256xf32>
    %40 = arith.addf %37, %39 : vector<64x256xf32>
    %41 = vector.extract_strided_slice %40 {offsets = [0, 0], sizes = [64, 128], strides = [1, 1]} : vector<64x256xf32> to vector<64x128xf32>
    %cst_24 = arith.constant 0.000000e+00 : f32
    %42 = vector.broadcast %cst_24 : f32 to vector<64x128xf32>
    %43 = arith.maximumf %41, %42 : vector<64x128xf32>
    %44 = vector.extract_strided_slice %40 {offsets = [0, 128], sizes = [64, 128], strides = [1, 1]} : vector<64x256xf32> to vector<64x128xf32>
    %45 = arith.negf %44 : vector<64x128xf32>
    %46 = math.exp %45 : vector<64x128xf32>
    %cst_25 = arith.constant 1.000000e+00 : f32
    %47 = vector.broadcast %cst_25 : f32 to vector<64x128xf32>
    %48 = arith.addf %47, %46 : vector<64x128xf32>
    %49 = arith.divf %47, %48 : vector<64x128xf32>
    %50 = arith.mulf %49, %34 : vector<64x128xf32>
    %cst_26 = arith.constant 1.000000e+00 : f32
    %51 = vector.broadcast %cst_26 : f32 to vector<64x128xf32>
    %52 = arith.subf %51, %49 : vector<64x128xf32>
    %53 = arith.mulf %52, %43 : vector<64x128xf32>
    %54 = arith.addf %50, %53 : vector<64x128xf32>
    %55 = arith.truncf %54 : vector<64x128xf32> to vector<64x128xbf16>
    %c0_27 = arith.constant 0 : index
    %c0_28 = arith.constant 0 : index
    %56 = vector.load %arg5[%c0_27, %c0_28] : memref<128x256xbf16, #tpu.memory_space<vmem>>, vector<128x256xbf16>
    %cst_29 = arith.constant dense<0.000000e+00> : vector<64x256xf32>
    %57 = tpu.matmul %55, %56, %cst_29 {dimension_numbers = #tpu.dot_dimension_numbers<[1], [0], [0], [1], [0, 0, 1, 1], [], []>} : vector<64x128xbf16>, vector<128x256xbf16>, vector<64x256xf32> -> vector<64x256xf32>
    %c0_30 = arith.constant 0 : index
    %c0_31 = arith.constant 0 : index
    %58 = vector.load %arg6[%c0_30, %c0_31] : memref<1x256xf32, #tpu.memory_space<vmem>>, vector<1x256xf32>
    %59 = vector.broadcast %58 : vector<1x256xf32> to vector<64x256xf32>
    %60 = arith.addf %57, %59 : vector<64x256xf32>
    %61 = vector.extract_strided_slice %60 {offsets = [0, 0], sizes = [64, 128], strides = [1, 1]} : vector<64x256xf32> to vector<64x128xf32>
    %cst_32 = arith.constant 0.000000e+00 : f32
    %62 = vector.broadcast %cst_32 : f32 to vector<64x128xf32>
    %63 = arith.maximumf %61, %62 : vector<64x128xf32>
    %64 = vector.extract_strided_slice %60 {offsets = [0, 128], sizes = [64, 128], strides = [1, 1]} : vector<64x256xf32> to vector<64x128xf32>
    %65 = arith.negf %64 : vector<64x128xf32>
    %66 = math.exp %65 : vector<64x128xf32>
    %cst_33 = arith.constant 1.000000e+00 : f32
    %67 = vector.broadcast %cst_33 : f32 to vector<64x128xf32>
    %68 = arith.addf %67, %66 : vector<64x128xf32>
    %69 = arith.divf %67, %68 : vector<64x128xf32>
    %70 = arith.mulf %69, %54 : vector<64x128xf32>
    %cst_34 = arith.constant 1.000000e+00 : f32
    %71 = vector.broadcast %cst_34 : f32 to vector<64x128xf32>
    %72 = arith.subf %71, %69 : vector<64x128xf32>
    %73 = arith.mulf %72, %63 : vector<64x128xf32>
    %74 = arith.addf %70, %73 : vector<64x128xf32>
    %75 = arith.truncf %74 : vector<64x128xf32> to vector<64x128xbf16>
    %c0_35 = arith.constant 0 : index
    %c0_36 = arith.constant 0 : index
    %76 = vector.load %arg8[%c0_35, %c0_36] : memref<128x1024xbf16, #tpu.memory_space<vmem>>, vector<128x1024xbf16>
    %cst_37 = arith.constant dense<0.000000e+00> : vector<64x1024xf32>
    %77 = tpu.matmul %75, %76, %cst_37 {dimension_numbers = #tpu.dot_dimension_numbers<[1], [0], [0], [1], [0, 0, 1, 1], [], []>} : vector<64x128xbf16>, vector<128x1024xbf16>, vector<64x1024xf32> -> vector<64x1024xf32>
    %c0_38 = arith.constant 0 : index
    %c0_39 = arith.constant 0 : index
    %78 = vector.load %arg9[%c0_38, %c0_39] : memref<1x1024xf32, #tpu.memory_space<vmem>>, vector<1x1024xf32>
    %79 = vector.broadcast %78 : vector<1x1024xf32> to vector<64x1024xf32>
    %80 = arith.addf %77, %79 : vector<64x1024xf32>
    %81 = vector.extract_strided_slice %80 {offsets = [0, 0], sizes = [64, 512], strides = [1, 1]} : vector<64x1024xf32> to vector<64x512xf32>
    %c0_40 = arith.constant 0 : index
    %c0_41 = arith.constant 0 : index
    %82 = vector.load %arg12[%c0_40, %c0_41] : memref<64x512xf32, #tpu.memory_space<vmem>>, vector<64x512xf32>
    tpu.vector_store %arg12[%c0_40, %c0_41], %81 {strides = array<i32>} : memref<64x512xf32, #tpu.memory_space<vmem>>, vector<64x512xf32>,
    %83 = vector.extract_strided_slice %80 {offsets = [0, 512], sizes = [64, 512], strides = [1, 1]} : vector<64x1024xf32> to vector<64x512xf32>
    %c0_42 = arith.constant 0 : index
    %c0_43 = arith.constant 0 : index
    %84 = vector.load %arg13[%c0_42, %c0_43] : memref<64x512xf32, #tpu.memory_space<vmem>>, vector<64x512xf32>
    tpu.vector_store %arg13[%c0_42, %c0_43], %83 {strides = array<i32>} : memref<64x512xf32, #tpu.memory_space<vmem>>, vector<64x512xf32>,
    %c0_44 = arith.constant 0 : index
    %c0_45 = arith.constant 0 : index
    %85 = vector.load %arg7[%c0_44, %c0_45] : memref<8x1xi32, #tpu.memory_space<vmem>>, vector<8x1xi32>
    %86 = tpu.iota {dimensions = array<i32: 1>} : vector<8x128xi32>
    %c64_i32 = arith.constant 64 : i32
    %87 = vector.broadcast %c64_i32 : i32 to vector<8x128xi32>
    %88 = arith.cmpi slt, %86, %87 : vector<8x128xi32>
    %cst_46 = arith.constant 0.000000e+00 : f32
    %89 = vector.broadcast %cst_46 : f32 to vector<8x128xf32>
    %cst_47 = arith.constant 0.000000e+00 : f32
    %90 = vector.broadcast %cst_47 : f32 to vector<8x128xf32>
    %c0_48 = arith.constant 0 : index
    %c0_49 = arith.constant 0 : index
    %91 = vector.load %arg12[%c0_48, %c0_49] : memref<64x512xf32, #tpu.memory_space<vmem>>, vector<8x512xf32>
    %c56 = arith.constant 56 : index
    %c0_50 = arith.constant 0 : index
    %92 = vector.load %arg13[%c56, %c0_50] : memref<64x512xf32, #tpu.memory_space<vmem>>, vector<8x512xf32>
    %93 = arith.addf %91, %92 : vector<8x512xf32>
    %94 = arith.truncf %89 : vector<8x128xf32> to vector<8x128xbf16>
    %c0_51 = arith.constant 0 : index
    %c0_52 = arith.constant 0 : index
    %95 = vector.load %arg10[%c0_51, %c0_52] : memref<128x512xbf16, #tpu.memory_space<vmem>>, vector<128x512xbf16>
    %cst_53 = arith.constant dense<0.000000e+00> : vector<8x512xf32>
    %96 = tpu.matmul %94, %95, %cst_53 {dimension_numbers = #tpu.dot_dimension_numbers<[1], [0], [0], [1], [0, 0, 1, 1], [], []>} : vector<8x128xbf16>, vector<128x512xbf16>, vector<8x512xf32> -> vector<8x512xf32>
    %97 = arith.addf %93, %96 : vector<8x512xf32>
    %98 = vector.extract_strided_slice %97 {offsets = [0, 0], sizes = [8, 384], strides = [1, 1]} : vector<8x512xf32> to vector<8x384xf32>
    %99 = arith.negf %98 : vector<8x384xf32>
    %100 = math.exp %99 : vector<8x384xf32>
    %cst_54 = arith.constant 1.000000e+00 : f32
    %101 = vector.broadcast %cst_54 : f32 to vector<8x384xf32>
    %102 = arith.addf %101, %100 : vector<8x384xf32>
    %103 = arith.divf %101, %102 : vector<8x384xf32>
    %104 = vector.extract_strided_slice %103 {offsets = [0, 0], sizes = [8, 128], strides = [1, 1]} : vector<8x384xf32> to vector<8x128xf32>
    %105 = vector.extract_strided_slice %103 {offsets = [0, 128], sizes = [8, 128], strides = [1, 1]} : vector<8x384xf32> to vector<8x128xf32>
    %106 = vector.extract_strided_slice %103 {offsets = [0, 256], sizes = [8, 128], strides = [1, 1]} : vector<8x384xf32> to vector<8x128xf32>
    %107 = vector.extract_strided_slice %97 {offsets = [0, 384], sizes = [8, 128], strides = [1, 1]} : vector<8x512xf32> to vector<8x128xf32>
    %108 = math.tanh %107 : vector<8x128xf32>
    %109 = arith.mulf %105, %90 : vector<8x128xf32>
    %110 = arith.mulf %104, %108 : vector<8x128xf32>
    %111 = arith.addf %109, %110 : vector<8x128xf32>
    %112 = math.tanh %111 : vector<8x128xf32>
    %113 = arith.mulf %106, %112 : vector<8x128xf32>
    %c0_i32 = arith.constant 0 : i32
    %c7_i32 = arith.constant 7 : i32
    %114 = vector.broadcast %c0_i32 : i32 to vector<8x128xi32>
    %115 = vector.broadcast %c7_i32 : i32 to vector<8x128xi32>
    %116 = arith.select %88, %114, %115 : vector<8x128xi1>, vector<8x128xi32>
    %117 = vector.broadcast %85 : vector<8x1xi32> to vector<8x128xi32>
    %118 = arith.cmpi slt, %116, %117 : vector<8x128xi32>
    %119 = arith.select %118, %113, %89 : vector<8x128xi1>, vector<8x128xf32>
    %120 = arith.select %118, %111, %90 : vector<8x128xi1>, vector<8x128xf32>
    %c8 = arith.constant 8 : index
    %c0_55 = arith.constant 0 : index
    %121 = vector.load %arg12[%c8, %c0_55] : memref<64x512xf32, #tpu.memory_space<vmem>>, vector<8x512xf32>
    %c48 = arith.constant 48 : index
    %c0_56 = arith.constant 0 : index
    %122 = vector.load %arg13[%c48, %c0_56] : memref<64x512xf32, #tpu.memory_space<vmem>>, vector<8x512xf32>
    %123 = arith.addf %121, %122 : vector<8x512xf32>
    %124 = arith.truncf %119 : vector<8x128xf32> to vector<8x128xbf16>
    %c0_57 = arith.constant 0 : index
    %c0_58 = arith.constant 0 : index
    %125 = vector.load %arg10[%c0_57, %c0_58] : memref<128x512xbf16, #tpu.memory_space<vmem>>, vector<128x512xbf16>
    %cst_59 = arith.constant dense<0.000000e+00> : vector<8x512xf32>
    %126 = tpu.matmul %124, %125, %cst_59 {dimension_numbers = #tpu.dot_dimension_numbers<[1], [0], [0], [1], [0, 0, 1, 1], [], []>} : vector<8x128xbf16>, vector<128x512xbf16>, vector<8x512xf32> -> vector<8x512xf32>
    %127 = arith.addf %123, %126 : vector<8x512xf32>
    %128 = vector.extract_strided_slice %127 {offsets = [0, 0], sizes = [8, 384], strides = [1, 1]} : vector<8x512xf32> to vector<8x384xf32>
    %129 = arith.negf %128 : vector<8x384xf32>
    %130 = math.exp %129 : vector<8x384xf32>
    %cst_60 = arith.constant 1.000000e+00 : f32
    %131 = vector.broadcast %cst_60 : f32 to vector<8x384xf32>
    %132 = arith.addf %131, %130 : vector<8x384xf32>
    %133 = arith.divf %131, %132 : vector<8x384xf32>
    %134 = vector.extract_strided_slice %133 {offsets = [0, 0], sizes = [8, 128], strides = [1, 1]} : vector<8x384xf32> to vector<8x128xf32>
    %135 = vector.extract_strided_slice %133 {offsets = [0, 128], sizes = [8, 128], strides = [1, 1]} : vector<8x384xf32> to vector<8x128xf32>
    %136 = vector.extract_strided_slice %133 {offsets = [0, 256], sizes = [8, 128], strides = [1, 1]} : vector<8x384xf32> to vector<8x128xf32>
    %137 = vector.extract_strided_slice %127 {offsets = [0, 384], sizes = [8, 128], strides = [1, 1]} : vector<8x512xf32> to vector<8x128xf32>
    %138 = math.tanh %137 : vector<8x128xf32>
    %139 = arith.mulf %135, %120 : vector<8x128xf32>
    %140 = arith.mulf %134, %138 : vector<8x128xf32>
    %141 = arith.addf %139, %140 : vector<8x128xf32>
    %142 = math.tanh %141 : vector<8x128xf32>
    %143 = arith.mulf %136, %142 : vector<8x128xf32>
    %c1_i32 = arith.constant 1 : i32
    %c6_i32 = arith.constant 6 : i32
    %144 = vector.broadcast %c1_i32 : i32 to vector<8x128xi32>
    %145 = vector.broadcast %c6_i32 : i32 to vector<8x128xi32>
    %146 = arith.select %88, %144, %145 : vector<8x128xi1>, vector<8x128xi32>
    %147 = vector.broadcast %85 : vector<8x1xi32> to vector<8x128xi32>
    %148 = arith.cmpi slt, %146, %147 : vector<8x128xi32>
    %149 = arith.select %148, %143, %119 : vector<8x128xi1>, vector<8x128xf32>
    %150 = arith.select %148, %141, %120 : vector<8x128xi1>, vector<8x128xf32>
    %c16 = arith.constant 16 : index
    %c0_61 = arith.constant 0 : index
    %151 = vector.load %arg12[%c16, %c0_61] : memref<64x512xf32, #tpu.memory_space<vmem>>, vector<8x512xf32>
    %c40 = arith.constant 40 : index
    %c0_62 = arith.constant 0 : index
    %152 = vector.load %arg13[%c40, %c0_62] : memref<64x512xf32, #tpu.memory_space<vmem>>, vector<8x512xf32>
    %153 = arith.addf %151, %152 : vector<8x512xf32>
    %154 = arith.truncf %149 : vector<8x128xf32> to vector<8x128xbf16>
    %c0_63 = arith.constant 0 : index
    %c0_64 = arith.constant 0 : index
    %155 = vector.load %arg10[%c0_63, %c0_64] : memref<128x512xbf16, #tpu.memory_space<vmem>>, vector<128x512xbf16>
    %cst_65 = arith.constant dense<0.000000e+00> : vector<8x512xf32>
    %156 = tpu.matmul %154, %155, %cst_65 {dimension_numbers = #tpu.dot_dimension_numbers<[1], [0], [0], [1], [0, 0, 1, 1], [], []>} : vector<8x128xbf16>, vector<128x512xbf16>, vector<8x512xf32> -> vector<8x512xf32>
    %157 = arith.addf %153, %156 : vector<8x512xf32>
    %158 = vector.extract_strided_slice %157 {offsets = [0, 0], sizes = [8, 384], strides = [1, 1]} : vector<8x512xf32> to vector<8x384xf32>
    %159 = arith.negf %158 : vector<8x384xf32>
    %160 = math.exp %159 : vector<8x384xf32>
    %cst_66 = arith.constant 1.000000e+00 : f32
    %161 = vector.broadcast %cst_66 : f32 to vector<8x384xf32>
    %162 = arith.addf %161, %160 : vector<8x384xf32>
    %163 = arith.divf %161, %162 : vector<8x384xf32>
    %164 = vector.extract_strided_slice %163 {offsets = [0, 0], sizes = [8, 128], strides = [1, 1]} : vector<8x384xf32> to vector<8x128xf32>
    %165 = vector.extract_strided_slice %163 {offsets = [0, 128], sizes = [8, 128], strides = [1, 1]} : vector<8x384xf32> to vector<8x128xf32>
    %166 = vector.extract_strided_slice %163 {offsets = [0, 256], sizes = [8, 128], strides = [1, 1]} : vector<8x384xf32> to vector<8x128xf32>
    %167 = vector.extract_strided_slice %157 {offsets = [0, 384], sizes = [8, 128], strides = [1, 1]} : vector<8x512xf32> to vector<8x128xf32>
    %168 = math.tanh %167 : vector<8x128xf32>
    %169 = arith.mulf %165, %150 : vector<8x128xf32>
    %170 = arith.mulf %164, %168 : vector<8x128xf32>
    %171 = arith.addf %169, %170 : vector<8x128xf32>
    %172 = math.tanh %171 : vector<8x128xf32>
    %173 = arith.mulf %166, %172 : vector<8x128xf32>
    %c2_i32 = arith.constant 2 : i32
    %c5_i32 = arith.constant 5 : i32
    %174 = vector.broadcast %c2_i32 : i32 to vector<8x128xi32>
    %175 = vector.broadcast %c5_i32 : i32 to vector<8x128xi32>
    %176 = arith.select %88, %174, %175 : vector<8x128xi1>, vector<8x128xi32>
    %177 = vector.broadcast %85 : vector<8x1xi32> to vector<8x128xi32>
    %178 = arith.cmpi slt, %176, %177 : vector<8x128xi32>
    %179 = arith.select %178, %173, %149 : vector<8x128xi1>, vector<8x128xf32>
    %180 = arith.select %178, %171, %150 : vector<8x128xi1>, vector<8x128xf32>
    %c24 = arith.constant 24 : index
    %c0_67 = arith.constant 0 : index
    %181 = vector.load %arg12[%c24, %c0_67] : memref<64x512xf32, #tpu.memory_space<vmem>>, vector<8x512xf32>
    %c32 = arith.constant 32 : index
    %c0_68 = arith.constant 0 : index
    %182 = vector.load %arg13[%c32, %c0_68] : memref<64x512xf32, #tpu.memory_space<vmem>>, vector<8x512xf32>
    %183 = arith.addf %181, %182 : vector<8x512xf32>
    %184 = arith.truncf %179 : vector<8x128xf32> to vector<8x128xbf16>
    %c0_69 = arith.constant 0 : index
    %c0_70 = arith.constant 0 : index
    %185 = vector.load %arg10[%c0_69, %c0_70] : memref<128x512xbf16, #tpu.memory_space<vmem>>, vector<128x512xbf16>
    %cst_71 = arith.constant dense<0.000000e+00> : vector<8x512xf32>
    %186 = tpu.matmul %184, %185, %cst_71 {dimension_numbers = #tpu.dot_dimension_numbers<[1], [0], [0], [1], [0, 0, 1, 1], [], []>} : vector<8x128xbf16>, vector<128x512xbf16>, vector<8x512xf32> -> vector<8x512xf32>
    %187 = arith.addf %183, %186 : vector<8x512xf32>
    %188 = vector.extract_strided_slice %187 {offsets = [0, 0], sizes = [8, 384], strides = [1, 1]} : vector<8x512xf32> to vector<8x384xf32>
    %189 = arith.negf %188 : vector<8x384xf32>
    %190 = math.exp %189 : vector<8x384xf32>
    %cst_72 = arith.constant 1.000000e+00 : f32
    %191 = vector.broadcast %cst_72 : f32 to vector<8x384xf32>
    %192 = arith.addf %191, %190 : vector<8x384xf32>
    %193 = arith.divf %191, %192 : vector<8x384xf32>
    %194 = vector.extract_strided_slice %193 {offsets = [0, 0], sizes = [8, 128], strides = [1, 1]} : vector<8x384xf32> to vector<8x128xf32>
    %195 = vector.extract_strided_slice %193 {offsets = [0, 128], sizes = [8, 128], strides = [1, 1]} : vector<8x384xf32> to vector<8x128xf32>
    %196 = vector.extract_strided_slice %193 {offsets = [0, 256], sizes = [8, 128], strides = [1, 1]} : vector<8x384xf32> to vector<8x128xf32>
    %197 = vector.extract_strided_slice %187 {offsets = [0, 384], sizes = [8, 128], strides = [1, 1]} : vector<8x512xf32> to vector<8x128xf32>
    %198 = math.tanh %197 : vector<8x128xf32>
    %199 = arith.mulf %195, %180 : vector<8x128xf32>
    %200 = arith.mulf %194, %198 : vector<8x128xf32>
    %201 = arith.addf %199, %200 : vector<8x128xf32>
    %202 = math.tanh %201 : vector<8x128xf32>
    %203 = arith.mulf %196, %202 : vector<8x128xf32>
    %c3_i32 = arith.constant 3 : i32
    %c4_i32 = arith.constant 4 : i32
    %204 = vector.broadcast %c3_i32 : i32 to vector<8x128xi32>
    %205 = vector.broadcast %c4_i32 : i32 to vector<8x128xi32>
    %206 = arith.select %88, %204, %205 : vector<8x128xi1>, vector<8x128xi32>
    %207 = vector.broadcast %85 : vector<8x1xi32> to vector<8x128xi32>
    %208 = arith.cmpi slt, %206, %207 : vector<8x128xi32>
    %209 = arith.select %208, %203, %179 : vector<8x128xi1>, vector<8x128xf32>
    %210 = arith.select %208, %201, %180 : vector<8x128xi1>, vector<8x128xf32>
    %c32_73 = arith.constant 32 : index
    %c0_74 = arith.constant 0 : index
    %211 = vector.load %arg12[%c32_73, %c0_74] : memref<64x512xf32, #tpu.memory_space<vmem>>, vector<8x512xf32>
    %c24_75 = arith.constant 24 : index
    %c0_76 = arith.constant 0 : index
    %212 = vector.load %arg13[%c24_75, %c0_76] : memref<64x512xf32, #tpu.memory_space<vmem>>, vector<8x512xf32>
    %213 = arith.addf %211, %212 : vector<8x512xf32>
    %214 = arith.truncf %209 : vector<8x128xf32> to vector<8x128xbf16>
    %c0_77 = arith.constant 0 : index
    %c0_78 = arith.constant 0 : index
    %215 = vector.load %arg10[%c0_77, %c0_78] : memref<128x512xbf16, #tpu.memory_space<vmem>>, vector<128x512xbf16>
    %cst_79 = arith.constant dense<0.000000e+00> : vector<8x512xf32>
    %216 = tpu.matmul %214, %215, %cst_79 {dimension_numbers = #tpu.dot_dimension_numbers<[1], [0], [0], [1], [0, 0, 1, 1], [], []>} : vector<8x128xbf16>, vector<128x512xbf16>, vector<8x512xf32> -> vector<8x512xf32>
    %217 = arith.addf %213, %216 : vector<8x512xf32>
    %218 = vector.extract_strided_slice %217 {offsets = [0, 0], sizes = [8, 384], strides = [1, 1]} : vector<8x512xf32> to vector<8x384xf32>
    %219 = arith.negf %218 : vector<8x384xf32>
    %220 = math.exp %219 : vector<8x384xf32>
    %cst_80 = arith.constant 1.000000e+00 : f32
    %221 = vector.broadcast %cst_80 : f32 to vector<8x384xf32>
    %222 = arith.addf %221, %220 : vector<8x384xf32>
    %223 = arith.divf %221, %222 : vector<8x384xf32>
    %224 = vector.extract_strided_slice %223 {offsets = [0, 0], sizes = [8, 128], strides = [1, 1]} : vector<8x384xf32> to vector<8x128xf32>
    %225 = vector.extract_strided_slice %223 {offsets = [0, 128], sizes = [8, 128], strides = [1, 1]} : vector<8x384xf32> to vector<8x128xf32>
    %226 = vector.extract_strided_slice %223 {offsets = [0, 256], sizes = [8, 128], strides = [1, 1]} : vector<8x384xf32> to vector<8x128xf32>
    %227 = vector.extract_strided_slice %217 {offsets = [0, 384], sizes = [8, 128], strides = [1, 1]} : vector<8x512xf32> to vector<8x128xf32>
    %228 = math.tanh %227 : vector<8x128xf32>
    %229 = arith.mulf %225, %210 : vector<8x128xf32>
    %230 = arith.mulf %224, %228 : vector<8x128xf32>
    %231 = arith.addf %229, %230 : vector<8x128xf32>
    %232 = math.tanh %231 : vector<8x128xf32>
    %233 = arith.mulf %226, %232 : vector<8x128xf32>
    %c4_i32_81 = arith.constant 4 : i32
    %c3_i32_82 = arith.constant 3 : i32
    %234 = vector.broadcast %c4_i32_81 : i32 to vector<8x128xi32>
    %235 = vector.broadcast %c3_i32_82 : i32 to vector<8x128xi32>
    %236 = arith.select %88, %234, %235 : vector<8x128xi1>, vector<8x128xi32>
    %237 = vector.broadcast %85 : vector<8x1xi32> to vector<8x128xi32>
    %238 = arith.cmpi slt, %236, %237 : vector<8x128xi32>
    %239 = arith.select %238, %233, %209 : vector<8x128xi1>, vector<8x128xf32>
    %240 = arith.select %238, %231, %210 : vector<8x128xi1>, vector<8x128xf32>
    %c40_83 = arith.constant 40 : index
    %c0_84 = arith.constant 0 : index
    %241 = vector.load %arg12[%c40_83, %c0_84] : memref<64x512xf32, #tpu.memory_space<vmem>>, vector<8x512xf32>
    %c16_85 = arith.constant 16 : index
    %c0_86 = arith.constant 0 : index
    %242 = vector.load %arg13[%c16_85, %c0_86] : memref<64x512xf32, #tpu.memory_space<vmem>>, vector<8x512xf32>
    %243 = arith.addf %241, %242 : vector<8x512xf32>
    %244 = arith.truncf %239 : vector<8x128xf32> to vector<8x128xbf16>
    %c0_87 = arith.constant 0 : index
    %c0_88 = arith.constant 0 : index
    %245 = vector.load %arg10[%c0_87, %c0_88] : memref<128x512xbf16, #tpu.memory_space<vmem>>, vector<128x512xbf16>
    %cst_89 = arith.constant dense<0.000000e+00> : vector<8x512xf32>
    %246 = tpu.matmul %244, %245, %cst_89 {dimension_numbers = #tpu.dot_dimension_numbers<[1], [0], [0], [1], [0, 0, 1, 1], [], []>} : vector<8x128xbf16>, vector<128x512xbf16>, vector<8x512xf32> -> vector<8x512xf32>
    %247 = arith.addf %243, %246 : vector<8x512xf32>
    %248 = vector.extract_strided_slice %247 {offsets = [0, 0], sizes = [8, 384], strides = [1, 1]} : vector<8x512xf32> to vector<8x384xf32>
    %249 = arith.negf %248 : vector<8x384xf32>
    %250 = math.exp %249 : vector<8x384xf32>
    %cst_90 = arith.constant 1.000000e+00 : f32
    %251 = vector.broadcast %cst_90 : f32 to vector<8x384xf32>
    %252 = arith.addf %251, %250 : vector<8x384xf32>
    %253 = arith.divf %251, %252 : vector<8x384xf32>
    %254 = vector.extract_strided_slice %253 {offsets = [0, 0], sizes = [8, 128], strides = [1, 1]} : vector<8x384xf32> to vector<8x128xf32>
    %255 = vector.extract_strided_slice %253 {offsets = [0, 128], sizes = [8, 128], strides = [1, 1]} : vector<8x384xf32> to vector<8x128xf32>
    %256 = vector.extract_strided_slice %253 {offsets = [0, 256], sizes = [8, 128], strides = [1, 1]} : vector<8x384xf32> to vector<8x128xf32>
    %257 = vector.extract_strided_slice %247 {offsets = [0, 384], sizes = [8, 128], strides = [1, 1]} : vector<8x512xf32> to vector<8x128xf32>
    %258 = math.tanh %257 : vector<8x128xf32>
    %259 = arith.mulf %255, %240 : vector<8x128xf32>
    %260 = arith.mulf %254, %258 : vector<8x128xf32>
    %261 = arith.addf %259, %260 : vector<8x128xf32>
    %262 = math.tanh %261 : vector<8x128xf32>
    %263 = arith.mulf %256, %262 : vector<8x128xf32>
    %c5_i32_91 = arith.constant 5 : i32
    %c2_i32_92 = arith.constant 2 : i32
    %264 = vector.broadcast %c5_i32_91 : i32 to vector<8x128xi32>
    %265 = vector.broadcast %c2_i32_92 : i32 to vector<8x128xi32>
    %266 = arith.select %88, %264, %265 : vector<8x128xi1>, vector<8x128xi32>
    %267 = vector.broadcast %85 : vector<8x1xi32> to vector<8x128xi32>
    %268 = arith.cmpi slt, %266, %267 : vector<8x128xi32>
    %269 = arith.select %268, %263, %239 : vector<8x128xi1>, vector<8x128xf32>
    %270 = arith.select %268, %261, %240 : vector<8x128xi1>, vector<8x128xf32>
    %c48_93 = arith.constant 48 : index
    %c0_94 = arith.constant 0 : index
    %271 = vector.load %arg12[%c48_93, %c0_94] : memref<64x512xf32, #tpu.memory_space<vmem>>, vector<8x512xf32>
    %c8_95 = arith.constant 8 : index
    %c0_96 = arith.constant 0 : index
    %272 = vector.load %arg13[%c8_95, %c0_96] : memref<64x512xf32, #tpu.memory_space<vmem>>, vector<8x512xf32>
    %273 = arith.addf %271, %272 : vector<8x512xf32>
    %274 = arith.truncf %269 : vector<8x128xf32> to vector<8x128xbf16>
    %c0_97 = arith.constant 0 : index
    %c0_98 = arith.constant 0 : index
    %275 = vector.load %arg10[%c0_97, %c0_98] : memref<128x512xbf16, #tpu.memory_space<vmem>>, vector<128x512xbf16>
    %cst_99 = arith.constant dense<0.000000e+00> : vector<8x512xf32>
    %276 = tpu.matmul %274, %275, %cst_99 {dimension_numbers = #tpu.dot_dimension_numbers<[1], [0], [0], [1], [0, 0, 1, 1], [], []>} : vector<8x128xbf16>, vector<128x512xbf16>, vector<8x512xf32> -> vector<8x512xf32>
    %277 = arith.addf %273, %276 : vector<8x512xf32>
    %278 = vector.extract_strided_slice %277 {offsets = [0, 0], sizes = [8, 384], strides = [1, 1]} : vector<8x512xf32> to vector<8x384xf32>
    %279 = arith.negf %278 : vector<8x384xf32>
    %280 = math.exp %279 : vector<8x384xf32>
    %cst_100 = arith.constant 1.000000e+00 : f32
    %281 = vector.broadcast %cst_100 : f32 to vector<8x384xf32>
    %282 = arith.addf %281, %280 : vector<8x384xf32>
    %283 = arith.divf %281, %282 : vector<8x384xf32>
    %284 = vector.extract_strided_slice %283 {offsets = [0, 0], sizes = [8, 128], strides = [1, 1]} : vector<8x384xf32> to vector<8x128xf32>
    %285 = vector.extract_strided_slice %283 {offsets = [0, 128], sizes = [8, 128], strides = [1, 1]} : vector<8x384xf32> to vector<8x128xf32>
    %286 = vector.extract_strided_slice %283 {offsets = [0, 256], sizes = [8, 128], strides = [1, 1]} : vector<8x384xf32> to vector<8x128xf32>
    %287 = vector.extract_strided_slice %277 {offsets = [0, 384], sizes = [8, 128], strides = [1, 1]} : vector<8x512xf32> to vector<8x128xf32>
    %288 = math.tanh %287 : vector<8x128xf32>
    %289 = arith.mulf %285, %270 : vector<8x128xf32>
    %290 = arith.mulf %284, %288 : vector<8x128xf32>
    %291 = arith.addf %289, %290 : vector<8x128xf32>
    %292 = math.tanh %291 : vector<8x128xf32>
    %293 = arith.mulf %286, %292 : vector<8x128xf32>
    %c6_i32_101 = arith.constant 6 : i32
    %c1_i32_102 = arith.constant 1 : i32
    %294 = vector.broadcast %c6_i32_101 : i32 to vector<8x128xi32>
    %295 = vector.broadcast %c1_i32_102 : i32 to vector<8x128xi32>
    %296 = arith.select %88, %294, %295 : vector<8x128xi1>, vector<8x128xi32>
    %297 = vector.broadcast %85 : vector<8x1xi32> to vector<8x128xi32>
    %298 = arith.cmpi slt, %296, %297 : vector<8x128xi32>
    %299 = arith.select %298, %293, %269 : vector<8x128xi1>, vector<8x128xf32>
    %300 = arith.select %298, %291, %270 : vector<8x128xi1>, vector<8x128xf32>
    %c56_103 = arith.constant 56 : index
    %c0_104 = arith.constant 0 : index
    %301 = vector.load %arg12[%c56_103, %c0_104] : memref<64x512xf32, #tpu.memory_space<vmem>>, vector<8x512xf32>
    %c0_105 = arith.constant 0 : index
    %c0_106 = arith.constant 0 : index
    %302 = vector.load %arg13[%c0_105, %c0_106] : memref<64x512xf32, #tpu.memory_space<vmem>>, vector<8x512xf32>
    %303 = arith.addf %301, %302 : vector<8x512xf32>
    %304 = arith.truncf %299 : vector<8x128xf32> to vector<8x128xbf16>
    %c0_107 = arith.constant 0 : index
    %c0_108 = arith.constant 0 : index
    %305 = vector.load %arg10[%c0_107, %c0_108] : memref<128x512xbf16, #tpu.memory_space<vmem>>, vector<128x512xbf16>
    %cst_109 = arith.constant dense<0.000000e+00> : vector<8x512xf32>
    %306 = tpu.matmul %304, %305, %cst_109 {dimension_numbers = #tpu.dot_dimension_numbers<[1], [0], [0], [1], [0, 0, 1, 1], [], []>} : vector<8x128xbf16>, vector<128x512xbf16>, vector<8x512xf32> -> vector<8x512xf32>
    %307 = arith.addf %303, %306 : vector<8x512xf32>
    %308 = vector.extract_strided_slice %307 {offsets = [0, 0], sizes = [8, 384], strides = [1, 1]} : vector<8x512xf32> to vector<8x384xf32>
    %309 = arith.negf %308 : vector<8x384xf32>
    %310 = math.exp %309 : vector<8x384xf32>
    %cst_110 = arith.constant 1.000000e+00 : f32
    %311 = vector.broadcast %cst_110 : f32 to vector<8x384xf32>
    %312 = arith.addf %311, %310 : vector<8x384xf32>
    %313 = arith.divf %311, %312 : vector<8x384xf32>
    %314 = vector.extract_strided_slice %313 {offsets = [0, 0], sizes = [8, 128], strides = [1, 1]} : vector<8x384xf32> to vector<8x128xf32>
    %315 = vector.extract_strided_slice %313 {offsets = [0, 128], sizes = [8, 128], strides = [1, 1]} : vector<8x384xf32> to vector<8x128xf32>
    %316 = vector.extract_strided_slice %313 {offsets = [0, 256], sizes = [8, 128], strides = [1, 1]} : vector<8x384xf32> to vector<8x128xf32>
    %317 = vector.extract_strided_slice %307 {offsets = [0, 384], sizes = [8, 128], strides = [1, 1]} : vector<8x512xf32> to vector<8x128xf32>
    %318 = math.tanh %317 : vector<8x128xf32>
    %319 = arith.mulf %315, %300 : vector<8x128xf32>
    %320 = arith.mulf %314, %318 : vector<8x128xf32>
    %321 = arith.addf %319, %320 : vector<8x128xf32>
    %322 = math.tanh %321 : vector<8x128xf32>
    %323 = arith.mulf %316, %322 : vector<8x128xf32>
    %c7_i32_111 = arith.constant 7 : i32
    %c0_i32_112 = arith.constant 0 : i32
    %324 = vector.broadcast %c7_i32_111 : i32 to vector<8x128xi32>
    %325 = vector.broadcast %c0_i32_112 : i32 to vector<8x128xi32>
    %326 = arith.select %88, %324, %325 : vector<8x128xi1>, vector<8x128xi32>
    %327 = vector.broadcast %85 : vector<8x1xi32> to vector<8x128xi32>
    %328 = arith.cmpi slt, %326, %327 : vector<8x128xi32>
    %329 = arith.select %328, %323, %299 : vector<8x128xi1>, vector<8x128xf32>
    %c0_113 = arith.constant 0 : index
    %c0_114 = arith.constant 0 : index
    %330 = vector.load %arg11[%c0_113, %c0_114] : memref<8x128xf32, #tpu.memory_space<vmem>>, vector<8x128xf32>
    tpu.vector_store %arg11[%c0_113, %c0_114], %329 {strides = array<i32>} : memref<8x128xf32, #tpu.memory_space<vmem>>, vector<8x128xf32>,
    return
  }
}

</mosaic_0001>

<llo_original>
// kernel: tpu_custom_call.1
$region0: #{tpu_custom_call.1}
  #allocation0 [shape = 'u32[]', space=smem, size = 0x4, offset = 0x4, fixed_abs, tag = 'smem constant byte address 0x4 - core index']
  #allocation1 [shape = 'u32[144,128]{1,0:T(1,128)}', space=vmem, size = 0x12000, scoped, tag = 'internal scratch']
  #allocation2 [shape = 'f32[64,512]{1,0:T(8,128)}', space=vmem, size = 0x20000, scoped, tag = 'scratch operand']
  #allocation3 [shape = 'f32[64,512]{1,0:T(8,128)}', space=vmem, size = 0x20000, scoped, tag = 'scratch operand']
  %s0 = inlined_call_operand.vmem [shape: f32[96,20], index: 0, kind: input, shape index: {}]
  %s1 = inlined_call_operand.hbm [shape: bf16[5,20,128], index: 1, kind: input, shape index: {}]
  %s2 = inlined_call_operand.hbm [shape: f32[1,128], index: 2, kind: input, shape index: {}]
  %s3 = inlined_call_operand.vmem [shape: bf16[128,256], index: 3, kind: input, shape index: {}]
  %s4 = inlined_call_operand.vmem [shape: f32[1,256], index: 4, kind: input, shape index: {}]
  %s5 = inlined_call_operand.hbm [shape: bf16[128,256], index: 5, kind: input, shape index: {}]
  %s6 = inlined_call_operand.vmem [shape: f32[1,256], index: 6, kind: input, shape index: {}]
  %s7 = inlined_call_operand.vmem [shape: s32[8,1], index: 7, kind: input, shape index: {}]
  %s8 = inlined_call_operand.hbm [shape: bf16[128,1024], index: 8, kind: input, shape index: {}]
  %s9 = inlined_call_operand.vmem [shape: f32[1,1024], index: 9, kind: input, shape index: {}]
  %s10 = inlined_call_operand.hbm [shape: bf16[128,512], index: 10, kind: input, shape index: {}]
  %s11 = inlined_call_operand.hbm [shape: f32[8,128], index: 11, kind: output, shape index: {}]
  %s12 = sld [smem:[#allocation0]]
  $region74: #{tpu_custom_call.1} parent=0
    _
  %s14 = ssub.s32 1, %s12
  %s15 = scalar_select 0, %s14, %s12
  $region1: #{tpu_custom_call.1} parent=0
    #allocation4 [shape = 'u8[30720]{0}', space=vmem, size = 0x7800, scoped, tag = 'input window, operand 1, single buffered']
    #allocation5 [shape = 's32[1]{0}', space=sflag, size = 0x4, scoped, tag = 'scoped memory for tpu_custom_call.1']
    #allocation6 [shape = 's32[1]{0}', space=sflag, size = 0x4, scoped, tag = 'scoped memory for tpu_custom_call.1']
    #allocation7 [shape = 'u8[512]{0}', space=vmem, size = 0x400, scoped, tag = 'input window, operand 2, single buffered']
    #allocation8 [shape = 's32[1]{0}', space=sflag, size = 0x4, scoped, tag = 'scoped memory for tpu_custom_call.1']
    #allocation9 [shape = 'u8[65536]{0}', space=vmem, size = 0x10000, scoped, tag = 'input window, operand 5, single buffered']
    #allocation10 [shape = 'u8[262144]{0}', space=vmem, size = 0x40000, scoped, tag = 'input window, operand 8, single buffered']
    #allocation11 [shape = 's32[1]{0}', space=sflag, size = 0x4, scoped, tag = 'scoped memory for tpu_custom_call.1']
    #allocation12 [shape = 'u8[131072]{0}', space=vmem, size = 0x20000, scoped, tag = 'input window, operand 10, single buffered']
    #allocation13 [shape = 'u8[4096]{0}', space=vmem, size = 0x1000, scoped, tag = 'output window, operand 0, single buffered']
    %16 = vsyncpa [#allocation5], 0
    %17 = vsyncpa [#allocation8], 0
    %18 = vsyncpa [#allocation11], 0
    %19 = vsyncpa [#allocation6], 0
    // Predicated region
    $region2: #{tpu_custom_call.1} parent=1 // pred_check
      _
    $region3: #{tpu_custom_call.1} parent=1 // pred_check_branch
      %21 = sbr.rel (0) target = $region5
    $region4: #{tpu_custom_call.1} parent=1 // pred_region
      _
    $region5: #{tpu_custom_call.1} parent=1 // pred_fallthru
      _
    // Predicated region
    $region6: #{tpu_custom_call.1} parent=1 // pred_check
      _
    $region7: #{tpu_custom_call.1} parent=1 // pred_check_branch
      %23 = sbr.rel (0) target = $region9
    $region8: #{tpu_custom_call.1} parent=1 // pred_region
      %s25 = ssub.s32 960, 960
      %26 = vsyncadd [#allocation5], %s25
      %s27 = sshll.u32 [#allocation4], 4
      %s28 = int_to_ptr.vmem [resolvable:$true] %s27
      %33 = dma.hbm_to_vmem [thread:$0]  %s1, 960, %s28, [#allocation5], 64, 64, 4
    $region9: #{tpu_custom_call.1} parent=1 // pred_fallthru
      _
    // Predicated region
    $region10: #{tpu_custom_call.1} parent=1 // pred_check
      _
    $region11: #{tpu_custom_call.1} parent=1 // pred_check_branch
      %35 = sbr.rel (0) target = $region13
    $region12: #{tpu_custom_call.1} parent=1 // pred_region
      %s37 = ssub.s32 16, 16
      %38 = vsyncadd [#allocation8], %s37
      %s40 = sshll.u32 [#allocation7], 4
      %s41 = int_to_ptr.vmem [resolvable:$true] %s40
      %43 = dma.hbm_to_vmem [thread:$0]  %s2, 16, %s41, [#allocation8]
    $region13: #{tpu_custom_call.1} parent=1 // pred_fallthru
      _
    // Predicated region
    $region14: #{tpu_custom_call.1} parent=1 // pred_check
      _
    $region15: #{tpu_custom_call.1} parent=1 // pred_check_branch
      %45 = sbr.rel (0) target = $region17
    $region16: #{tpu_custom_call.1} parent=1 // pred_region
      _
    $region17: #{tpu_custom_call.1} parent=1 // pred_fallthru
      _
    // Predicated region
    $region18: #{tpu_custom_call.1} parent=1 // pred_check
      _
    $region19: #{tpu_custom_call.1} parent=1 // pred_check_branch
      %47 = sbr.rel (0) target = $region21
    $region20: #{tpu_custom_call.1} parent=1 // pred_region
      _
    $region21: #{tpu_custom_call.1} parent=1 // pred_fallthru
      _
    // Predicated region
    $region22: #{tpu_custom_call.1} parent=1 // pred_check
      _
    $region23: #{tpu_custom_call.1} parent=1 // pred_check_branch
      %49 = sbr.rel (0) target = $region25
    $region24: #{tpu_custom_call.1} parent=1 // pred_region
      %s51 = ssub.s32 2048, 2048
      %52 = vsyncadd [#allocation8], %s51
      %s53 = sshll.u32 [#allocation9], 4
      %s54 = int_to_ptr.vmem [resolvable:$true] %s53
      %59 = dma.hbm_to_vmem [thread:$0]  %s5, 2048, %s54, [#allocation8], 128, 128, 8
    $region25: #{tpu_custom_call.1} parent=1 // pred_fallthru
      _
    // Predicated region
    $region26: #{tpu_custom_call.1} parent=1 // pred_check
      _
    $region27: #{tpu_custom_call.1} parent=1 // pred_check_branch
      %61 = sbr.rel (0) target = $region29
    $region28: #{tpu_custom_call.1} parent=1 // pred_region
      _
    $region29: #{tpu_custom_call.1} parent=1 // pred_fallthru
      _
    // Predicated region
    $region30: #{tpu_custom_call.1} parent=1 // pred_check
      _
    $region31: #{tpu_custom_call.1} parent=1 // pred_check_branch
      %63 = sbr.rel (0) target = $region33
    $region32: #{tpu_custom_call.1} parent=1 // pred_region
      _
    $region33: #{tpu_custom_call.1} parent=1 // pred_fallthru
      _
    // Predicated region
    $region34: #{tpu_custom_call.1} parent=1 // pred_check
      _
    $region35: #{tpu_custom_call.1} parent=1 // pred_check_branch
      %65 = sbr.rel (0) target = $region37
    $region36: #{tpu_custom_call.1} parent=1 // pred_region
      %s67 = ssub.s32 8192, 8192
      %68 = vsyncadd [#allocation11], %s67
      %s69 = sshll.u32 [#allocation10], 4
      %s70 = int_to_ptr.vmem [resolvable:$true] %s69
      %75 = dma.hbm_to_vmem [thread:$0]  %s8, 8192, %s70, [#allocation11], 512, 512, 32
    $region37: #{tpu_custom_call.1} parent=1 // pred_fallthru
      _
    // Predicated region
    $region38: #{tpu_custom_call.1} parent=1 // pred_check
      _
    $region39: #{tpu_custom_call.1} parent=1 // pred_check_branch
      %77 = sbr.rel (0) target = $region41
    $region40: #{tpu_custom_call.1} parent=1 // pred_region
      _
    $region41: #{tpu_custom_call.1} parent=1 // pred_fallthru
      _
    // Predicated region
    $region42: #{tpu_custom_call.1} parent=1 // pred_check
      _
    $region43: #{tpu_custom_call.1} parent=1 // pred_check_branch
      %79 = sbr.rel (0) target = $region45
    $region44: #{tpu_custom_call.1} parent=1 // pred_region
      %s81 = ssub.s32 4096, 4096
      %82 = vsyncadd [#allocation11], %s81
      %s83 = sshll.u32 [#allocation12], 4
      %s84 = int_to_ptr.vmem [resolvable:$true] %s83
      %89 = dma.hbm_to_vmem [thread:$0]  %s10, 4096, %s84, [#allocation11], 256, 256, 16
    $region45: #{tpu_custom_call.1} parent=1 // pred_fallthru
      _
    // Predicated region
    $region46: #{tpu_custom_call.1} parent=1 // pred_check
      _
    $region47: #{tpu_custom_call.1} parent=1 // pred_check_branch
      %91 = sbr.rel (0) target = $region49
    $region48: #{tpu_custom_call.1} parent=1 // pred_region
      %92 = dma.done [#allocation5], 960
    $region49: #{tpu_custom_call.1} parent=1 // pred_fallthru
      _
    // Predicated region
    $region50: #{tpu_custom_call.1} parent=1 // pred_check
      _
    $region51: #{tpu_custom_call.1} parent=1 // pred_check_branch
      %94 = sbr.rel (0) target = $region53
    $region52: #{tpu_custom_call.1} parent=1 // pred_region
      %95 = dma.done [#allocation8], 16
    $region53: #{tpu_custom_call.1} parent=1 // pred_fallthru
      _
    // Predicated region
    $region54: #{tpu_custom_call.1} parent=1 // pred_check
      _
    $region55: #{tpu_custom_call.1} parent=1 // pred_check_branch
      %97 = sbr.rel (0) target = $region57
    $region56: #{tpu_custom_call.1} parent=1 // pred_region
      %98 = dma.done [#allocation8], 2048
    $region57: #{tpu_custom_call.1} parent=1 // pred_fallthru
      _
    // Predicated region
    $region58: #{tpu_custom_call.1} parent=1 // pred_check
      _
    $region59: #{tpu_custom_call.1} parent=1 // pred_check_branch
      %100 = sbr.rel (0) target = $region61
    $region60: #{tpu_custom_call.1} parent=1 // pred_region
      %101 = dma.done [#allocation11], 8192
    $region61: #{tpu_custom_call.1} parent=1 // pred_fallthru
      _
    // Predicated region
    $region62: #{tpu_custom_call.1} parent=1 // pred_check
      _
    $region63: #{tpu_custom_call.1} parent=1 // pred_check_branch
      %103 = sbr.rel (0) target = $region65
    $region64: #{tpu_custom_call.1} parent=1 // pred_region
      %104 = dma.done [#allocation11], 4096
    $region65: #{tpu_custom_call.1} parent=1 // pred_fallthru
      _
    %v106 = vld [vmem:[%s0] sm:$0xff]
    %v107 = vld [vmem:[%s0 + $0x8] sm:$0xff]
    %v108 = vld [vmem:[%s0 + $0x10] sm:$0xff]
    %v109 = vld [vmem:[%s0 + $0x18] sm:$0xff]
    %v110 = vld [vmem:[%s0 + $0x20] sm:$0xff]
    %v111 = vld [vmem:[%s0 + $0x28] sm:$0xff]
    %v112 = vld [vmem:[%s0 + $0x30] sm:$0xff]
    %v113 = vld [vmem:[%s0 + $0x38] sm:$0xff]
    %v114 = vld [vmem:[%s0 + $0x40] sm:$0xff]
    %v115 = vld [vmem:[%s0 + $0x48] sm:$0xff]
    %v116 = vld [vmem:[%s0 + $0x50] sm:$0xff]
    %v117 = vld [vmem:[%s0 + $0x58] sm:$0xff]
    %v118 = vpack.c.bf16 %v107, %v106
    %v119 = vpack.c.bf16 %v109, %v108
    %v120 = vpack.c.bf16 %v111, %v110
    %v121 = vpack.c.bf16 %v113, %v112
    %v122 = vld [vmem:[#allocation4] sm:$0xf]
    %v123 = vld [vmem:[#allocation4 + $0x4] sm:$0xf]
    %v124 = vld [vmem:[#allocation4 + $0x8] sm:$0x3]
    %v125 = vpack.c.bf16 %v108, %v107
    %v126 = vpack.c.bf16 %v110, %v109
    %v127 = vpack.c.bf16 %v112, %v111
    %v128 = vpack.c.bf16 %v114, %v113
    %s129 = scalar_lea.vmem [#allocation4], 12
    %v130 = vld [vmem:[%s129] sm:$0xf]
    %v131 = vld [vmem:[%s129 + $0x4] sm:$0xf]
    %v132 = vld [vmem:[%s129 + $0x8] sm:$0x3]
    %v136 = vunpack.c.l.b16 %v130
    %v137 = vunpack.c.l.b16 %v131
    %v138 = vunpack.c.l.b16 %v132
    %v139 = vpack.c.b16 %v137, %v136
    %v140 = vpack.c.b16 %v138, %v138
    %vm142 = vcmask 162816
    %v144 = vsel %vm142, %v125, 0
    %v147 = vsel %vm142, %v126, 0
    %v150 = vsel %vm142, %v127, 0
    %v153 = vsel %vm142, %v128, 0
    %vm155 = vcmask 1041408
    %v157 = vsel %vm155, %v140, 0
    %159 = vmatprep.subr.bf16.mxu0 0
    %160 = vmatpush1.bf16.msra.mxu0 %v139
    %161 = vmatprep.subr.bf16.mxu0 0
    %162 = vmatpush1.bf16.msra.mxu0 %v157
    %163 = vmatprep.subr.bf16.mxu0 0
    %164 = vmatpush1.bf16.msra.mxu0 0
    %165 = vmatprep.subr.bf16.mxu0 0
    %166 = vmatpush1.bf16.msra.mxu0 0
    %167 = vmatprep.subr.bf16.mxu0 0
    %168 = vmatpush1.bf16.msra.mxu0 0
    %169 = vmatprep.subr.bf16.mxu0 0
    %170 = vmatpush1.bf16.msra.mxu0 0
    %171 = vmatprep.subr.bf16.mxu0 0
    %172 = vmatpush1.bf16.msra.mxu0 0
    %173 = vmatprep.subr.bf16.mxu0 0
    %174 = vmatpush1.bf16.msra.mxu0 0
    %175 = vmatprep.subr.bf16.mxu0 0
    %176 = vmatpush1.bf16.msra.mxu0 0
    %177 = vmatprep.subr.bf16.mxu0 0
    %178 = vmatpush1.bf16.msra.mxu0 0
    %179 = vmatprep.subr.bf16.mxu0 0
    %180 = vmatpush1.bf16.msra.mxu0 0
    %181 = vmatprep.subr.bf16.mxu0 0
    %182 = vmatpush1.bf16.msra.mxu0 0
    %183 = vmatprep.subr.bf16.mxu0 0
    %184 = vmatpush1.bf16.msra.mxu0 0
    %185 = vmatprep.subr.bf16.mxu0 0
    %186 = vmatpush1.bf16.msra.mxu0 0
    %187 = vmatprep.subr.bf16.mxu0 0
    %188 = vmatpush1.bf16.msra.mxu0 0
    %189 = vmatprep.subr.bf16.mxu0 0
    %190 = vmatpush1.bf16.msra.mxu0 0
    %191 = vmatprep.mubr.bf16.mxu0 0
    %192 = vmatmul.mubr.bf16.gmra.mrb[0].mxu0 %v144
    %v193 = vpop.f32.mrb[0].mxu0
    %v194 = vadd.f32 0.0, %v193
    %v195 = vpop.f32.mrb[0].mxu0
    %v196 = vpop.f32.mrb[0].mxu0
    %v197 = vadd.f32 0.0, %v196
    %v198 = vpop.f32.mrb[0].mxu0
    %199 = vmatprep.mubr.bf16.mxu0 0
    %200 = vmatmul.mubr.bf16.gmra.mrb[0].mxu0 %v147
    %v201 = vpop.f32.mrb[0].mxu0
    %v202 = vadd.f32 0.0, %v201
    %v203 = vpop.f32.mrb[0].mxu0
    %v204 = vpop.f32.mrb[0].mxu0
    %v205 = vadd.f32 0.0, %v204
    %v206 = vpop.f32.mrb[0].mxu0
    %207 = vmatprep.mubr.bf16.mxu0 0
    %208 = vmatmul.mubr.bf16.gmra.mrb[0].mxu0 %v150
    %v209 = vpop.f32.mrb[0].mxu0
    %v210 = vadd.f32 0.0, %v209
    %v211 = vpop.f32.mrb[0].mxu0
    %v212 = vpop.f32.mrb[0].mxu0
    %v213 = vadd.f32 0.0, %v212
    %v214 = vpop.f32.mrb[0].mxu0
    %215 = vmatprep.mubr.bf16.mxu0 0
    %216 = vmatmul.mubr.bf16.gmra.mrb[0].mxu0 %v153
    %v217 = vpop.f32.mrb[0].mxu0
    %v218 = vadd.f32 0.0, %v217
    %v219 = vpop.f32.mrb[0].mxu0
    %v220 = vpop.f32.mrb[0].mxu0
    %v221 = vadd.f32 0.0, %v220
    %v222 = vpop.f32.mrb[0].mxu0
    %223 = vdwg.mxu0
    %v227 = vunpack.c.l.b16 %v122
    %v228 = vunpack.c.l.b16 %v123
    %v229 = vunpack.c.l.b16 %v124
    %v230 = vpack.c.b16 %v228, %v227
    %v231 = vpack.c.b16 %v229, %v229
    %v234 = vsel %vm142, %v118, 0
    %v237 = vsel %vm142, %v119, 0
    %v240 = vsel %vm142, %v120, 0
    %v243 = vsel %vm142, %v121, 0
    %v246 = vsel %vm155, %v231, 0
    %248 = vmatprep.subr.bf16.mxu0 0
    %249 = vmatpush1.bf16.msra.mxu0 %v230
    %250 = vmatprep.subr.bf16.mxu0 0
    %251 = vmatpush1.bf16.msra.mxu0 %v246
    %252 = vmatprep.subr.bf16.mxu0 0
    %253 = vmatpush1.bf16.msra.mxu0 0
    %254 = vmatprep.subr.bf16.mxu0 0
    %255 = vmatpush1.bf16.msra.mxu0 0
    %256 = vmatprep.subr.bf16.mxu0 0
    %257 = vmatpush1.bf16.msra.mxu0 0
    %258 = vmatprep.subr.bf16.mxu0 0
    %259 = vmatpush1.bf16.msra.mxu0 0
    %260 = vmatprep.subr.bf16.mxu0 0
    %261 = vmatpush1.bf16.msra.mxu0 0
    %262 = vmatprep.subr.bf16.mxu0 0
    %263 = vmatpush1.bf16.msra.mxu0 0
    %264 = vmatprep.subr.bf16.mxu0 0
    %265 = vmatpush1.bf16.msra.mxu0 0
    %266 = vmatprep.subr.bf16.mxu0 0
    %267 = vmatpush1.bf16.msra.mxu0 0
    %268 = vmatprep.subr.bf16.mxu0 0
    %269 = vmatpush1.bf16.msra.mxu0 0
    %270 = vmatprep.subr.bf16.mxu0 0
    %271 = vmatpush1.bf16.msra.mxu0 0
    %272 = vmatprep.subr.bf16.mxu0 0
    %273 = vmatpush1.bf16.msra.mxu0 0
    %274 = vmatprep.subr.bf16.mxu0 0
    %275 = vmatpush1.bf16.msra.mxu0 0
    %276 = vmatprep.subr.bf16.mxu0 0
    %277 = vmatpush1.bf16.msra.mxu0 0
    %278 = vmatprep.subr.bf16.mxu0 0
    %279 = vmatpush1.bf16.msra.mxu0 0
    %280 = vmatprep.mubr.bf16.mxu0 0
    %281 = vmatmul.mubr.bf16.gmra.mrb[0].mxu0 %v234
    %v282 = vpop.f32.mrb[0].mxu0
    %v283 = vadd.f32 %v194, %v282
    %v284 = vpop.f32.mrb[0].mxu0
    %v285 = vpop.f32.mrb[0].mxu0
    %v286 = vadd.f32 %v197, %v285
    %v287 = vpop.f32.mrb[0].mxu0
    %288 = vmatprep.mubr.bf16.mxu0 0
    %289 = vmatmul.mubr.bf16.gmra.mrb[0].mxu0 %v237
    %v290 = vpop.f32.mrb[0].mxu0
    %v291 = vadd.f32 %v202, %v290
    %v292 = vpop.f32.mrb[0].mxu0
    %v293 = vpop.f32.mrb[0].mxu0
    %v294 = vadd.f32 %v205, %v293
    %v295 = vpop.f32.mrb[0].mxu0
    %296 = vmatprep.mubr.bf16.mxu0 0
    %297 = vmatmul.mubr.bf16.gmra.mrb[0].mxu0 %v240
    %v298 = vpop.f32.mrb[0].mxu0
    %v299 = vadd.f32 %v210, %v298
    %v300 = vpop.f32.mrb[0].mxu0
    %v301 = vpop.f32.mrb[0].mxu0
    %v302 = vadd.f32 %v213, %v301
    %v303 = vpop.f32.mrb[0].mxu0
    %304 = vmatprep.mubr.bf16.mxu0 0
    %305 = vmatmul.mubr.bf16.gmra.mrb[0].mxu0 %v243
    %v306 = vpop.f32.mrb[0].mxu0
    %v307 = vadd.f32 %v218, %v306
    %v308 = vpop.f32.mrb[0].mxu0
    %v309 = vpop.f32.mrb[0].mxu0
    %v310 = vadd.f32 %v221, %v309
    %v311 = vpop.f32.mrb[0].mxu0
    %312 = vdwg.mxu0
    %v313 = vpack.c.bf16 %v115, %v114
    %s314 = scalar_lea.vmem [#allocation4], 24
    %v315 = vld [vmem:[%s314] sm:$0xf]
    %v316 = vld [vmem:[%s314 + $0x4] sm:$0xf]
    %v317 = vld [vmem:[%s314 + $0x8] sm:$0x3]
    %v321 = vunpack.c.l.b16 %v315
    %v322 = vunpack.c.l.b16 %v316
    %v323 = vunpack.c.l.b16 %v317
    %v324 = vpack.c.b16 %v322, %v321
    %v325 = vpack.c.b16 %v323, %v323
    %v328 = vsel %vm142, %v313, 0
    %v331 = vsel %vm155, %v325, 0
    %333 = vmatprep.subr.bf16.mxu0 0
    %334 = vmatpush1.bf16.msra.mxu0 %v324
    %335 = vmatprep.subr.bf16.mxu0 0
    %336 = vmatpush1.bf16.msra.mxu0 %v331
    %337 = vmatprep.subr.bf16.mxu0 0
    %338 = vmatpush1.bf16.msra.mxu0 0
    %339 = vmatprep.subr.bf16.mxu0 0
    %340 = vmatpush1.bf16.msra.mxu0 0
    %341 = vmatprep.subr.bf16.mxu0 0
    %342 = vmatpush1.bf16.msra.mxu0 0
    %343 = vmatprep.subr.bf16.mxu0 0
    %344 = vmatpush1.bf16.msra.mxu0 0
    %345 = vmatprep.subr.bf16.mxu0 0
    %346 = vmatpush1.bf16.msra.mxu0 0
    %347 = vmatprep.subr.bf16.mxu0 0
    %348 = vmatpush1.bf16.msra.mxu0 0
    %349 = vmatprep.subr.bf16.mxu0 0
    %350 = vmatpush1.bf16.msra.mxu0 0
    %351 = vmatprep.subr.bf16.mxu0 0
    %352 = vmatpush1.bf16.msra.mxu0 0
    %353 = vmatprep.subr.bf16.mxu0 0
    %354 = vmatpush1.bf16.msra.mxu0 0
    %355 = vmatprep.subr.bf16.mxu0 0
    %356 = vmatpush1.bf16.msra.mxu0 0
    %357 = vmatprep.subr.bf16.mxu0 0
    %358 = vmatpush1.bf16.msra.mxu0 0
    %359 = vmatprep.subr.bf16.mxu0 0
    %360 = vmatpush1.bf16.msra.mxu0 0
    %361 = vmatprep.subr.bf16.mxu0 0
    %362 = vmatpush1.bf16.msra.mxu0 0
    %363 = vmatprep.subr.bf16.mxu0 0
    %364 = vmatpush1.bf16.msra.mxu0 0
    %365 = vmatprep.mubr.bf16.mxu0 0
    %366 = vmatmul.mubr.bf16.gmra.mrb[0].mxu0 %v237
    %v367 = vpop.f32.mrb[0].mxu0
    %v368 = vadd.f32 0.0, %v367
    %v369 = vpop.f32.mrb[0].mxu0
    %v370 = vpop.f32.mrb[0].mxu0
    %v371 = vadd.f32 0.0, %v370
    %v372 = vpop.f32.mrb[0].mxu0
    %373 = vmatprep.mubr.bf16.mxu0 0
    %374 = vmatmul.mubr.bf16.gmra.mrb[0].mxu0 %v240
    %v375 = vpop.f32.mrb[0].mxu0
    %v376 = vadd.f32 0.0, %v375
    %v377 = vpop.f32.mrb[0].mxu0
    %v378 = vpop.f32.mrb[0].mxu0
    %v379 = vadd.f32 0.0, %v378
    %v380 = vpop.f32.mrb[0].mxu0
    %381 = vmatprep.mubr.bf16.mxu0 0
    %382 = vmatmul.mubr.bf16.gmra.mrb[0].mxu0 %v243
    %v383 = vpop.f32.mrb[0].mxu0
    %v384 = vadd.f32 0.0, %v383
    %v385 = vpop.f32.mrb[0].mxu0
    %v386 = vpop.f32.mrb[0].mxu0
    %v387 = vadd.f32 0.0, %v386
    %v388 = vpop.f32.mrb[0].mxu0
    %389 = vmatprep.mubr.bf16.mxu0 0
    %390 = vmatmul.mubr.bf16.gmra.mrb[0].mxu0 %v328
    %v391 = vpop.f32.mrb[0].mxu0
    %v392 = vadd.f32 0.0, %v391
    %v393 = vpop.f32.mrb[0].mxu0
    %v394 = vpop.f32.mrb[0].mxu0
    %v395 = vadd.f32 0.0, %v394
    %v396 = vpop.f32.mrb[0].mxu0
    %397 = vdwg.mxu0
    %v398 = vadd.f32 %v283, %v368
    %v399 = vadd.f32 %v286, %v371
    %v400 = vadd.f32 %v291, %v376
    %v401 = vadd.f32 %v294, %v379
    %v402 = vadd.f32 %v299, %v384
    %v403 = vadd.f32 %v302, %v387
    %v404 = vadd.f32 %v307, %v392
    %v405 = vadd.f32 %v310, %v395
    %v406 = vpack.c.bf16 %v116, %v115
    %s407 = scalar_lea.vmem [#allocation4], 36
    %v408 = vld [vmem:[%s407] sm:$0xf]
    %v409 = vld [vmem:[%s407 + $0x4] sm:$0xf]
    %v410 = vld [vmem:[%s407 + $0x8] sm:$0x3]
    %v414 = vunpack.c.l.b16 %v408
    %v415 = vunpack.c.l.b16 %v409
    %v416 = vunpack.c.l.b16 %v410
    %v417 = vpack.c.b16 %v415, %v414
    %v418 = vpack.c.b16 %v416, %v416
    %v421 = vsel %vm142, %v406, 0
    %v424 = vsel %vm155, %v418, 0
    %426 = vmatprep.subr.bf16.mxu0 0
    %427 = vmatpush1.bf16.msra.mxu0 %v417
    %428 = vmatprep.subr.bf16.mxu0 0
    %429 = vmatpush1.bf16.msra.mxu0 %v424
    %430 = vmatprep.subr.bf16.mxu0 0
    %431 = vmatpush1.bf16.msra.mxu0 0
    %432 = vmatprep.subr.bf16.mxu0 0
    %433 = vmatpush1.bf16.msra.mxu0 0
    %434 = vmatprep.subr.bf16.mxu0 0
    %435 = vmatpush1.bf16.msra.mxu0 0
    %436 = vmatprep.subr.bf16.mxu0 0
    %437 = vmatpush1.bf16.msra.mxu0 0
    %438 = vmatprep.subr.bf16.mxu0 0
    %439 = vmatpush1.bf16.msra.mxu0 0
    %440 = vmatprep.subr.bf16.mxu0 0
    %441 = vmatpush1.bf16.msra.mxu0 0
    %442 = vmatprep.subr.bf16.mxu0 0
    %443 = vmatpush1.bf16.msra.mxu0 0
    %444 = vmatprep.subr.bf16.mxu0 0
    %445 = vmatpush1.bf16.msra.mxu0 0
    %446 = vmatprep.subr.bf16.mxu0 0
    %447 = vmatpush1.bf16.msra.mxu0 0
    %448 = vmatprep.subr.bf16.mxu0 0
    %449 = vmatpush1.bf16.msra.mxu0 0
    %450 = vmatprep.subr.bf16.mxu0 0
    %451 = vmatpush1.bf16.msra.mxu0 0
    %452 = vmatprep.subr.bf16.mxu0 0
    %453 = vmatpush1.bf16.msra.mxu0 0
    %454 = vmatprep.subr.bf16.mxu0 0
    %455 = vmatpush1.bf16.msra.mxu0 0
    %456 = vmatprep.subr.bf16.mxu0 0
    %457 = vmatpush1.bf16.msra.mxu0 0
    %458 = vmatprep.mubr.bf16.mxu0 0
    %459 = vmatmul.mubr.bf16.gmra.mrb[0].mxu0 %v147
    %v460 = vpop.f32.mrb[0].mxu0
    %v461 = vadd.f32 0.0, %v460
    %v462 = vpop.f32.mrb[0].mxu0
    %v463 = vpop.f32.mrb[0].mxu0
    %v464 = vadd.f32 0.0, %v463
    %v465 = vpop.f32.mrb[0].mxu0
    %466 = vmatprep.mubr.bf16.mxu0 0
    %467 = vmatmul.mubr.bf16.gmra.mrb[0].mxu0 %v150
    %v468 = vpop.f32.mrb[0].mxu0
    %v469 = vadd.f32 0.0, %v468
    %v470 = vpop.f32.mrb[0].mxu0
    %v471 = vpop.f32.mrb[0].mxu0
    %v472 = vadd.f32 0.0, %v471
    %v473 = vpop.f32.mrb[0].mxu0
    %474 = vmatprep.mubr.bf16.mxu0 0
    %475 = vmatmul.mubr.bf16.gmra.mrb[0].mxu0 %v153
    %v476 = vpop.f32.mrb[0].mxu0
    %v477 = vadd.f32 0.0, %v476
    %v478 = vpop.f32.mrb[0].mxu0
    %v479 = vpop.f32.mrb[0].mxu0
    %v480 = vadd.f32 0.0, %v479
    %v481 = vpop.f32.mrb[0].mxu0
    %482 = vmatprep.mubr.bf16.mxu0 0
    %483 = vmatmul.mubr.bf16.gmra.mrb[0].mxu0 %v421
    %v484 = vpop.f32.mrb[0].mxu0
    %v485 = vadd.f32 0.0, %v484
    %v486 = vpop.f32.mrb[0].mxu0
    %v487 = vpop.f32.mrb[0].mxu0
    %v488 = vadd.f32 0.0, %v487
    %v489 = vpop.f32.mrb[0].mxu0
    %490 = vdwg.mxu0
    %v491 = vadd.f32 %v398, %v461
    %v492 = vadd.f32 %v399, %v464
    %v493 = vadd.f32 %v400, %v469
    %v494 = vadd.f32 %v401, %v472
    %v495 = vadd.f32 %v402, %v477
    %v496 = vadd.f32 %v403, %v480
    %v497 = vadd.f32 %v404, %v485
    %v498 = vadd.f32 %v405, %v488
    %v499 = vpack.c.bf16 %v117, %v116
    %s500 = scalar_lea.vmem [#allocation4], 48
    %v501 = vld [vmem:[%s500] sm:$0xf]
    %v502 = vld [vmem:[%s500 + $0x4] sm:$0xf]
    %v503 = vld [vmem:[%s500 + $0x8] sm:$0x3]
    %v507 = vunpack.c.l.b16 %v501
    %v508 = vunpack.c.l.b16 %v502
    %v509 = vunpack.c.l.b16 %v503
    %v510 = vpack.c.b16 %v508, %v507
    %v511 = vpack.c.b16 %v509, %v509
    %v514 = vsel %vm142, %v499, 0
    %v517 = vsel %vm155, %v511, 0
    %519 = vmatprep.subr.bf16.mxu0 0
    %520 = vmatpush1.bf16.msra.mxu0 %v510
    %521 = vmatprep.subr.bf16.mxu0 0
    %522 = vmatpush1.bf16.msra.mxu0 %v517
    %523 = vmatprep.subr.bf16.mxu0 0
    %524 = vmatpush1.bf16.msra.mxu0 0
    %525 = vmatprep.subr.bf16.mxu0 0
    %526 = vmatpush1.bf16.msra.mxu0 0
    %527 = vmatprep.subr.bf16.mxu0 0
    %528 = vmatpush1.bf16.msra.mxu0 0
    %529 = vmatprep.subr.bf16.mxu0 0
    %530 = vmatpush1.bf16.msra.mxu0 0
    %531 = vmatprep.subr.bf16.mxu0 0
    %532 = vmatpush1.bf16.msra.mxu0 0
    %533 = vmatprep.subr.bf16.mxu0 0
    %534 = vmatpush1.bf16.msra.mxu0 0
    %535 = vmatprep.subr.bf16.mxu0 0
    %536 = vmatpush1.bf16.msra.mxu0 0
    %537 = vmatprep.subr.bf16.mxu0 0
    %538 = vmatpush1.bf16.msra.mxu0 0
    %539 = vmatprep.subr.bf16.mxu0 0
    %540 = vmatpush1.bf16.msra.mxu0 0
    %541 = vmatprep.subr.bf16.mxu0 0
    %542 = vmatpush1.bf16.msra.mxu0 0
    %543 = vmatprep.subr.bf16.mxu0 0
    %544 = vmatpush1.bf16.msra.mxu0 0
    %545 = vmatprep.subr.bf16.mxu0 0
    %546 = vmatpush1.bf16.msra.mxu0 0
    %547 = vmatprep.subr.bf16.mxu0 0
    %548 = vmatpush1.bf16.msra.mxu0 0
    %549 = vmatprep.subr.bf16.mxu0 0
    %550 = vmatpush1.bf16.msra.mxu0 0
    %551 = vmatprep.mubr.bf16.mxu0 0
    %552 = vmatmul.mubr.bf16.gmra.mrb[0].mxu0 %v240
    %v553 = vpop.f32.mrb[0].mxu0
    %v554 = vadd.f32 0.0, %v553
    %v555 = vpop.f32.mrb[0].mxu0
    %v556 = vpop.f32.mrb[0].mxu0
    %v557 = vadd.f32 0.0, %v556
    %v558 = vpop.f32.mrb[0].mxu0
    %559 = vmatprep.mubr.bf16.mxu0 0
    %560 = vmatmul.mubr.bf16.gmra.mrb[0].mxu0 %v243
    %v561 = vpop.f32.mrb[0].mxu0
    %v562 = vadd.f32 0.0, %v561
    %v563 = vpop.f32.mrb[0].mxu0
    %v564 = vpop.f32.mrb[0].mxu0
    %v565 = vadd.f32 0.0, %v564
    %v566 = vpop.f32.mrb[0].mxu0
    %567 = vmatprep.mubr.bf16.mxu0 0
    %568 = vmatmul.mubr.bf16.gmra.mrb[0].mxu0 %v328
    %v569 = vpop.f32.mrb[0].mxu0
    %v570 = vadd.f32 0.0, %v569
    %v571 = vpop.f32.mrb[0].mxu0
    %v572 = vpop.f32.mrb[0].mxu0
    %v573 = vadd.f32 0.0, %v572
    %v574 = vpop.f32.mrb[0].mxu0
    %575 = vmatprep.mubr.bf16.mxu0 0
    %576 = vmatmul.mubr.bf16.gmra.mrb[0].mxu0 %v514
    %v577 = vpop.f32.mrb[0].mxu0
    %v578 = vadd.f32 0.0, %v577
    %v579 = vpop.f32.mrb[0].mxu0
    %v580 = vpop.f32.mrb[0].mxu0
    %v581 = vadd.f32 0.0, %v580
    %v582 = vpop.f32.mrb[0].mxu0
    %583 = vdwg.mxu0
    %v584 = vadd.f32 %v491, %v554
    %v585 = vadd.f32 %v492, %v557
    %v586 = vadd.f32 %v493, %v562
    %v587 = vadd.f32 %v494, %v565
    %v588 = vadd.f32 %v495, %v570
    %v589 = vadd.f32 %v496, %v573
    %v590 = vadd.f32 %v497, %v578
    %v591 = vadd.f32 %v498, %v581
    %v592 = vld [vmem:[#allocation7] sm:$0x1]
    %v594 = vlaneseq
    %v595 = vshrl.u32 %v594, 7
    %v596 = vsub.s32 0, %v595
    %v597 = vrot.slane %v592, %v596
    %v599 = vadd.f32 %v584, %v597
    %v600 = vadd.f32 %v585, %v597
    %v601 = vadd.f32 %v586, %v597
    %v602 = vadd.f32 %v587, %v597
    %v603 = vadd.f32 %v588, %v597
    %v604 = vadd.f32 %v589, %v597
    %v605 = vadd.f32 %v590, %v597
    %v606 = vadd.f32 %v591, %v597
    %v607 = vmax.f32 %v599, 0.0
    %v608 = vmax.f32 %v600, 0.0
    %v609 = vmax.f32 %v601, 0.0
    %v610 = vmax.f32 %v602, 0.0
    %v611 = vmax.f32 %v603, 0.0
    %v612 = vmax.f32 %v604, 0.0
    %v613 = vmax.f32 %v605, 0.0
    %v614 = vmax.f32 %v606, 0.0
    %v615 = vpack.c.bf16 %v608, %v607
    %v616 = vpack.c.bf16 %v610, %v609
    %v617 = vpack.c.bf16 %v612, %v611
    %v618 = vpack.c.bf16 %v614, %v613
    %v619 = vld [vmem:[%s3] sm:$0xff]
    %v620 = vld [vmem:[%s3 + $0x8] sm:$0xff]
    %v621 = vld [vmem:[%s3 + $0x10] sm:$0xff]
    %v622 = vld [vmem:[%s3 + $0x18] sm:$0xff]
    %v623 = vld [vmem:[%s3 + $0x20] sm:$0xff]
    %v624 = vld [vmem:[%s3 + $0x28] sm:$0xff]
    %v625 = vld [vmem:[%s3 + $0x30] sm:$0xff]
    %v626 = vld [vmem:[%s3 + $0x38] sm:$0xff]
    %v627 = vld [vmem:[%s3 + $0x40] sm:$0xff]
    %v628 = vld [vmem:[%s3 + $0x48] sm:$0xff]
    %v629 = vld [vmem:[%s3 + $0x50] sm:$0xff]
    %v630 = vld [vmem:[%s3 + $0x58] sm:$0xff]
    %v631 = vld [vmem:[%s3 + $0x60] sm:$0xff]
    %v632 = vld [vmem:[%s3 + $0x68] sm:$0xff]
    %v633 = vld [vmem:[%s3 + $0x70] sm:$0xff]
    %v634 = vld [vmem:[%s3 + $0x78] sm:$0xff]
    %v635 = vld [vmem:[%s4] sm:$0x3]
    %v637 = vlaneseq
    %v638 = vshrl.u32 %v637, 7
    %v639 = vsub.s32 0, %v638
    %v640 = vrot.slane %v635, %v639
    %v641 = vlaneseq
    %v642 = vshrl.u32 %v641, 7
    %v643 = vsub.s32 1, %v642
    %v644 = vrot.slane %v635, %v643
    %v663 = vunpack.c.l.b16 %v619
    %v664 = vunpack.c.h.b16 %v619
    %v665 = vunpack.c.l.b16 %v620
    %v666 = vunpack.c.h.b16 %v620
    %v667 = vunpack.c.l.b16 %v621
    %v668 = vunpack.c.h.b16 %v621
    %v669 = vunpack.c.l.b16 %v622
    %v670 = vunpack.c.h.b16 %v622
    %v671 = vunpack.c.l.b16 %v623
    %v672 = vunpack.c.h.b16 %v623
    %v673 = vunpack.c.l.b16 %v624
    %v674 = vunpack.c.h.b16 %v624
    %v675 = vunpack.c.l.b16 %v625
    %v676 = vunpack.c.h.b16 %v625
    %v677 = vunpack.c.l.b16 %v626
    %v678 = vunpack.c.h.b16 %v626
    %v679 = vunpack.c.l.b16 %v627
    %v680 = vunpack.c.h.b16 %v627
    %v681 = vunpack.c.l.b16 %v628
    %v682 = vunpack.c.h.b16 %v628
    %v683 = vunpack.c.l.b16 %v629
    %v684 = vunpack.c.h.b16 %v629
    %v685 = vunpack.c.l.b16 %v630
    %v686 = vunpack.c.h.b16 %v630
    %v687 = vunpack.c.l.b16 %v631
    %v688 = vunpack.c.h.b16 %v631
    %v689 = vunpack.c.l.b16 %v632
    %v690 = vunpack.c.h.b16 %v632
    %v691 = vunpack.c.l.b16 %v633
    %v692 = vunpack.c.h.b16 %v633
    %v693 = vunpack.c.l.b16 %v634
    %v694 = vunpack.c.h.b16 %v634
    %v695 = vpack.c.b16 %v665, %v663
    %v696 = vpack.c.b16 %v666, %v664
    %v697 = vpack.c.b16 %v669, %v667
    %v698 = vpack.c.b16 %v670, %v668
    %v699 = vpack.c.b16 %v673, %v671
    %v700 = vpack.c.b16 %v674, %v672
    %v701 = vpack.c.b16 %v677, %v675
    %v702 = vpack.c.b16 %v678, %v676
    %v703 = vpack.c.b16 %v681, %v679
    %v704 = vpack.c.b16 %v682, %v680
    %v705 = vpack.c.b16 %v685, %v683
    %v706 = vpack.c.b16 %v686, %v684
    %v707 = vpack.c.b16 %v689, %v687
    %v708 = vpack.c.b16 %v690, %v688
    %v709 = vpack.c.b16 %v693, %v691
    %v710 = vpack.c.b16 %v694, %v692
    %727 = vmatprep.subr.bf16.mxu0 %v696
    %728 = vmatpush1.bf16.msra.mxu0 %v695
    %729 = vmatprep.subr.bf16.mxu0 %v698
    %730 = vmatpush1.bf16.msra.mxu0 %v697
    %731 = vmatprep.subr.bf16.mxu0 %v700
    %732 = vmatpush1.bf16.msra.mxu0 %v699
    %733 = vmatprep.subr.bf16.mxu0 %v702
    %734 = vmatpush1.bf16.msra.mxu0 %v701
    %735 = vmatprep.subr.bf16.mxu0 %v704
    %736 = vmatpush1.bf16.msra.mxu0 %v703
    %737 = vmatprep.subr.bf16.mxu0 %v706
    %738 = vmatpush1.bf16.msra.mxu0 %v705
    %739 = vmatprep.subr.bf16.mxu0 %v708
    %740 = vmatpush1.bf16.msra.mxu0 %v707
    %741 = vmatprep.subr.bf16.mxu0 %v710
    %742 = vmatpush1.bf16.msra.mxu0 %v709
    %743 = vmatprep.subr.bf16.mxu0 0
    %744 = vmatpush1.bf16.msra.mxu0 0
    %745 = vmatprep.subr.bf16.mxu0 0
    %746 = vmatpush1.bf16.msra.mxu0 0
    %747 = vmatprep.subr.bf16.mxu0 0
    %748 = vmatpush1.bf16.msra.mxu0 0
    %749 = vmatprep.subr.bf16.mxu0 0
    %750 = vmatpush1.bf16.msra.mxu0 0
    %751 = vmatprep.subr.bf16.mxu0 0
    %752 = vmatpush1.bf16.msra.mxu0 0
    %753 = vmatprep.subr.bf16.mxu0 0
    %754 = vmatpush1.bf16.msra.mxu0 0
    %755 = vmatprep.subr.bf16.mxu0 0
    %756 = vmatpush1.bf16.msra.mxu0 0
    %757 = vmatprep.subr.bf16.mxu0 0
    %758 = vmatpush1.bf16.msra.mxu0 0
    %759 = vmatprep.mubr.bf16.mxu0 0
    %760 = vmatmul.mubr.bf16.gmra.mrb[0].mxu0 %v615
    %v761 = vpop.f32.mrb[0].mxu0
    %v762 = vadd.f32 %v640, %v761
    %v763 = vpop.f32.mrb[0].mxu0
    %v764 = vadd.f32 %v644, %v763
    %v765 = vpop.f32.mrb[0].mxu0
    %v766 = vadd.f32 %v640, %v765
    %v767 = vpop.f32.mrb[0].mxu0
    %v768 = vadd.f32 %v644, %v767
    %769 = vmatprep.mubr.bf16.mxu0 0
    %770 = vmatmul.mubr.bf16.gmra.mrb[0].mxu0 %v616
    %v771 = vpop.f32.mrb[0].mxu0
    %v772 = vadd.f32 %v640, %v771
    %v773 = vpop.f32.mrb[0].mxu0
    %v774 = vadd.f32 %v644, %v773
    %v775 = vpop.f32.mrb[0].mxu0
    %v776 = vadd.f32 %v640, %v775
    %v777 = vpop.f32.mrb[0].mxu0
    %v778 = vadd.f32 %v644, %v777
    %779 = vmatprep.mubr.bf16.mxu0 0
    %780 = vmatmul.mubr.bf16.gmra.mrb[0].mxu0 %v617
    %v781 = vpop.f32.mrb[0].mxu0
    %v782 = vadd.f32 %v640, %v781
    %v783 = vpop.f32.mrb[0].mxu0
    %v784 = vadd.f32 %v644, %v783
    %v785 = vpop.f32.mrb[0].mxu0
    %v786 = vadd.f32 %v640, %v785
    %v787 = vpop.f32.mrb[0].mxu0
    %v788 = vadd.f32 %v644, %v787
    %789 = vmatprep.mubr.bf16.mxu0 0
    %790 = vmatmul.mubr.bf16.gmra.mrb[0].mxu0 %v618
    %v791 = vpop.f32.mrb[0].mxu0
    %v792 = vadd.f32 %v640, %v791
    %v793 = vpop.f32.mrb[0].mxu0
    %v794 = vadd.f32 %v644, %v793
    %v795 = vpop.f32.mrb[0].mxu0
    %v796 = vadd.f32 %v640, %v795
    %v797 = vpop.f32.mrb[0].mxu0
    %v798 = vadd.f32 %v644, %v797
    %799 = vdwg.mxu0
    %v800 = vmax.f32 %v762, 0.0
    %v801 = vmax.f32 %v766, 0.0
    %v802 = vmax.f32 %v772, 0.0
    %v803 = vmax.f32 %v776, 0.0
    %v804 = vmax.f32 %v782, 0.0
    %v805 = vmax.f32 %v786, 0.0
    %v806 = vmax.f32 %v792, 0.0
    %v807 = vmax.f32 %v796, 0.0
    %v808 = vxor.u32 %v764, 2147483648
    %v809 = vxor.u32 %v768, 2147483648
    %v810 = vxor.u32 %v774, 2147483648
    %v811 = vxor.u32 %v778, 2147483648
    %v812 = vxor.u32 %v784, 2147483648
    %v813 = vxor.u32 %v788, 2147483648
    %v814 = vxor.u32 %v794, 2147483648
    %v815 = vxor.u32 %v798, 2147483648
    %v816 = vmul.f32 %v808, 1.442695
    %v817 = vpow.pop %v816
    %v818 = vmul.f32 %v809, 1.442695
    %v819 = vpow.pop %v818
    %v820 = vmul.f32 %v810, 1.442695
    %v821 = vpow.pop %v820
    %v822 = vmul.f32 %v811, 1.442695
    %v823 = vpow.pop %v822
    %v824 = vmul.f32 %v812, 1.442695
    %v825 = vpow.pop %v824
    %v826 = vmul.f32 %v813, 1.442695
    %v827 = vpow.pop %v826
    %v828 = vmul.f32 %v814, 1.442695
    %v829 = vpow.pop %v828
    %v830 = vmul.f32 %v815, 1.442695
    %v831 = vpow.pop %v830
    %v832 = vadd.f32 %v817, 1.0
    %v833 = vadd.f32 %v819, 1.0
    %v834 = vadd.f32 %v821, 1.0
    %v835 = vadd.f32 %v823, 1.0
    %v836 = vadd.f32 %v825, 1.0
    %v837 = vadd.f32 %v827, 1.0
    %v838 = vadd.f32 %v829, 1.0
    %v839 = vadd.f32 %v831, 1.0
    %v840 = vrcp.pop %v832
    %v841 = vmul.f32 1.0, %v840
    %v842 = vrcp.pop %v833
    %v843 = vmul.f32 1.0, %v842
    %v844 = vrcp.pop %v834
    %v845 = vmul.f32 1.0, %v844
    %v846 = vrcp.pop %v835
    %v847 = vmul.f32 1.0, %v846
    %v848 = vrcp.pop %v836
    %v849 = vmul.f32 1.0, %v848
    %v850 = vrcp.pop %v837
    %v851 = vmul.f32 1.0, %v850
    %v852 = vrcp.pop %v838
    %v853 = vmul.f32 1.0, %v852
    %v854 = vrcp.pop %v839
    %v855 = vmul.f32 1.0, %v854
    %v856 = vmul.f32 %v841, %v607
    %v857 = vmul.f32 %v843, %v608
    %v858 = vmul.f32 %v845, %v609
    %v859 = vmul.f32 %v847, %v610
    %v860 = vmul.f32 %v849, %v611
    %v861 = vmul.f32 %v851, %v612
    %v862 = vmul.f32 %v853, %v613
    %v863 = vmul.f32 %v855, %v614
    %v864 = vsub.f32 1.0, %v841
    %v865 = vsub.f32 1.0, %v843
    %v866 = vsub.f32 1.0, %v845
    %v867 = vsub.f32 1.0, %v847
    %v868 = vsub.f32 1.0, %v849
    %v869 = vsub.f32 1.0, %v851
    %v870 = vsub.f32 1.0, %v853
    %v871 = vsub.f32 1.0, %v855
    %v872 = vmul.f32 %v864, %v800
    %v873 = vmul.f32 %v865, %v801
    %v874 = vmul.f32 %v866, %v802
    %v875 = vmul.f32 %v867, %v803
    %v876 = vmul.f32 %v868, %v804
    %v877 = vmul.f32 %v869, %v805
    %v878 = vmul.f32 %v870, %v806
    %v879 = vmul.f32 %v871, %v807
    %v880 = vadd.f32 %v856, %v872
    %v881 = vadd.f32 %v857, %v873
    %v882 = vadd.f32 %v858, %v874
    %v883 = vadd.f32 %v859, %v875
    %v884 = vadd.f32 %v860, %v876
    %v885 = vadd.f32 %v861, %v877
    %v886 = vadd.f32 %v862, %v878
    %v887 = vadd.f32 %v863, %v879
    %v888 = vpack.c.bf16 %v881, %v880
    %v889 = vpack.c.bf16 %v883, %v882
    %v890 = vpack.c.bf16 %v885, %v884
    %v891 = vpack.c.bf16 %v887, %v886
    %v892 = vld [vmem:[#allocation9] sm:$0xff]
    %v893 = vld [vmem:[#allocation9 + $0x8] sm:$0xff]
    %v894 = vld [vmem:[#allocation9 + $0x10] sm:$0xff]
    %v895 = vld [vmem:[#allocation9 + $0x18] sm:$0xff]
    %v896 = vld [vmem:[#allocation9 + $0x20] sm:$0xff]
    %v897 = vld [vmem:[#allocation9 + $0x28] sm:$0xff]
    %v898 = vld [vmem:[#allocation9 + $0x30] sm:$0xff]
    %v899 = vld [vmem:[#allocation9 + $0x38] sm:$0xff]
    %v900 = vld [vmem:[#allocation9 + $0x40] sm:$0xff]
    %v901 = vld [vmem:[#allocation9 + $0x48] sm:$0xff]
    %v902 = vld [vmem:[#allocation9 + $0x50] sm:$0xff]
    %v903 = vld [vmem:[#allocation9 + $0x58] sm:$0xff]
    %v904 = vld [vmem:[#allocation9 + $0x60] sm:$0xff]
    %v905 = vld [vmem:[#allocation9 + $0x68] sm:$0xff]
    %v906 = vld [vmem:[#allocation9 + $0x70] sm:$0xff]
    %v907 = vld [vmem:[#allocation9 + $0x78] sm:$0xff]
    %v908 = vld [vmem:[%s6] sm:$0x3]
    %v910 = vlaneseq
    %v911 = vshrl.u32 %v910, 7
    %v912 = vsub.s32 0, %v911
    %v913 = vrot.slane %v908, %v912
    %v914 = vlaneseq
    %v915 = vshrl.u32 %v914, 7
    %v916 = vsub.s32 1, %v915
    %v917 = vrot.slane %v908, %v916
    %v936 = vunpack.c.l.b16 %v892
    %v937 = vunpack.c.h.b16 %v892
    %v938 = vunpack.c.l.b16 %v893
    %v939 = vunpack.c.h.b16 %v893
    %v940 = vunpack.c.l.b16 %v894
    %v941 = vunpack.c.h.b16 %v894
    %v942 = vunpack.c.l.b16 %v895
    %v943 = vunpack.c.h.b16 %v895
    %v944 = vunpack.c.l.b16 %v896
    %v945 = vunpack.c.h.b16 %v896
    %v946 = vunpack.c.l.b16 %v897
    %v947 = vunpack.c.h.b16 %v897
    %v948 = vunpack.c.l.b16 %v898
    %v949 = vunpack.c.h.b16 %v898
    %v950 = vunpack.c.l.b16 %v899
    %v951 = vunpack.c.h.b16 %v899
    %v952 = vunpack.c.l.b16 %v900
    %v953 = vunpack.c.h.b16 %v900
    %v954 = vunpack.c.l.b16 %v901
    %v955 = vunpack.c.h.b16 %v901
    %v956 = vunpack.c.l.b16 %v902
    %v957 = vunpack.c.h.b16 %v902
    %v958 = vunpack.c.l.b16 %v903
    %v959 = vunpack.c.h.b16 %v903
    %v960 = vunpack.c.l.b16 %v904
    %v961 = vunpack.c.h.b16 %v904
    %v962 = vunpack.c.l.b16 %v905
    %v963 = vunpack.c.h.b16 %v905
    %v964 = vunpack.c.l.b16 %v906
    %v965 = vunpack.c.h.b16 %v906
    %v966 = vunpack.c.l.b16 %v907
    %v967 = vunpack.c.h.b16 %v907
    %v968 = vpack.c.b16 %v938, %v936
    %v969 = vpack.c.b16 %v939, %v937
    %v970 = vpack.c.b16 %v942, %v940
    %v971 = vpack.c.b16 %v943, %v941
    %v972 = vpack.c.b16 %v946, %v944
    %v973 = vpack.c.b16 %v947, %v945
    %v974 = vpack.c.b16 %v950, %v948
    %v975 = vpack.c.b16 %v951, %v949
    %v976 = vpack.c.b16 %v954, %v952
    %v977 = vpack.c.b16 %v955, %v953
    %v978 = vpack.c.b16 %v958, %v956
    %v979 = vpack.c.b16 %v959, %v957
    %v980 = vpack.c.b16 %v962, %v960
    %v981 = vpack.c.b16 %v963, %v961
    %v982 = vpack.c.b16 %v966, %v964
    %v983 = vpack.c.b16 %v967, %v965
    %1000 = vmatprep.subr.bf16.mxu0 %v969
    %1001 = vmatpush1.bf16.msra.mxu0 %v968
    %1002 = vmatprep.subr.bf16.mxu0 %v971
    %1003 = vmatpush1.bf16.msra.mxu0 %v970
    %1004 = vmatprep.subr.bf16.mxu0 %v973
    %1005 = vmatpush1.bf16.msra.mxu0 %v972
    %1006 = vmatprep.subr.bf16.mxu0 %v975
    %1007 = vmatpush1.bf16.msra.mxu0 %v974
    %1008 = vmatprep.subr.bf16.mxu0 %v977
    %1009 = vmatpush1.bf16.msra.mxu0 %v976
    %1010 = vmatprep.subr.bf16.mxu0 %v979
    %1011 = vmatpush1.bf16.msra.mxu0 %v978
    %1012 = vmatprep.subr.bf16.mxu0 %v981
    %1013 = vmatpush1.bf16.msra.mxu0 %v980
    %1014 = vmatprep.subr.bf16.mxu0 %v983
    %1015 = vmatpush1.bf16.msra.mxu0 %v982
    %1016 = vmatprep.subr.bf16.mxu0 0
    %1017 = vmatpush1.bf16.msra.mxu0 0
    %1018 = vmatprep.subr.bf16.mxu0 0
    %1019 = vmatpush1.bf16.msra.mxu0 0
    %1020 = vmatprep.subr.bf16.mxu0 0
    %1021 = vmatpush1.bf16.msra.mxu0 0
    %1022 = vmatprep.subr.bf16.mxu0 0
    %1023 = vmatpush1.bf16.msra.mxu0 0
    %1024 = vmatprep.subr.bf16.mxu0 0
    %1025 = vmatpush1.bf16.msra.mxu0 0
    %1026 = vmatprep.subr.bf16.mxu0 0
    %1027 = vmatpush1.bf16.msra.mxu0 0
    %1028 = vmatprep.subr.bf16.mxu0 0
    %1029 = vmatpush1.bf16.msra.mxu0 0
    %1030 = vmatprep.subr.bf16.mxu0 0
    %1031 = vmatpush1.bf16.msra.mxu0 0
    %1032 = vmatprep.mubr.bf16.mxu0 0
    %1033 = vmatmul.mubr.bf16.gmra.mrb[0].mxu0 %v888
    %v1034 = vpop.f32.mrb[0].mxu0
    %v1035 = vadd.f32 %v913, %v1034
    %v1036 = vpop.f32.mrb[0].mxu0
    %v1037 = vadd.f32 %v917, %v1036
    %v1038 = vpop.f32.mrb[0].mxu0
    %v1039 = vadd.f32 %v913, %v1038
    %v1040 = vpop.f32.mrb[0].mxu0
    %v1041 = vadd.f32 %v917, %v1040
    %1042 = vmatprep.mubr.bf16.mxu0 0
    %1043 = vmatmul.mubr.bf16.gmra.mrb[0].mxu0 %v889
    %v1044 = vpop.f32.mrb[0].mxu0
    %v1045 = vadd.f32 %v913, %v1044
    %v1046 = vpop.f32.mrb[0].mxu0
    %v1047 = vadd.f32 %v917, %v1046
    %v1048 = vpop.f32.mrb[0].mxu0
    %v1049 = vadd.f32 %v913, %v1048
    %v1050 = vpop.f32.mrb[0].mxu0
    %v1051 = vadd.f32 %v917, %v1050
    %1052 = vmatprep.mubr.bf16.mxu0 0
    %1053 = vmatmul.mubr.bf16.gmra.mrb[0].mxu0 %v890
    %v1054 = vpop.f32.mrb[0].mxu0
    %v1055 = vadd.f32 %v913, %v1054
    %v1056 = vpop.f32.mrb[0].mxu0
    %v1057 = vadd.f32 %v917, %v1056
    %v1058 = vpop.f32.mrb[0].mxu0
    %v1059 = vadd.f32 %v913, %v1058
    %v1060 = vpop.f32.mrb[0].mxu0
    %v1061 = vadd.f32 %v917, %v1060
    %1062 = vmatprep.mubr.bf16.mxu0 0
    %1063 = vmatmul.mubr.bf16.gmra.mrb[0].mxu0 %v891
    %v1064 = vpop.f32.mrb[0].mxu0
    %v1065 = vadd.f32 %v913, %v1064
    %v1066 = vpop.f32.mrb[0].mxu0
    %v1067 = vadd.f32 %v917, %v1066
    %v1068 = vpop.f32.mrb[0].mxu0
    %v1069 = vadd.f32 %v913, %v1068
    %v1070 = vpop.f32.mrb[0].mxu0
    %v1071 = vadd.f32 %v917, %v1070
    %1072 = vdwg.mxu0
    %v1073 = vmax.f32 %v1035, 0.0
    %v1074 = vmax.f32 %v1039, 0.0
    %v1075 = vmax.f32 %v1045, 0.0
    %v1076 = vmax.f32 %v1049, 0.0
    %v1077 = vmax.f32 %v1055, 0.0
    %v1078 = vmax.f32 %v1059, 0.0
    %v1079 = vmax.f32 %v1065, 0.0
    %v1080 = vmax.f32 %v1069, 0.0
    %v1081 = vxor.u32 %v1037, 2147483648
    %v1082 = vxor.u32 %v1041, 2147483648
    %v1083 = vxor.u32 %v1047, 2147483648
    %v1084 = vxor.u32 %v1051, 2147483648
    %v1085 = vxor.u32 %v1057, 2147483648
    %v1086 = vxor.u32 %v1061, 2147483648
    %v1087 = vxor.u32 %v1067, 2147483648
    %v1088 = vxor.u32 %v1071, 2147483648
    %v1089 = vmul.f32 %v1081, 1.442695
    %v1090 = vpow.pop %v1089
    %v1091 = vmul.f32 %v1082, 1.442695
    %v1092 = vpow.pop %v1091
    %v1093 = vmul.f32 %v1083, 1.442695
    %v1094 = vpow.pop %v1093
    %v1095 = vmul.f32 %v1084, 1.442695
    %v1096 = vpow.pop %v1095
    %v1097 = vmul.f32 %v1085, 1.442695
    %v1098 = vpow.pop %v1097
    %v1099 = vmul.f32 %v1086, 1.442695
    %v1100 = vpow.pop %v1099
    %v1101 = vmul.f32 %v1087, 1.442695
    %v1102 = vpow.pop %v1101
    %v1103 = vmul.f32 %v1088, 1.442695
    %v1104 = vpow.pop %v1103
    %v1105 = vadd.f32 %v1090, 1.0
    %v1106 = vadd.f32 %v1092, 1.0
    %v1107 = vadd.f32 %v1094, 1.0
    %v1108 = vadd.f32 %v1096, 1.0
    %v1109 = vadd.f32 %v1098, 1.0
    %v1110 = vadd.f32 %v1100, 1.0
    %v1111 = vadd.f32 %v1102, 1.0
    %v1112 = vadd.f32 %v1104, 1.0
    %v1113 = vrcp.pop %v1105
    %v1114 = vmul.f32 1.0, %v1113
    %v1115 = vrcp.pop %v1106
    %v1116 = vmul.f32 1.0, %v1115
    %v1117 = vrcp.pop %v1107
    %v1118 = vmul.f32 1.0, %v1117
    %v1119 = vrcp.pop %v1108
    %v1120 = vmul.f32 1.0, %v1119
    %v1121 = vrcp.pop %v1109
    %v1122 = vmul.f32 1.0, %v1121
    %v1123 = vrcp.pop %v1110
    %v1124 = vmul.f32 1.0, %v1123
    %v1125 = vrcp.pop %v1111
    %v1126 = vmul.f32 1.0, %v1125
    %v1127 = vrcp.pop %v1112
    %v1128 = vmul.f32 1.0, %v1127
    %v1129 = vmul.f32 %v1114, %v880
    %v1130 = vmul.f32 %v1116, %v881
    %v1131 = vmul.f32 %v1118, %v882
    %v1132 = vmul.f32 %v1120, %v883
    %v1133 = vmul.f32 %v1122, %v884
    %v1134 = vmul.f32 %v1124, %v885
    %v1135 = vmul.f32 %v1126, %v886
    %v1136 = vmul.f32 %v1128, %v887
    %v1137 = vsub.f32 1.0, %v1114
    %v1138 = vsub.f32 1.0, %v1116
    %v1139 = vsub.f32 1.0, %v1118
    %v1140 = vsub.f32 1.0, %v1120
    %v1141 = vsub.f32 1.0, %v1122
    %v1142 = vsub.f32 1.0, %v1124
    %v1143 = vsub.f32 1.0, %v1126
    %v1144 = vsub.f32 1.0, %v1128
    %v1145 = vmul.f32 %v1137, %v1073
    %v1146 = vmul.f32 %v1138, %v1074
    %v1147 = vmul.f32 %v1139, %v1075
    %v1148 = vmul.f32 %v1140, %v1076
    %v1149 = vmul.f32 %v1141, %v1077
    %v1150 = vmul.f32 %v1142, %v1078
    %v1151 = vmul.f32 %v1143, %v1079
    %v1152 = vmul.f32 %v1144, %v1080
    %v1153 = vadd.f32 %v1129, %v1145
    %v1154 = vadd.f32 %v1130, %v1146
    %v1155 = vadd.f32 %v1131, %v1147
    %v1156 = vadd.f32 %v1132, %v1148
    %v1157 = vadd.f32 %v1133, %v1149
    %v1158 = vadd.f32 %v1134, %v1150
    %v1159 = vadd.f32 %v1135, %v1151
    %v1160 = vadd.f32 %v1136, %v1152
    %v1161 = vpack.c.bf16 %v1154, %v1153
    %v1162 = vpack.c.bf16 %v1156, %v1155
    %v1163 = vpack.c.bf16 %v1158, %v1157
    %v1164 = vpack.c.bf16 %v1160, %v1159
    %v1165 = vld [vmem:[#allocation10] sm:$0xff]
    %v1166 = vld [vmem:[#allocation10 + $0x8] sm:$0xff]
    %v1167 = vld [vmem:[#allocation10 + $0x10] sm:$0xff]
    %v1168 = vld [vmem:[#allocation10 + $0x18] sm:$0xff]
    %v1169 = vld [vmem:[#allocation10 + $0x20] sm:$0xff]
    %v1170 = vld [vmem:[#allocation10 + $0x28] sm:$0xff]
    %v1171 = vld [vmem:[#allocation10 + $0x30] sm:$0xff]
    %v1172 = vld [vmem:[#allocation10 + $0x38] sm:$0xff]
    %v1173 = vld [vmem:[#allocation10 + $0x40] sm:$0xff]
    %v1174 = vld [vmem:[#allocation10 + $0x48] sm:$0xff]
    %v1175 = vld [vmem:[#allocation10 + $0x50] sm:$0xff]
    %v1176 = vld [vmem:[#allocation10 + $0x58] sm:$0xff]
    %v1177 = vld [vmem:[#allocation10 + $0x60] sm:$0xff]
    %v1178 = vld [vmem:[#allocation10 + $0x68] sm:$0xff]
    %v1179 = vld [vmem:[#allocation10 + $0x70] sm:$0xff]
    %v1180 = vld [vmem:[#allocation10 + $0x78] sm:$0xff]
    %v1181 = vld [vmem:[#allocation10 + $0x80] sm:$0xff]
    %v1182 = vld [vmem:[#allocation10 + $0x88] sm:$0xff]
    %v1183 = vld [vmem:[#allocation10 + $0x90] sm:$0xff]
    %v1184 = vld [vmem:[#allocation10 + $0x98] sm:$0xff]
    %v1185 = vld [vmem:[#allocation10 + $0xa0] sm:$0xff]
    %v1186 = vld [vmem:[#allocation10 + $0xa8] sm:$0xff]
    %v1187 = vld [vmem:[#allocation10 + $0xb0] sm:$0xff]
    %v1188 = vld [vmem:[#allocation10 + $0xb8] sm:$0xff]
    %v1189 = vld [vmem:[#allocation10 + $0xc0] sm:$0xff]
    %v1190 = vld [vmem:[#allocation10 + $0xc8] sm:$0xff]
    %v1191 = vld [vmem:[#allocation10 + $0xd0] sm:$0xff]
    %v1192 = vld [vmem:[#allocation10 + $0xd8] sm:$0xff]
    %v1193 = vld [vmem:[#allocation10 + $0xe0] sm:$0xff]
    %v1194 = vld [vmem:[#allocation10 + $0xe8] sm:$0xff]
    %v1195 = vld [vmem:[#allocation10 + $0xf0] sm:$0xff]
    %v1196 = vld [vmem:[#allocation10 + $0xf8] sm:$0xff]
    %v1197 = vld [vmem:[#allocation10 + $0x100] sm:$0xff]
    %v1198 = vld [vmem:[#allocation10 + $0x108] sm:$0xff]
    %v1199 = vld [vmem:[#allocation10 + $0x110] sm:$0xff]
    %v1200 = vld [vmem:[#allocation10 + $0x118] sm:$0xff]
    %v1201 = vld [vmem:[#allocation10 + $0x120] sm:$0xff]
    %v1202 = vld [vmem:[#allocation10 + $0x128] sm:$0xff]
    %v1203 = vld [vmem:[#allocation10 + $0x130] sm:$0xff]
    %v1204 = vld [vmem:[#allocation10 + $0x138] sm:$0xff]
    %v1205 = vld [vmem:[#allocation10 + $0x140] sm:$0xff]
    %v1206 = vld [vmem:[#allocation10 + $0x148] sm:$0xff]
    %v1207 = vld [vmem:[#allocation10 + $0x150] sm:$0xff]
    %v1208 = vld [vmem:[#allocation10 + $0x158] sm:$0xff]
    %v1209 = vld [vmem:[#allocation10 + $0x160] sm:$0xff]
    %v1210 = vld [vmem:[#allocation10 + $0x168] sm:$0xff]
    %v1211 = vld [vmem:[#allocation10 + $0x170] sm:$0xff]
    %v1212 = vld [vmem:[#allocation10 + $0x178] sm:$0xff]
    %v1213 = vld [vmem:[#allocation10 + $0x180] sm:$0xff]
    %v1214 = vld [vmem:[#allocation10 + $0x188] sm:$0xff]
    %v1215 = vld [vmem:[#allocation10 + $0x190] sm:$0xff]
    %v1216 = vld [vmem:[#allocation10 + $0x198] sm:$0xff]
    %v1217 = vld [vmem:[#allocation10 + $0x1a0] sm:$0xff]
    %v1218 = vld [vmem:[#allocation10 + $0x1a8] sm:$0xff]
    %v1219 = vld [vmem:[#allocation10 + $0x1b0] sm:$0xff]
    %v1220 = vld [vmem:[#allocation10 + $0x1b8] sm:$0xff]
    %v1221 = vld [vmem:[#allocation10 + $0x1c0] sm:$0xff]
    %v1222 = vld [vmem:[#allocation10 + $0x1c8] sm:$0xff]
    %v1223 = vld [vmem:[#allocation10 + $0x1d0] sm:$0xff]
    %v1224 = vld [vmem:[#allocation10 + $0x1d8] sm:$0xff]
    %v1225 = vld [vmem:[#allocation10 + $0x1e0] sm:$0xff]
    %v1226 = vld [vmem:[#allocation10 + $0x1e8] sm:$0xff]
    %v1227 = vld [vmem:[#allocation10 + $0x1f0] sm:$0xff]
    %v1228 = vld [vmem:[#allocation10 + $0x1f8] sm:$0xff]
    %v1229 = vld [vmem:[%s9] sm:$0xff]
    %v1231 = vlaneseq
    %v1232 = vshrl.u32 %v1231, 7
    %v1233 = vsub.s32 0, %v1232
    %v1234 = vrot.slane %v1229, %v1233
    %v1235 = vlaneseq
    %v1236 = vshrl.u32 %v1235, 7
    %v1237 = vsub.s32 1, %v1236
    %v1238 = vrot.slane %v1229, %v1237
    %v1239 = vlaneseq
    %v1240 = vshrl.u32 %v1239, 7
    %v1241 = vsub.s32 2, %v1240
    %v1242 = vrot.slane %v1229, %v1241
    %v1243 = vlaneseq
    %v1244 = vshrl.u32 %v1243, 7
    %v1245 = vsub.s32 3, %v1244
    %v1246 = vrot.slane %v1229, %v1245
    %v1247 = vlaneseq
    %v1248 = vshrl.u32 %v1247, 7
    %v1249 = vsub.s32 4, %v1248
    %v1250 = vrot.slane %v1229, %v1249
    %v1251 = vlaneseq
    %v1252 = vshrl.u32 %v1251, 7
    %v1253 = vsub.s32 5, %v1252
    %v1254 = vrot.slane %v1229, %v1253
    %v1255 = vlaneseq
    %v1256 = vshrl.u32 %v1255, 7
    %v1257 = vsub.s32 6, %v1256
    %v1258 = vrot.slane %v1229, %v1257
    %v1259 = vlaneseq
    %v1260 = vshrl.u32 %v1259, 7
    %v1261 = vsub.s32 7, %v1260
    %v1262 = vrot.slane %v1229, %v1261
    %v1335 = vunpack.c.l.b16 %v1165
    %v1336 = vunpack.c.h.b16 %v1165
    %v1337 = vunpack.c.l.b16 %v1166
    %v1338 = vunpack.c.h.b16 %v1166
    %v1339 = vunpack.c.l.b16 %v1167
    %v1340 = vunpack.c.h.b16 %v1167
    %v1341 = vunpack.c.l.b16 %v1168
    %v1342 = vunpack.c.h.b16 %v1168
    %v1343 = vunpack.c.l.b16 %v1169
    %v1344 = vunpack.c.h.b16 %v1169
    %v1345 = vunpack.c.l.b16 %v1170
    %v1346 = vunpack.c.h.b16 %v1170
    %v1347 = vunpack.c.l.b16 %v1171
    %v1348 = vunpack.c.h.b16 %v1171
    %v1349 = vunpack.c.l.b16 %v1172
    %v1350 = vunpack.c.h.b16 %v1172
    %v1351 = vunpack.c.l.b16 %v1173
    %v1352 = vunpack.c.h.b16 %v1173
    %v1353 = vunpack.c.l.b16 %v1174
    %v1354 = vunpack.c.h.b16 %v1174
    %v1355 = vunpack.c.l.b16 %v1175
    %v1356 = vunpack.c.h.b16 %v1175
    %v1357 = vunpack.c.l.b16 %v1176
    %v1358 = vunpack.c.h.b16 %v1176
    %v1359 = vunpack.c.l.b16 %v1177
    %v1360 = vunpack.c.h.b16 %v1177
    %v1361 = vunpack.c.l.b16 %v1178
    %v1362 = vunpack.c.h.b16 %v1178
    %v1363 = vunpack.c.l.b16 %v1179
    %v1364 = vunpack.c.h.b16 %v1179
    %v1365 = vunpack.c.l.b16 %v1180
    %v1366 = vunpack.c.h.b16 %v1180
    %v1367 = vunpack.c.l.b16 %v1181
    %v1368 = vunpack.c.h.b16 %v1181
    %v1369 = vunpack.c.l.b16 %v1182
    %v1370 = vunpack.c.h.b16 %v1182
    %v1371 = vunpack.c.l.b16 %v1183
    %v1372 = vunpack.c.h.b16 %v1183
    %v1373 = vunpack.c.l.b16 %v1184
    %v1374 = vunpack.c.h.b16 %v1184
    %v1375 = vunpack.c.l.b16 %v1185
    %v1376 = vunpack.c.h.b16 %v1185
    %v1377 = vunpack.c.l.b16 %v1186
    %v1378 = vunpack.c.h.b16 %v1186
    %v1379 = vunpack.c.l.b16 %v1187
    %v1380 = vunpack.c.h.b16 %v1187
    %v1381 = vunpack.c.l.b16 %v1188
    %v1382 = vunpack.c.h.b16 %v1188
    %v1383 = vunpack.c.l.b16 %v1189
    %v1384 = vunpack.c.h.b16 %v1189
    %v1385 = vunpack.c.l.b16 %v1190
    %v1386 = vunpack.c.h.b16 %v1190
    %v1387 = vunpack.c.l.b16 %v1191
    %v1388 = vunpack.c.h.b16 %v1191
    %v1389 = vunpack.c.l.b16 %v1192
    %v1390 = vunpack.c.h.b16 %v1192
    %v1391 = vunpack.c.l.b16 %v1193
    %v1392 = vunpack.c.h.b16 %v1193
    %v1393 = vunpack.c.l.b16 %v1194
    %v1394 = vunpack.c.h.b16 %v1194
    %v1395 = vunpack.c.l.b16 %v1195
    %v1396 = vunpack.c.h.b16 %v1195
    %v1397 = vunpack.c.l.b16 %v1196
    %v1398 = vunpack.c.h.b16 %v1196
    %v1399 = vunpack.c.l.b16 %v1197
    %v1400 = vunpack.c.h.b16 %v1197
    %v1401 = vunpack.c.l.b16 %v1198
    %v1402 = vunpack.c.h.b16 %v1198
    %v1403 = vunpack.c.l.b16 %v1199
    %v1404 = vunpack.c.h.b16 %v1199
    %v1405 = vunpack.c.l.b16 %v1200
    %v1406 = vunpack.c.h.b16 %v1200
    %v1407 = vunpack.c.l.b16 %v1201
    %v1408 = vunpack.c.h.b16 %v1201
    %v1409 = vunpack.c.l.b16 %v1202
    %v1410 = vunpack.c.h.b16 %v1202
    %v1411 = vunpack.c.l.b16 %v1203
    %v1412 = vunpack.c.h.b16 %v1203
    %v1413 = vunpack.c.l.b16 %v1204
    %v1414 = vunpack.c.h.b16 %v1204
    %v1415 = vunpack.c.l.b16 %v1205
    %v1416 = vunpack.c.h.b16 %v1205
    %v1417 = vunpack.c.l.b16 %v1206
    %v1418 = vunpack.c.h.b16 %v1206
    %v1419 = vunpack.c.l.b16 %v1207
    %v1420 = vunpack.c.h.b16 %v1207
    %v1421 = vunpack.c.l.b16 %v1208
    %v1422 = vunpack.c.h.b16 %v1208
    %v1423 = vunpack.c.l.b16 %v1209
    %v1424 = vunpack.c.h.b16 %v1209
    %v1425 = vunpack.c.l.b16 %v1210
    %v1426 = vunpack.c.h.b16 %v1210
    %v1427 = vunpack.c.l.b16 %v1211
    %v1428 = vunpack.c.h.b16 %v1211
    %v1429 = vunpack.c.l.b16 %v1212
    %v1430 = vunpack.c.h.b16 %v1212
    %v1431 = vunpack.c.l.b16 %v1213
    %v1432 = vunpack.c.h.b16 %v1213
    %v1433 = vunpack.c.l.b16 %v1214
    %v1434 = vunpack.c.h.b16 %v1214
    %v1435 = vunpack.c.l.b16 %v1215
    %v1436 = vunpack.c.h.b16 %v1215
    %v1437 = vunpack.c.l.b16 %v1216
    %v1438 = vunpack.c.h.b16 %v1216
    %v1439 = vunpack.c.l.b16 %v1217
    %v1440 = vunpack.c.h.b16 %v1217
    %v1441 = vunpack.c.l.b16 %v1218
    %v1442 = vunpack.c.h.b16 %v1218
    %v1443 = vunpack.c.l.b16 %v1219
    %v1444 = vunpack.c.h.b16 %v1219
    %v1445 = vunpack.c.l.b16 %v1220
    %v1446 = vunpack.c.h.b16 %v1220
    %v1447 = vunpack.c.l.b16 %v1221
    %v1448 = vunpack.c.h.b16 %v1221
    %v1449 = vunpack.c.l.b16 %v1222
    %v1450 = vunpack.c.h.b16 %v1222
    %v1451 = vunpack.c.l.b16 %v1223
    %v1452 = vunpack.c.h.b16 %v1223
    %v1453 = vunpack.c.l.b16 %v1224
    %v1454 = vunpack.c.h.b16 %v1224
    %v1455 = vunpack.c.l.b16 %v1225
    %v1456 = vunpack.c.h.b16 %v1225
    %v1457 = vunpack.c.l.b16 %v1226
    %v1458 = vunpack.c.h.b16 %v1226
    %v1459 = vunpack.c.l.b16 %v1227
    %v1460 = vunpack.c.h.b16 %v1227
    %v1461 = vunpack.c.l.b16 %v1228
    %v1462 = vunpack.c.h.b16 %v1228
    %v1463 = vpack.c.b16 %v1343, %v1335
    %v1464 = vpack.c.b16 %v1344, %v1336
    %v1465 = vpack.c.b16 %v1345, %v1337
    %v1466 = vpack.c.b16 %v1346, %v1338
    %v1467 = vpack.c.b16 %v1347, %v1339
    %v1468 = vpack.c.b16 %v1348, %v1340
    %v1469 = vpack.c.b16 %v1349, %v1341
    %v1470 = vpack.c.b16 %v1350, %v1342
    %v1471 = vpack.c.b16 %v1359, %v1351
    %v1472 = vpack.c.b16 %v1360, %v1352
    %v1473 = vpack.c.b16 %v1361, %v1353
    %v1474 = vpack.c.b16 %v1362, %v1354
    %v1475 = vpack.c.b16 %v1363, %v1355
    %v1476 = vpack.c.b16 %v1364, %v1356
    %v1477 = vpack.c.b16 %v1365, %v1357
    %v1478 = vpack.c.b16 %v1366, %v1358
    %v1479 = vpack.c.b16 %v1375, %v1367
    %v1480 = vpack.c.b16 %v1376, %v1368
    %v1481 = vpack.c.b16 %v1377, %v1369
    %v1482 = vpack.c.b16 %v1378, %v1370
    %v1483 = vpack.c.b16 %v1379, %v1371
    %v1484 = vpack.c.b16 %v1380, %v1372
    %v1485 = vpack.c.b16 %v1381, %v1373
    %v1486 = vpack.c.b16 %v1382, %v1374
    %v1487 = vpack.c.b16 %v1391, %v1383
    %v1488 = vpack.c.b16 %v1392, %v1384
    %v1489 = vpack.c.b16 %v1393, %v1385
    %v1490 = vpack.c.b16 %v1394, %v1386
    %v1491 = vpack.c.b16 %v1395, %v1387
    %v1492 = vpack.c.b16 %v1396, %v1388
    %v1493 = vpack.c.b16 %v1397, %v1389
    %v1494 = vpack.c.b16 %v1398, %v1390
    %v1495 = vpack.c.b16 %v1407, %v1399
    %v1496 = vpack.c.b16 %v1408, %v1400
    %v1497 = vpack.c.b16 %v1409, %v1401
    %v1498 = vpack.c.b16 %v1410, %v1402
    %v1499 = vpack.c.b16 %v1411, %v1403
    %v1500 = vpack.c.b16 %v1412, %v1404
    %v1501 = vpack.c.b16 %v1413, %v1405
    %v1502 = vpack.c.b16 %v1414, %v1406
    %v1503 = vpack.c.b16 %v1423, %v1415
    %v1504 = vpack.c.b16 %v1424, %v1416
    %v1505 = vpack.c.b16 %v1425, %v1417
    %v1506 = vpack.c.b16 %v1426, %v1418
    %v1507 = vpack.c.b16 %v1427, %v1419
    %v1508 = vpack.c.b16 %v1428, %v1420
    %v1509 = vpack.c.b16 %v1429, %v1421
    %v1510 = vpack.c.b16 %v1430, %v1422
    %v1511 = vpack.c.b16 %v1439, %v1431
    %v1512 = vpack.c.b16 %v1440, %v1432
    %v1513 = vpack.c.b16 %v1441, %v1433
    %v1514 = vpack.c.b16 %v1442, %v1434
    %v1515 = vpack.c.b16 %v1443, %v1435
    %v1516 = vpack.c.b16 %v1444, %v1436
    %v1517 = vpack.c.b16 %v1445, %v1437
    %v1518 = vpack.c.b16 %v1446, %v1438
    %v1519 = vpack.c.b16 %v1455, %v1447
    %v1520 = vpack.c.b16 %v1456, %v1448
    %v1521 = vpack.c.b16 %v1457, %v1449
    %v1522 = vpack.c.b16 %v1458, %v1450
    %v1523 = vpack.c.b16 %v1459, %v1451
    %v1524 = vpack.c.b16 %v1460, %v1452
    %v1525 = vpack.c.b16 %v1461, %v1453
    %v1526 = vpack.c.b16 %v1462, %v1454
    %1591 = vmatprep.subr.bf16.mxu0 %v1464
    %1592 = vmatpush1.bf16.msra.mxu0 %v1463
    %1593 = vmatprep.subr.bf16.mxu0 %v1472
    %1594 = vmatpush1.bf16.msra.mxu0 %v1471
    %1595 = vmatprep.subr.bf16.mxu0 %v1480
    %1596 = vmatpush1.bf16.msra.mxu0 %v1479
    %1597 = vmatprep.subr.bf16.mxu0 %v1488
    %1598 = vmatpush1.bf16.msra.mxu0 %v1487
    %1599 = vmatprep.subr.bf16.mxu0 %v1496
    %1600 = vmatpush1.bf16.msra.mxu0 %v1495
    %1601 = vmatprep.subr.bf16.mxu0 %v1504
    %1602 = vmatpush1.bf16.msra.mxu0 %v1503
    %1603 = vmatprep.subr.bf16.mxu0 %v1512
    %1604 = vmatpush1.bf16.msra.mxu0 %v1511
    %1605 = vmatprep.subr.bf16.mxu0 %v1520
    %1606 = vmatpush1.bf16.msra.mxu0 %v1519
    %1607 = vmatprep.subr.bf16.mxu0 0
    %1608 = vmatpush1.bf16.msra.mxu0 0
    %1609 = vmatprep.subr.bf16.mxu0 0
    %1610 = vmatpush1.bf16.msra.mxu0 0
    %1611 = vmatprep.subr.bf16.mxu0 0
    %1612 = vmatpush1.bf16.msra.mxu0 0
    %1613 = vmatprep.subr.bf16.mxu0 0
    %1614 = vmatpush1.bf16.msra.mxu0 0
    %1615 = vmatprep.subr.bf16.mxu0 0
    %1616 = vmatpush1.bf16.msra.mxu0 0
    %1617 = vmatprep.subr.bf16.mxu0 0
    %1618 = vmatpush1.bf16.msra.mxu0 0
    %1619 = vmatprep.subr.bf16.mxu0 0
    %1620 = vmatpush1.bf16.msra.mxu0 0
    %1621 = vmatprep.subr.bf16.mxu0 0
    %1622 = vmatpush1.bf16.msra.mxu0 0
    %1623 = vmatprep.mubr.bf16.mxu0 0
    %1624 = vmatmul.mubr.bf16.gmra.mrb[0].mxu0 %v1161
    %v1625 = vpop.f32.mrb[0].mxu0
    %v1626 = vadd.f32 %v1234, %v1625
    %v1627 = vpop.f32.mrb[0].mxu0
    %v1628 = vadd.f32 %v1238, %v1627
    %v1629 = vpop.f32.mrb[0].mxu0
    %v1630 = vadd.f32 %v1234, %v1629
    %v1631 = vpop.f32.mrb[0].mxu0
    %v1632 = vadd.f32 %v1238, %v1631
    %1633 = vmatprep.mubr.bf16.mxu0 0
    %1634 = vmatmul.mubr.bf16.gmra.mrb[0].mxu0 %v1162
    %v1635 = vpop.f32.mrb[0].mxu0
    %v1636 = vadd.f32 %v1234, %v1635
    %v1637 = vpop.f32.mrb[0].mxu0
    %v1638 = vadd.f32 %v1238, %v1637
    %v1639 = vpop.f32.mrb[0].mxu0
    %v1640 = vadd.f32 %v1234, %v1639
    %v1641 = vpop.f32.mrb[0].mxu0
    %v1642 = vadd.f32 %v1238, %v1641
    %1643 = vmatprep.mubr.bf16.mxu0 0
    %1644 = vmatmul.mubr.bf16.gmra.mrb[0].mxu0 %v1163
    %v1645 = vpop.f32.mrb[0].mxu0
    %v1646 = vadd.f32 %v1234, %v1645
    %v1647 = vpop.f32.mrb[0].mxu0
    %v1648 = vadd.f32 %v1238, %v1647
    %v1649 = vpop.f32.mrb[0].mxu0
    %v1650 = vadd.f32 %v1234, %v1649
    %v1651 = vpop.f32.mrb[0].mxu0
    %v1652 = vadd.f32 %v1238, %v1651
    %1653 = vmatprep.mubr.bf16.mxu0 0
    %1654 = vmatmul.mubr.bf16.gmra.mrb[0].mxu0 %v1164
    %v1655 = vpop.f32.mrb[0].mxu0
    %v1656 = vadd.f32 %v1234, %v1655
    %v1657 = vpop.f32.mrb[0].mxu0
    %v1658 = vadd.f32 %v1238, %v1657
    %v1659 = vpop.f32.mrb[0].mxu0
    %v1660 = vadd.f32 %v1234, %v1659
    %v1661 = vpop.f32.mrb[0].mxu0
    %v1662 = vadd.f32 %v1238, %v1661
    %1663 = vdwg.mxu0
    %1664 = vmatprep.subr.bf16.mxu0 %v1466
    %1665 = vmatpush1.bf16.msra.mxu0 %v1465
    %1666 = vmatprep.subr.bf16.mxu0 %v1474
    %1667 = vmatpush1.bf16.msra.mxu0 %v1473
    %1668 = vmatprep.subr.bf16.mxu0 %v1482
    %1669 = vmatpush1.bf16.msra.mxu0 %v1481
    %1670 = vmatprep.subr.bf16.mxu0 %v1490
    %1671 = vmatpush1.bf16.msra.mxu0 %v1489
    %1672 = vmatprep.subr.bf16.mxu0 %v1498
    %1673 = vmatpush1.bf16.msra.mxu0 %v1497
    %1674 = vmatprep.subr.bf16.mxu0 %v1506
    %1675 = vmatpush1.bf16.msra.mxu0 %v1505
    %1676 = vmatprep.subr.bf16.mxu0 %v1514
    %1677 = vmatpush1.bf16.msra.mxu0 %v1513
    %1678 = vmatprep.subr.bf16.mxu0 %v1522
    %1679 = vmatpush1.bf16.msra.mxu0 %v1521
    %1680 = vmatprep.subr.bf16.mxu0 0
    %1681 = vmatpush1.bf16.msra.mxu0 0
    %1682 = vmatprep.subr.bf16.mxu0 0
    %1683 = vmatpush1.bf16.msra.mxu0 0
    %1684 = vmatprep.subr.bf16.mxu0 0
    %1685 = vmatpush1.bf16.msra.mxu0 0
    %1686 = vmatprep.subr.bf16.mxu0 0
    %1687 = vmatpush1.bf16.msra.mxu0 0
    %1688 = vmatprep.subr.bf16.mxu0 0
    %1689 = vmatpush1.bf16.msra.mxu0 0
    %1690 = vmatprep.subr.bf16.mxu0 0
    %1691 = vmatpush1.bf16.msra.mxu0 0
    %1692 = vmatprep.subr.bf16.mxu0 0
    %1693 = vmatpush1.bf16.msra.mxu0 0
    %1694 = vmatprep.subr.bf16.mxu0 0
    %1695 = vmatpush1.bf16.msra.mxu0 0
    %1696 = vmatprep.mubr.bf16.mxu0 0
    %1697 = vmatmul.mubr.bf16.gmra.mrb[0].mxu0 %v1161
    %v1698 = vpop.f32.mrb[0].mxu0
    %v1699 = vadd.f32 %v1242, %v1698
    %v1700 = vpop.f32.mrb[0].mxu0
    %v1701 = vadd.f32 %v1246, %v1700
    %v1702 = vpop.f32.mrb[0].mxu0
    %v1703 = vadd.f32 %v1242, %v1702
    %v1704 = vpop.f32.mrb[0].mxu0
    %v1705 = vadd.f32 %v1246, %v1704
    %1706 = vmatprep.mubr.bf16.mxu0 0
    %1707 = vmatmul.mubr.bf16.gmra.mrb[0].mxu0 %v1162
    %v1708 = vpop.f32.mrb[0].mxu0
    %v1709 = vadd.f32 %v1242, %v1708
    %v1710 = vpop.f32.mrb[0].mxu0
    %v1711 = vadd.f32 %v1246, %v1710
    %v1712 = vpop.f32.mrb[0].mxu0
    %v1713 = vadd.f32 %v1242, %v1712
    %v1714 = vpop.f32.mrb[0].mxu0
    %v1715 = vadd.f32 %v1246, %v1714
    %1716 = vmatprep.mubr.bf16.mxu0 0
    %1717 = vmatmul.mubr.bf16.gmra.mrb[0].mxu0 %v1163
    %v1718 = vpop.f32.mrb[0].mxu0
    %v1719 = vadd.f32 %v1242, %v1718
    %v1720 = vpop.f32.mrb[0].mxu0
    %v1721 = vadd.f32 %v1246, %v1720
    %v1722 = vpop.f32.mrb[0].mxu0
    %v1723 = vadd.f32 %v1242, %v1722
    %v1724 = vpop.f32.mrb[0].mxu0
    %v1725 = vadd.f32 %v1246, %v1724
    %1726 = vmatprep.mubr.bf16.mxu0 0
    %1727 = vmatmul.mubr.bf16.gmra.mrb[0].mxu0 %v1164
    %v1728 = vpop.f32.mrb[0].mxu0
    %v1729 = vadd.f32 %v1242, %v1728
    %v1730 = vpop.f32.mrb[0].mxu0
    %v1731 = vadd.f32 %v1246, %v1730
    %v1732 = vpop.f32.mrb[0].mxu0
    %v1733 = vadd.f32 %v1242, %v1732
    %v1734 = vpop.f32.mrb[0].mxu0
    %v1735 = vadd.f32 %v1246, %v1734
    %1736 = vdwg.mxu0
    %1737 = vmatprep.subr.bf16.mxu0 %v1468
    %1738 = vmatpush1.bf16.msra.mxu0 %v1467
    %1739 = vmatprep.subr.bf16.mxu0 %v1476
    %1740 = vmatpush1.bf16.msra.mxu0 %v1475
    %1741 = vmatprep.subr.bf16.mxu0 %v1484
    %1742 = vmatpush1.bf16.msra.mxu0 %v1483
    %1743 = vmatprep.subr.bf16.mxu0 %v1492
    %1744 = vmatpush1.bf16.msra.mxu0 %v1491
    %1745 = vmatprep.subr.bf16.mxu0 %v1500
    %1746 = vmatpush1.bf16.msra.mxu0 %v1499
    %1747 = vmatprep.subr.bf16.mxu0 %v1508
    %1748 = vmatpush1.bf16.msra.mxu0 %v1507
    %1749 = vmatprep.subr.bf16.mxu0 %v1516
    %1750 = vmatpush1.bf16.msra.mxu0 %v1515
    %1751 = vmatprep.subr.bf16.mxu0 %v1524
    %1752 = vmatpush1.bf16.msra.mxu0 %v1523
    %1753 = vmatprep.subr.bf16.mxu0 0
    %1754 = vmatpush1.bf16.msra.mxu0 0
    %1755 = vmatprep.subr.bf16.mxu0 0
    %1756 = vmatpush1.bf16.msra.mxu0 0
    %1757 = vmatprep.subr.bf16.mxu0 0
    %1758 = vmatpush1.bf16.msra.mxu0 0
    %1759 = vmatprep.subr.bf16.mxu0 0
    %1760 = vmatpush1.bf16.msra.mxu0 0
    %1761 = vmatprep.subr.bf16.mxu0 0
    %1762 = vmatpush1.bf16.msra.mxu0 0
    %1763 = vmatprep.subr.bf16.mxu0 0
    %1764 = vmatpush1.bf16.msra.mxu0 0
    %1765 = vmatprep.subr.bf16.mxu0 0
    %1766 = vmatpush1.bf16.msra.mxu0 0
    %1767 = vmatprep.subr.bf16.mxu0 0
    %1768 = vmatpush1.bf16.msra.mxu0 0
    %1769 = vmatprep.mubr.bf16.mxu0 0
    %1770 = vmatmul.mubr.bf16.gmra.mrb[0].mxu0 %v1161
    %v1771 = vpop.f32.mrb[0].mxu0
    %v1772 = vadd.f32 %v1250, %v1771
    %v1773 = vpop.f32.mrb[0].mxu0
    %v1774 = vadd.f32 %v1254, %v1773
    %v1775 = vpop.f32.mrb[0].mxu0
    %v1776 = vadd.f32 %v1250, %v1775
    %v1777 = vpop.f32.mrb[0].mxu0
    %v1778 = vadd.f32 %v1254, %v1777
    %1779 = vmatprep.mubr.bf16.mxu0 0
    %1780 = vmatmul.mubr.bf16.gmra.mrb[0].mxu0 %v1162
    %v1781 = vpop.f32.mrb[0].mxu0
    %v1782 = vadd.f32 %v1250, %v1781
    %v1783 = vpop.f32.mrb[0].mxu0
    %v1784 = vadd.f32 %v1254, %v1783
    %v1785 = vpop.f32.mrb[0].mxu0
    %v1786 = vadd.f32 %v1250, %v1785
    %v1787 = vpop.f32.mrb[0].mxu0
    %v1788 = vadd.f32 %v1254, %v1787
    %1789 = vmatprep.mubr.bf16.mxu0 0
    %1790 = vmatmul.mubr.bf16.gmra.mrb[0].mxu0 %v1163
    %v1791 = vpop.f32.mrb[0].mxu0
    %v1792 = vadd.f32 %v1250, %v1791
    %v1793 = vpop.f32.mrb[0].mxu0
    %v1794 = vadd.f32 %v1254, %v1793
    %v1795 = vpop.f32.mrb[0].mxu0
    %v1796 = vadd.f32 %v1250, %v1795
    %v1797 = vpop.f32.mrb[0].mxu0
    %v1798 = vadd.f32 %v1254, %v1797
    %1799 = vmatprep.mubr.bf16.mxu0 0
    %1800 = vmatmul.mubr.bf16.gmra.mrb[0].mxu0 %v1164
    %v1801 = vpop.f32.mrb[0].mxu0
    %v1802 = vadd.f32 %v1250, %v1801
    %v1803 = vpop.f32.mrb[0].mxu0
    %v1804 = vadd.f32 %v1254, %v1803
    %v1805 = vpop.f32.mrb[0].mxu0
    %v1806 = vadd.f32 %v1250, %v1805
    %v1807 = vpop.f32.mrb[0].mxu0
    %v1808 = vadd.f32 %v1254, %v1807
    %1809 = vdwg.mxu0
    %1810 = vmatprep.subr.bf16.mxu0 %v1470
    %1811 = vmatpush1.bf16.msra.mxu0 %v1469
    %1812 = vmatprep.subr.bf16.mxu0 %v1478
    %1813 = vmatpush1.bf16.msra.mxu0 %v1477
    %1814 = vmatprep.subr.bf16.mxu0 %v1486
    %1815 = vmatpush1.bf16.msra.mxu0 %v1485
    %1816 = vmatprep.subr.bf16.mxu0 %v1494
    %1817 = vmatpush1.bf16.msra.mxu0 %v1493
    %1818 = vmatprep.subr.bf16.mxu0 %v1502
    %1819 = vmatpush1.bf16.msra.mxu0 %v1501
    %1820 = vmatprep.subr.bf16.mxu0 %v1510
    %1821 = vmatpush1.bf16.msra.mxu0 %v1509
    %1822 = vmatprep.subr.bf16.mxu0 %v1518
    %1823 = vmatpush1.bf16.msra.mxu0 %v1517
    %1824 = vmatprep.subr.bf16.mxu0 %v1526
    %1825 = vmatpush1.bf16.msra.mxu0 %v1525
    %1826 = vmatprep.subr.bf16.mxu0 0
    %1827 = vmatpush1.bf16.msra.mxu0 0
    %1828 = vmatprep.subr.bf16.mxu0 0
    %1829 = vmatpush1.bf16.msra.mxu0 0
    %1830 = vmatprep.subr.bf16.mxu0 0
    %1831 = vmatpush1.bf16.msra.mxu0 0
    %1832 = vmatprep.subr.bf16.mxu0 0
    %1833 = vmatpush1.bf16.msra.mxu0 0
    %1834 = vmatprep.subr.bf16.mxu0 0
    %1835 = vmatpush1.bf16.msra.mxu0 0
    %1836 = vmatprep.subr.bf16.mxu0 0
    %1837 = vmatpush1.bf16.msra.mxu0 0
    %1838 = vmatprep.subr.bf16.mxu0 0
    %1839 = vmatpush1.bf16.msra.mxu0 0
    %1840 = vmatprep.subr.bf16.mxu0 0
    %1841 = vmatpush1.bf16.msra.mxu0 0
    %1842 = vmatprep.mubr.bf16.mxu0 0
    %1843 = vmatmul.mubr.bf16.gmra.mrb[0].mxu0 %v1161
    %v1844 = vpop.f32.mrb[0].mxu0
    %v1845 = vadd.f32 %v1258, %v1844
    %v1846 = vpop.f32.mrb[0].mxu0
    %v1847 = vadd.f32 %v1262, %v1846
    %v1848 = vpop.f32.mrb[0].mxu0
    %v1849 = vadd.f32 %v1258, %v1848
    %v1850 = vpop.f32.mrb[0].mxu0
    %v1851 = vadd.f32 %v1262, %v1850
    %1852 = vmatprep.mubr.bf16.mxu0 0
    %1853 = vmatmul.mubr.bf16.gmra.mrb[0].mxu0 %v1162
    %v1854 = vpop.f32.mrb[0].mxu0
    %v1855 = vadd.f32 %v1258, %v1854
    %v1856 = vpop.f32.mrb[0].mxu0
    %v1857 = vadd.f32 %v1262, %v1856
    %v1858 = vpop.f32.mrb[0].mxu0
    %v1859 = vadd.f32 %v1258, %v1858
    %v1860 = vpop.f32.mrb[0].mxu0
    %v1861 = vadd.f32 %v1262, %v1860
    %1862 = vmatprep.mubr.bf16.mxu0 0
    %1863 = vmatmul.mubr.bf16.gmra.mrb[0].mxu0 %v1163
    %v1864 = vpop.f32.mrb[0].mxu0
    %v1865 = vadd.f32 %v1258, %v1864
    %v1866 = vpop.f32.mrb[0].mxu0
    %v1867 = vadd.f32 %v1262, %v1866
    %v1868 = vpop.f32.mrb[0].mxu0
    %v1869 = vadd.f32 %v1258, %v1868
    %v1870 = vpop.f32.mrb[0].mxu0
    %v1871 = vadd.f32 %v1262, %v1870
    %1872 = vmatprep.mubr.bf16.mxu0 0
    %1873 = vmatmul.mubr.bf16.gmra.mrb[0].mxu0 %v1164
    %v1874 = vpop.f32.mrb[0].mxu0
    %v1875 = vadd.f32 %v1258, %v1874
    %v1876 = vpop.f32.mrb[0].mxu0
    %v1877 = vadd.f32 %v1262, %v1876
    %v1878 = vpop.f32.mrb[0].mxu0
    %v1879 = vadd.f32 %v1258, %v1878
    %v1880 = vpop.f32.mrb[0].mxu0
    %v1881 = vadd.f32 %v1262, %v1880
    %1882 = vdwg.mxu0
    %1883 = vst [vmem:[#allocation2] sm:$0xff] %v1626
    %1884 = vst [vmem:[#allocation2 + $0x8] sm:$0xff] %v1628
    %1885 = vst [vmem:[#allocation2 + $0x10] sm:$0xff] %v1699
    %1886 = vst [vmem:[#allocation2 + $0x18] sm:$0xff] %v1701
    %1887 = vst [vmem:[#allocation2 + $0x20] sm:$0xff] %v1630
    %1888 = vst [vmem:[#allocation2 + $0x28] sm:$0xff] %v1632
    %1889 = vst [vmem:[#allocation2 + $0x30] sm:$0xff] %v1703
    %1890 = vst [vmem:[#allocation2 + $0x38] sm:$0xff] %v1705
    %1891 = vst [vmem:[#allocation2 + $0x40] sm:$0xff] %v1636
    %1892 = vst [vmem:[#allocation2 + $0x48] sm:$0xff] %v1638
    %1893 = vst [vmem:[#allocation2 + $0x50] sm:$0xff] %v1709
    %1894 = vst [vmem:[#allocation2 + $0x58] sm:$0xff] %v1711
    %1895 = vst [vmem:[#allocation2 + $0x60] sm:$0xff] %v1640
    %1896 = vst [vmem:[#allocation2 + $0x68] sm:$0xff] %v1642
    %1897 = vst [vmem:[#allocation2 + $0x70] sm:$0xff] %v1713
    %1898 = vst [vmem:[#allocation2 + $0x78] sm:$0xff] %v1715
    %1899 = vst [vmem:[#allocation2 + $0x80] sm:$0xff] %v1646
    %1900 = vst [vmem:[#allocation2 + $0x88] sm:$0xff] %v1648
    %1901 = vst [vmem:[#allocation2 + $0x90] sm:$0xff] %v1719
    %1902 = vst [vmem:[#allocation2 + $0x98] sm:$0xff] %v1721
    %1903 = vst [vmem:[#allocation2 + $0xa0] sm:$0xff] %v1650
    %1904 = vst [vmem:[#allocation2 + $0xa8] sm:$0xff] %v1652
    %1905 = vst [vmem:[#allocation2 + $0xb0] sm:$0xff] %v1723
    %1906 = vst [vmem:[#allocation2 + $0xb8] sm:$0xff] %v1725
    %1907 = vst [vmem:[#allocation2 + $0xc0] sm:$0xff] %v1656
    %1908 = vst [vmem:[#allocation2 + $0xc8] sm:$0xff] %v1658
    %1909 = vst [vmem:[#allocation2 + $0xd0] sm:$0xff] %v1729
    %1910 = vst [vmem:[#allocation2 + $0xd8] sm:$0xff] %v1731
    %1911 = vst [vmem:[#allocation2 + $0xe0] sm:$0xff] %v1660
    %1912 = vst [vmem:[#allocation2 + $0xe8] sm:$0xff] %v1662
    %1913 = vst [vmem:[#allocation2 + $0xf0] sm:$0xff] %v1733
    %1914 = vst [vmem:[#allocation2 + $0xf8] sm:$0xff] %v1735
    %1915 = vst [vmem:[#allocation3] sm:$0xff] %v1772
    %1916 = vst [vmem:[#allocation3 + $0x8] sm:$0xff] %v1774
    %1917 = vst [vmem:[#allocation3 + $0x10] sm:$0xff] %v1845
    %1918 = vst [vmem:[#allocation3 + $0x18] sm:$0xff] %v1847
    %1919 = vst [vmem:[#allocation3 + $0x20] sm:$0xff] %v1776
    %1920 = vst [vmem:[#allocation3 + $0x28] sm:$0xff] %v1778
    %1921 = vst [vmem:[#allocation3 + $0x30] sm:$0xff] %v1849
    %1922 = vst [vmem:[#allocation3 + $0x38] sm:$0xff] %v1851
    %1923 = vst [vmem:[#allocation3 + $0x40] sm:$0xff] %v1782
    %1924 = vst [vmem:[#allocation3 + $0x48] sm:$0xff] %v1784
    %1925 = vst [vmem:[#allocation3 + $0x50] sm:$0xff] %v1855
    %1926 = vst [vmem:[#allocation3 + $0x58] sm:$0xff] %v1857
    %1927 = vst [vmem:[#allocation3 + $0x60] sm:$0xff] %v1786
    %1928 = vst [vmem:[#allocation3 + $0x68] sm:$0xff] %v1788
    %1929 = vst [vmem:[#allocation3 + $0x70] sm:$0xff] %v1859
    %1930 = vst [vmem:[#allocation3 + $0x78] sm:$0xff] %v1861
    %1931 = vst [vmem:[#allocation3 + $0x80] sm:$0xff] %v1792
    %1932 = vst [vmem:[#allocation3 + $0x88] sm:$0xff] %v1794
    %1933 = vst [vmem:[#allocation3 + $0x90] sm:$0xff] %v1865
    %1934 = vst [vmem:[#allocation3 + $0x98] sm:$0xff] %v1867
    %1935 = vst [vmem:[#allocation3 + $0xa0] sm:$0xff] %v1796
    %1936 = vst [vmem:[#allocation3 + $0xa8] sm:$0xff] %v1798
    %1937 = vst [vmem:[#allocation3 + $0xb0] sm:$0xff] %v1869
    %1938 = vst [vmem:[#allocation3 + $0xb8] sm:$0xff] %v1871
    %1939 = vst [vmem:[#allocation3 + $0xc0] sm:$0xff] %v1802
    %1940 = vst [vmem:[#allocation3 + $0xc8] sm:$0xff] %v1804
    %1941 = vst [vmem:[#allocation3 + $0xd0] sm:$0xff] %v1875
    %1942 = vst [vmem:[#allocation3 + $0xd8] sm:$0xff] %v1877
    %1943 = vst [vmem:[#allocation3 + $0xe0] sm:$0xff] %v1806
    %1944 = vst [vmem:[#allocation3 + $0xe8] sm:$0xff] %v1808
    %1945 = vst [vmem:[#allocation3 + $0xf0] sm:$0xff] %v1879
    %1946 = vst [vmem:[#allocation3 + $0xf8] sm:$0xff] %v1881
    %v1947 = vld [vmem:[%s7] sm:$0xff]
    %v1948 = vlaneseq
    %v1949 = vand.u32 %v1948, 127
    %vm1950 = vcmp.lt.s32.totalorder %v1949, 64
    %v1951 = vld [vmem:[#allocation2] sm:$0xff]
    %v1952 = vld [vmem:[#allocation2 + $0x8] sm:$0xff]
    %v1953 = vld [vmem:[#allocation2 + $0x10] sm:$0xff]
    %v1954 = vld [vmem:[#allocation2 + $0x18] sm:$0xff]
    %v1955 = vld [vmem:[#allocation3 + $0xe0] sm:$0xff]
    %v1956 = vld [vmem:[#allocation3 + $0xe8] sm:$0xff]
    %v1957 = vld [vmem:[#allocation3 + $0xf0] sm:$0xff]
    %v1958 = vld [vmem:[#allocation3 + $0xf8] sm:$0xff]
    %v1959 = vadd.f32 %v1951, %v1955
    %v1960 = vadd.f32 %v1952, %v1956
    %v1961 = vadd.f32 %v1953, %v1957
    %v1962 = vadd.f32 %v1954, %v1958
    %v1963 = vld [vmem:[#allocation12] sm:$0xff]
    %v1964 = vld [vmem:[#allocation12 + $0x8] sm:$0xff]
    %v1965 = vld [vmem:[#allocation12 + $0x10] sm:$0xff]
    %v1966 = vld [vmem:[#allocation12 + $0x18] sm:$0xff]
    %v1967 = vld [vmem:[#allocation12 + $0x20] sm:$0xff]
    %v1968 = vld [vmem:[#allocation12 + $0x28] sm:$0xff]
    %v1969 = vld [vmem:[#allocation12 + $0x30] sm:$0xff]
    %v1970 = vld [vmem:[#allocation12 + $0x38] sm:$0xff]
    %v1971 = vld [vmem:[#allocation12 + $0x40] sm:$0xff]
    %v1972 = vld [vmem:[#allocation12 + $0x48] sm:$0xff]
    %v1973 = vld [vmem:[#allocation12 + $0x50] sm:$0xff]
    %v1974 = vld [vmem:[#allocation12 + $0x58] sm:$0xff]
    %v1975 = vld [vmem:[#allocation12 + $0x60] sm:$0xff]
    %v1976 = vld [vmem:[#allocation12 + $0x68] sm:$0xff]
    %v1977 = vld [vmem:[#allocation12 + $0x70] sm:$0xff]
    %v1978 = vld [vmem:[#allocation12 + $0x78] sm:$0xff]
    %v1979 = vld [vmem:[#allocation12 + $0x80] sm:$0xff]
    %v1980 = vld [vmem:[#allocation12 + $0x88] sm:$0xff]
    %v1981 = vld [vmem:[#allocation12 + $0x90] sm:$0xff]
    %v1982 = vld [vmem:[#allocation12 + $0x98] sm:$0xff]
    %v1983 = vld [vmem:[#allocation12 + $0xa0] sm:$0xff]
    %v1984 = vld [vmem:[#allocation12 + $0xa8] sm:$0xff]
    %v1985 = vld [vmem:[#allocation12 + $0xb0] sm:$0xff]
    %v1986 = vld [vmem:[#allocation12 + $0xb8] sm:$0xff]
    %v1987 = vld [vmem:[#allocation12 + $0xc0] sm:$0xff]
    %v1988 = vld [vmem:[#allocation12 + $0xc8] sm:$0xff]
    %v1989 = vld [vmem:[#allocation12 + $0xd0] sm:$0xff]
    %v1990 = vld [vmem:[#allocation12 + $0xd8] sm:$0xff]
    %v1991 = vld [vmem:[#allocation12 + $0xe0] sm:$0xff]
    %v1992 = vld [vmem:[#allocation12 + $0xe8] sm:$0xff]
    %v1993 = vld [vmem:[#allocation12 + $0xf0] sm:$0xff]
    %v1994 = vld [vmem:[#allocation12 + $0xf8] sm:$0xff]
    %v2027 = vunpack.c.l.b16 %v1963
    %v2028 = vunpack.c.h.b16 %v1963
    %v2029 = vunpack.c.l.b16 %v1964
    %v2030 = vunpack.c.h.b16 %v1964
    %v2031 = vunpack.c.l.b16 %v1965
    %v2032 = vunpack.c.h.b16 %v1965
    %v2033 = vunpack.c.l.b16 %v1966
    %v2034 = vunpack.c.h.b16 %v1966
    %v2035 = vunpack.c.l.b16 %v1967
    %v2036 = vunpack.c.h.b16 %v1967
    %v2037 = vunpack.c.l.b16 %v1968
    %v2038 = vunpack.c.h.b16 %v1968
    %v2039 = vunpack.c.l.b16 %v1969
    %v2040 = vunpack.c.h.b16 %v1969
    %v2041 = vunpack.c.l.b16 %v1970
    %v2042 = vunpack.c.h.b16 %v1970
    %v2043 = vunpack.c.l.b16 %v1971
    %v2044 = vunpack.c.h.b16 %v1971
    %v2045 = vunpack.c.l.b16 %v1972
    %v2046 = vunpack.c.h.b16 %v1972
    %v2047 = vunpack.c.l.b16 %v1973
    %v2048 = vunpack.c.h.b16 %v1973
    %v2049 = vunpack.c.l.b16 %v1974
    %v2050 = vunpack.c.h.b16 %v1974
    %v2051 = vunpack.c.l.b16 %v1975
    %v2052 = vunpack.c.h.b16 %v1975
    %v2053 = vunpack.c.l.b16 %v1976
    %v2054 = vunpack.c.h.b16 %v1976
    %v2055 = vunpack.c.l.b16 %v1977
    %v2056 = vunpack.c.h.b16 %v1977
    %v2057 = vunpack.c.l.b16 %v1978
    %v2058 = vunpack.c.h.b16 %v1978
    %v2059 = vunpack.c.l.b16 %v1979
    %v2060 = vunpack.c.h.b16 %v1979
    %v2061 = vunpack.c.l.b16 %v1980
    %v2062 = vunpack.c.h.b16 %v1980
    %v2063 = vunpack.c.l.b16 %v1981
    %v2064 = vunpack.c.h.b16 %v1981
    %v2065 = vunpack.c.l.b16 %v1982
    %v2066 = vunpack.c.h.b16 %v1982
    %v2067 = vunpack.c.l.b16 %v1983
    %v2068 = vunpack.c.h.b16 %v1983
    %v2069 = vunpack.c.l.b16 %v1984
    %v2070 = vunpack.c.h.b16 %v1984
    %v2071 = vunpack.c.l.b16 %v1985
    %v2072 = vunpack.c.h.b16 %v1985
    %v2073 = vunpack.c.l.b16 %v1986
    %v2074 = vunpack.c.h.b16 %v1986
    %v2075 = vunpack.c.l.b16 %v1987
    %v2076 = vunpack.c.h.b16 %v1987
    %v2077 = vunpack.c.l.b16 %v1988
    %v2078 = vunpack.c.h.b16 %v1988
    %v2079 = vunpack.c.l.b16 %v1989
    %v2080 = vunpack.c.h.b16 %v1989
    %v2081 = vunpack.c.l.b16 %v1990
    %v2082 = vunpack.c.h.b16 %v1990
    %v2083 = vunpack.c.l.b16 %v1991
    %v2084 = vunpack.c.h.b16 %v1991
    %v2085 = vunpack.c.l.b16 %v1992
    %v2086 = vunpack.c.h.b16 %v1992
    %v2087 = vunpack.c.l.b16 %v1993
    %v2088 = vunpack.c.h.b16 %v1993
    %v2089 = vunpack.c.l.b16 %v1994
    %v2090 = vunpack.c.h.b16 %v1994
    %v2091 = vpack.c.b16 %v2031, %v2027
    %v2092 = vpack.c.b16 %v2032, %v2028
    %v2093 = vpack.c.b16 %v2033, %v2029
    %v2094 = vpack.c.b16 %v2034, %v2030
    %v2095 = vpack.c.b16 %v2039, %v2035
    %v2096 = vpack.c.b16 %v2040, %v2036
    %v2097 = vpack.c.b16 %v2041, %v2037
    %v2098 = vpack.c.b16 %v2042, %v2038
    %v2099 = vpack.c.b16 %v2047, %v2043
    %v2100 = vpack.c.b16 %v2048, %v2044
    %v2101 = vpack.c.b16 %v2049, %v2045
    %v2102 = vpack.c.b16 %v2050, %v2046
    %v2103 = vpack.c.b16 %v2055, %v2051
    %v2104 = vpack.c.b16 %v2056, %v2052
    %v2105 = vpack.c.b16 %v2057, %v2053
    %v2106 = vpack.c.b16 %v2058, %v2054
    %v2107 = vpack.c.b16 %v2063, %v2059
    %v2108 = vpack.c.b16 %v2064, %v2060
    %v2109 = vpack.c.b16 %v2065, %v2061
    %v2110 = vpack.c.b16 %v2066, %v2062
    %v2111 = vpack.c.b16 %v2071, %v2067
    %v2112 = vpack.c.b16 %v2072, %v2068
    %v2113 = vpack.c.b16 %v2073, %v2069
    %v2114 = vpack.c.b16 %v2074, %v2070
    %v2115 = vpack.c.b16 %v2079, %v2075
    %v2116 = vpack.c.b16 %v2080, %v2076
    %v2117 = vpack.c.b16 %v2081, %v2077
    %v2118 = vpack.c.b16 %v2082, %v2078
    %v2119 = vpack.c.b16 %v2087, %v2083
    %v2120 = vpack.c.b16 %v2088, %v2084
    %v2121 = vpack.c.b16 %v2089, %v2085
    %v2122 = vpack.c.b16 %v2090, %v2086
    %2155 = vmatprep.subr.bf16.mxu0 %v2092
    %2156 = vmatpush1.bf16.msra.mxu0 %v2091
    %2157 = vmatprep.subr.bf16.mxu0 %v2096
    %2158 = vmatpush1.bf16.msra.mxu0 %v2095
    %2159 = vmatprep.subr.bf16.mxu0 %v2100
    %2160 = vmatpush1.bf16.msra.mxu0 %v2099
    %2161 = vmatprep.subr.bf16.mxu0 %v2104
    %2162 = vmatpush1.bf16.msra.mxu0 %v2103
    %2163 = vmatprep.subr.bf16.mxu0 %v2108
    %2164 = vmatpush1.bf16.msra.mxu0 %v2107
    %2165 = vmatprep.subr.bf16.mxu0 %v2112
    %2166 = vmatpush1.bf16.msra.mxu0 %v2111
    %2167 = vmatprep.subr.bf16.mxu0 %v2116
    %2168 = vmatpush1.bf16.msra.mxu0 %v2115
    %2169 = vmatprep.subr.bf16.mxu0 %v2120
    %2170 = vmatpush1.bf16.msra.mxu0 %v2119
    %2171 = vmatprep.subr.bf16.mxu0 0
    %2172 = vmatpush1.bf16.msra.mxu0 0
    %2173 = vmatprep.subr.bf16.mxu0 0
    %2174 = vmatpush1.bf16.msra.mxu0 0
    %2175 = vmatprep.subr.bf16.mxu0 0
    %2176 = vmatpush1.bf16.msra.mxu0 0
    %2177 = vmatprep.subr.bf16.mxu0 0
    %2178 = vmatpush1.bf16.msra.mxu0 0
    %2179 = vmatprep.subr.bf16.mxu0 0
    %2180 = vmatpush1.bf16.msra.mxu0 0
    %2181 = vmatprep.subr.bf16.mxu0 0
    %2182 = vmatpush1.bf16.msra.mxu0 0
    %2183 = vmatprep.subr.bf16.mxu0 0
    %2184 = vmatpush1.bf16.msra.mxu0 0
    %2185 = vmatprep.subr.bf16.mxu0 0
    %2186 = vmatpush1.bf16.msra.mxu0 0
    %2187 = vmatprep.mubr.bf16.mxu0 0
    %2188 = vmatmul.mubr.bf16.gmra.mrb[0].mxu0 0
    %v2189 = vpop.f32.mrb[0].mxu0
    %v2190 = vadd.f32 0.0, %v2189
    %v2191 = vpop.f32.mrb[0].mxu0
    %v2192 = vadd.f32 0.0, %v2191
    %v2193 = vpop.f32.mrb[0].mxu0
    %v2194 = vpop.f32.mrb[0].mxu0
    %2195 = vdwg.mxu0
    %2196 = vmatprep.subr.bf16.mxu0 %v2094
    %2197 = vmatpush1.bf16.msra.mxu0 %v2093
    %2198 = vmatprep.subr.bf16.mxu0 %v2098
    %2199 = vmatpush1.bf16.msra.mxu0 %v2097
    %2200 = vmatprep.subr.bf16.mxu0 %v2102
    %2201 = vmatpush1.bf16.msra.mxu0 %v2101
    %2202 = vmatprep.subr.bf16.mxu0 %v2106
    %2203 = vmatpush1.bf16.msra.mxu0 %v2105
    %2204 = vmatprep.subr.bf16.mxu0 %v2110
    %2205 = vmatpush1.bf16.msra.mxu0 %v2109
    %2206 = vmatprep.subr.bf16.mxu0 %v2114
    %2207 = vmatpush1.bf16.msra.mxu0 %v2113
    %2208 = vmatprep.subr.bf16.mxu0 %v2118
    %2209 = vmatpush1.bf16.msra.mxu0 %v2117
    %2210 = vmatprep.subr.bf16.mxu0 %v2122
    %2211 = vmatpush1.bf16.msra.mxu0 %v2121
    %2212 = vmatprep.subr.bf16.mxu0 0
    %2213 = vmatpush1.bf16.msra.mxu0 0
    %2214 = vmatprep.subr.bf16.mxu0 0
    %2215 = vmatpush1.bf16.msra.mxu0 0
    %2216 = vmatprep.subr.bf16.mxu0 0
    %2217 = vmatpush1.bf16.msra.mxu0 0
    %2218 = vmatprep.subr.bf16.mxu0 0
    %2219 = vmatpush1.bf16.msra.mxu0 0
    %2220 = vmatprep.subr.bf16.mxu0 0
    %2221 = vmatpush1.bf16.msra.mxu0 0
    %2222 = vmatprep.subr.bf16.mxu0 0
    %2223 = vmatpush1.bf16.msra.mxu0 0
    %2224 = vmatprep.subr.bf16.mxu0 0
    %2225 = vmatpush1.bf16.msra.mxu0 0
    %2226 = vmatprep.subr.bf16.mxu0 0
    %2227 = vmatpush1.bf16.msra.mxu0 0
    %2228 = vmatprep.mubr.bf16.mxu0 0
    %2229 = vmatmul.mubr.bf16.gmra.mrb[0].mxu0 0
    %v2230 = vpop.f32.mrb[0].mxu0
    %v2231 = vadd.f32 0.0, %v2230
    %v2232 = vpop.f32.mrb[0].mxu0
    %v2233 = vadd.f32 0.0, %v2232
    %v2234 = vpop.f32.mrb[0].mxu0
    %v2235 = vpop.f32.mrb[0].mxu0
    %2236 = vdwg.mxu0
    %v2237 = vadd.f32 %v1959, %v2190
    %v2238 = vadd.f32 %v1960, %v2192
    %v2239 = vadd.f32 %v1961, %v2231
    %v2240 = vadd.f32 %v1962, %v2233
    %v2241 = vxor.u32 %v2237, 2147483648
    %v2242 = vxor.u32 %v2238, 2147483648
    %v2243 = vxor.u32 %v2239, 2147483648
    %v2244 = vmul.f32 %v2241, 1.442695
    %v2245 = vpow.pop %v2244
    %v2246 = vmul.f32 %v2242, 1.442695
    %v2247 = vpow.pop %v2246
    %v2248 = vmul.f32 %v2243, 1.442695
    %v2249 = vpow.pop %v2248
    %v2250 = vadd.f32 %v2245, 1.0
    %v2251 = vadd.f32 %v2247, 1.0
    %v2252 = vadd.f32 %v2249, 1.0
    %v2253 = vrcp.pop %v2250
    %v2254 = vmul.f32 1.0, %v2253
    %v2255 = vrcp.pop %v2251
    %v2256 = vmul.f32 1.0, %v2255
    %v2257 = vrcp.pop %v2252
    %v2258 = vmul.f32 1.0, %v2257
    %v2259 = vtanh.pop %v2240
    %v2260 = vmul.f32 %v2256, 0.0
    %v2261 = vmul.f32 %v2254, %v2259
    %v2262 = vadd.f32 %v2260, %v2261
    %v2263 = vtanh.pop %v2262
    %v2264 = vmul.f32 %v2258, %v2263
    %v2265 = vsel %vm1950, 0, 7
    %2266 = vset.pattern.permute.xlu0 0
    %2267 = vperm.xlu0 %2266, %v1947
    %v2268 = vpop.permute.xlu0 %2267
    %vm2269 = vcmp.lt.s32.totalorder %v2265, %v2268
    %v2270 = vsel %vm2269, %v2264, 0.0
    %v2271 = vsel %vm2269, %v2262, 0.0
    %v2272 = vld [vmem:[#allocation2 + $0x20] sm:$0xff]
    %v2273 = vld [vmem:[#allocation2 + $0x28] sm:$0xff]
    %v2274 = vld [vmem:[#allocation2 + $0x30] sm:$0xff]
    %v2275 = vld [vmem:[#allocation2 + $0x38] sm:$0xff]
    %v2276 = vld [vmem:[#allocation3 + $0xc0] sm:$0xff]
    %v2277 = vld [vmem:[#allocation3 + $0xc8] sm:$0xff]
    %v2278 = vld [vmem:[#allocation3 + $0xd0] sm:$0xff]
    %v2279 = vld [vmem:[#allocation3 + $0xd8] sm:$0xff]
    %v2280 = vadd.f32 %v2272, %v2276
    %v2281 = vadd.f32 %v2273, %v2277
    %v2282 = vadd.f32 %v2274, %v2278
    %v2283 = vadd.f32 %v2275, %v2279
    %v2284 = vpack.c.bf16 %v2270, %v2270
    %2285 = vmatprep.subr.bf16.mxu0 %v2092
    %2286 = vmatpush1.bf16.msra.mxu0 %v2091
    %2287 = vmatprep.subr.bf16.mxu0 %v2096
    %2288 = vmatpush1.bf16.msra.mxu0 %v2095
    %2289 = vmatprep.subr.bf16.mxu0 %v2100
    %2290 = vmatpush1.bf16.msra.mxu0 %v2099
    %2291 = vmatprep.subr.bf16.mxu0 %v2104
    %2292 = vmatpush1.bf16.msra.mxu0 %v2103
    %2293 = vmatprep.subr.bf16.mxu0 %v2108
    %2294 = vmatpush1.bf16.msra.mxu0 %v2107
    %2295 = vmatprep.subr.bf16.mxu0 %v2112
    %2296 = vmatpush1.bf16.msra.mxu0 %v2111
    %2297 = vmatprep.subr.bf16.mxu0 %v2116
    %2298 = vmatpush1.bf16.msra.mxu0 %v2115
    %2299 = vmatprep.subr.bf16.mxu0 %v2120
    %2300 = vmatpush1.bf16.msra.mxu0 %v2119
    %2301 = vmatprep.subr.bf16.mxu0 0
    %2302 = vmatpush1.bf16.msra.mxu0 0
    %2303 = vmatprep.subr.bf16.mxu0 0
    %2304 = vmatpush1.bf16.msra.mxu0 0
    %2305 = vmatprep.subr.bf16.mxu0 0
    %2306 = vmatpush1.bf16.msra.mxu0 0
    %2307 = vmatprep.subr.bf16.mxu0 0
    %2308 = vmatpush1.bf16.msra.mxu0 0
    %2309 = vmatprep.subr.bf16.mxu0 0
    %2310 = vmatpush1.bf16.msra.mxu0 0
    %2311 = vmatprep.subr.bf16.mxu0 0
    %2312 = vmatpush1.bf16.msra.mxu0 0
    %2313 = vmatprep.subr.bf16.mxu0 0
    %2314 = vmatpush1.bf16.msra.mxu0 0
    %2315 = vmatprep.subr.bf16.mxu0 0
    %2316 = vmatpush1.bf16.msra.mxu0 0
    %2317 = vmatprep.mubr.bf16.mxu0 0
    %2318 = vmatmul.mubr.bf16.gmra.mrb[0].mxu0 %v2284
    %v2319 = vpop.f32.mrb[0].mxu0
    %v2320 = vadd.f32 0.0, %v2319
    %v2321 = vpop.f32.mrb[0].mxu0
    %v2322 = vadd.f32 0.0, %v2321
    %v2323 = vpop.f32.mrb[0].mxu0
    %v2324 = vpop.f32.mrb[0].mxu0
    %2325 = vdwg.mxu0
    %2326 = vmatprep.subr.bf16.mxu0 %v2094
    %2327 = vmatpush1.bf16.msra.mxu0 %v2093
    %2328 = vmatprep.subr.bf16.mxu0 %v2098
    %2329 = vmatpush1.bf16.msra.mxu0 %v2097
    %2330 = vmatprep.subr.bf16.mxu0 %v2102
    %2331 = vmatpush1.bf16.msra.mxu0 %v2101
    %2332 = vmatprep.subr.bf16.mxu0 %v2106
    %2333 = vmatpush1.bf16.msra.mxu0 %v2105
    %2334 = vmatprep.subr.bf16.mxu0 %v2110
    %2335 = vmatpush1.bf16.msra.mxu0 %v2109
    %2336 = vmatprep.subr.bf16.mxu0 %v2114
    %2337 = vmatpush1.bf16.msra.mxu0 %v2113
    %2338 = vmatprep.subr.bf16.mxu0 %v2118
    %2339 = vmatpush1.bf16.msra.mxu0 %v2117
    %2340 = vmatprep.subr.bf16.mxu0 %v2122
    %2341 = vmatpush1.bf16.msra.mxu0 %v2121
    %2342 = vmatprep.subr.bf16.mxu0 0
    %2343 = vmatpush1.bf16.msra.mxu0 0
    %2344 = vmatprep.subr.bf16.mxu0 0
    %2345 = vmatpush1.bf16.msra.mxu0 0
    %2346 = vmatprep.subr.bf16.mxu0 0
    %2347 = vmatpush1.bf16.msra.mxu0 0
    %2348 = vmatprep.subr.bf16.mxu0 0
    %2349 = vmatpush1.bf16.msra.mxu0 0
    %2350 = vmatprep.subr.bf16.mxu0 0
    %2351 = vmatpush1.bf16.msra.mxu0 0
    %2352 = vmatprep.subr.bf16.mxu0 0
    %2353 = vmatpush1.bf16.msra.mxu0 0
    %2354 = vmatprep.subr.bf16.mxu0 0
    %2355 = vmatpush1.bf16.msra.mxu0 0
    %2356 = vmatprep.subr.bf16.mxu0 0
    %2357 = vmatpush1.bf16.msra.mxu0 0
    %2358 = vmatprep.mubr.bf16.mxu0 0
    %2359 = vmatmul.mubr.bf16.gmra.mrb[0].mxu0 %v2284
    %v2360 = vpop.f32.mrb[0].mxu0
    %v2361 = vadd.f32 0.0, %v2360
    %v2362 = vpop.f32.mrb[0].mxu0
    %v2363 = vadd.f32 0.0, %v2362
    %v2364 = vpop.f32.mrb[0].mxu0
    %v2365 = vpop.f32.mrb[0].mxu0
    %2366 = vdwg.mxu0
    %v2367 = vadd.f32 %v2280, %v2320
    %v2368 = vadd.f32 %v2281, %v2322
    %v2369 = vadd.f32 %v2282, %v2361
    %v2370 = vadd.f32 %v2283, %v2363
    %v2371 = vxor.u32 %v2367, 2147483648
    %v2372 = vxor.u32 %v2368, 2147483648
    %v2373 = vxor.u32 %v2369, 2147483648
    %v2374 = vmul.f32 %v2371, 1.442695
    %v2375 = vpow.pop %v2374
    %v2376 = vmul.f32 %v2372, 1.442695
    %v2377 = vpow.pop %v2376
    %v2378 = vmul.f32 %v2373, 1.442695
    %v2379 = vpow.pop %v2378
    %v2380 = vadd.f32 %v2375, 1.0
    %v2381 = vadd.f32 %v2377, 1.0
    %v2382 = vadd.f32 %v2379, 1.0
    %v2383 = vrcp.pop %v2380
    %v2384 = vmul.f32 1.0, %v2383
    %v2385 = vrcp.pop %v2381
    %v2386 = vmul.f32 1.0, %v2385
    %v2387 = vrcp.pop %v2382
    %v2388 = vmul.f32 1.0, %v2387
    %v2389 = vtanh.pop %v2370
    %v2390 = vmul.f32 %v2386, %v2271
    %v2391 = vmul.f32 %v2384, %v2389
    %v2392 = vadd.f32 %v2390, %v2391
    %v2393 = vtanh.pop %v2392
    %v2394 = vmul.f32 %v2388, %v2393
    %v2395 = vsel %vm1950, 1, 6
    %vm2396 = vcmp.lt.s32.totalorder %v2395, %v2268
    %v2397 = vsel %vm2396, %v2394, %v2270
    %v2398 = vsel %vm2396, %v2392, %v2271
    %v2399 = vld [vmem:[#allocation2 + $0x40] sm:$0xff]
    %v2400 = vld [vmem:[#allocation2 + $0x48] sm:$0xff]
    %v2401 = vld [vmem:[#allocation2 + $0x50] sm:$0xff]
    %v2402 = vld [vmem:[#allocation2 + $0x58] sm:$0xff]
    %v2403 = vld [vmem:[#allocation3 + $0xa0] sm:$0xff]
    %v2404 = vld [vmem:[#allocation3 + $0xa8] sm:$0xff]
    %v2405 = vld [vmem:[#allocation3 + $0xb0] sm:$0xff]
    %v2406 = vld [vmem:[#allocation3 + $0xb8] sm:$0xff]
    %v2407 = vadd.f32 %v2399, %v2403
    %v2408 = vadd.f32 %v2400, %v2404
    %v2409 = vadd.f32 %v2401, %v2405
    %v2410 = vadd.f32 %v2402, %v2406
    %v2411 = vpack.c.bf16 %v2397, %v2397
    %2412 = vmatprep.subr.bf16.mxu0 %v2092
    %2413 = vmatpush1.bf16.msra.mxu0 %v2091
    %2414 = vmatprep.subr.bf16.mxu0 %v2096
    %2415 = vmatpush1.bf16.msra.mxu0 %v2095
    %2416 = vmatprep.subr.bf16.mxu0 %v2100
    %2417 = vmatpush1.bf16.msra.mxu0 %v2099
    %2418 = vmatprep.subr.bf16.mxu0 %v2104
    %2419 = vmatpush1.bf16.msra.mxu0 %v2103
    %2420 = vmatprep.subr.bf16.mxu0 %v2108
    %2421 = vmatpush1.bf16.msra.mxu0 %v2107
    %2422 = vmatprep.subr.bf16.mxu0 %v2112
    %2423 = vmatpush1.bf16.msra.mxu0 %v2111
    %2424 = vmatprep.subr.bf16.mxu0 %v2116
    %2425 = vmatpush1.bf16.msra.mxu0 %v2115
    %2426 = vmatprep.subr.bf16.mxu0 %v2120
    %2427 = vmatpush1.bf16.msra.mxu0 %v2119
    %2428 = vmatprep.subr.bf16.mxu0 0
    %2429 = vmatpush1.bf16.msra.mxu0 0
    %2430 = vmatprep.subr.bf16.mxu0 0
    %2431 = vmatpush1.bf16.msra.mxu0 0
    %2432 = vmatprep.subr.bf16.mxu0 0
    %2433 = vmatpush1.bf16.msra.mxu0 0
    %2434 = vmatprep.subr.bf16.mxu0 0
    %2435 = vmatpush1.bf16.msra.mxu0 0
    %2436 = vmatprep.subr.bf16.mxu0 0
    %2437 = vmatpush1.bf16.msra.mxu0 0
    %2438 = vmatprep.subr.bf16.mxu0 0
    %2439 = vmatpush1.bf16.msra.mxu0 0
    %2440 = vmatprep.subr.bf16.mxu0 0
    %2441 = vmatpush1.bf16.msra.mxu0 0
    %2442 = vmatprep.subr.bf16.mxu0 0
    %2443 = vmatpush1.bf16.msra.mxu0 0
    %2444 = vmatprep.mubr.bf16.mxu0 0
    %2445 = vmatmul.mubr.bf16.gmra.mrb[0].mxu0 %v2411
    %v2446 = vpop.f32.mrb[0].mxu0
    %v2447 = vadd.f32 0.0, %v2446
    %v2448 = vpop.f32.mrb[0].mxu0
    %v2449 = vadd.f32 0.0, %v2448
    %v2450 = vpop.f32.mrb[0].mxu0
    %v2451 = vpop.f32.mrb[0].mxu0
    %2452 = vdwg.mxu0
    %2453 = vmatprep.subr.bf16.mxu0 %v2094
    %2454 = vmatpush1.bf16.msra.mxu0 %v2093
    %2455 = vmatprep.subr.bf16.mxu0 %v2098
    %2456 = vmatpush1.bf16.msra.mxu0 %v2097
    %2457 = vmatprep.subr.bf16.mxu0 %v2102
    %2458 = vmatpush1.bf16.msra.mxu0 %v2101
    %2459 = vmatprep.subr.bf16.mxu0 %v2106
    %2460 = vmatpush1.bf16.msra.mxu0 %v2105
    %2461 = vmatprep.subr.bf16.mxu0 %v2110
    %2462 = vmatpush1.bf16.msra.mxu0 %v2109
    %2463 = vmatprep.subr.bf16.mxu0 %v2114
    %2464 = vmatpush1.bf16.msra.mxu0 %v2113
    %2465 = vmatprep.subr.bf16.mxu0 %v2118
    %2466 = vmatpush1.bf16.msra.mxu0 %v2117
    %2467 = vmatprep.subr.bf16.mxu0 %v2122
    %2468 = vmatpush1.bf16.msra.mxu0 %v2121
    %2469 = vmatprep.subr.bf16.mxu0 0
    %2470 = vmatpush1.bf16.msra.mxu0 0
    %2471 = vmatprep.subr.bf16.mxu0 0
    %2472 = vmatpush1.bf16.msra.mxu0 0
    %2473 = vmatprep.subr.bf16.mxu0 0
    %2474 = vmatpush1.bf16.msra.mxu0 0
    %2475 = vmatprep.subr.bf16.mxu0 0
    %2476 = vmatpush1.bf16.msra.mxu0 0
    %2477 = vmatprep.subr.bf16.mxu0 0
    %2478 = vmatpush1.bf16.msra.mxu0 0
    %2479 = vmatprep.subr.bf16.mxu0 0
    %2480 = vmatpush1.bf16.msra.mxu0 0
    %2481 = vmatprep.subr.bf16.mxu0 0
    %2482 = vmatpush1.bf16.msra.mxu0 0
    %2483 = vmatprep.subr.bf16.mxu0 0
    %2484 = vmatpush1.bf16.msra.mxu0 0
    %2485 = vmatprep.mubr.bf16.mxu0 0
    %2486 = vmatmul.mubr.bf16.gmra.mrb[0].mxu0 %v2411
    %v2487 = vpop.f32.mrb[0].mxu0
    %v2488 = vadd.f32 0.0, %v2487
    %v2489 = vpop.f32.mrb[0].mxu0
    %v2490 = vadd.f32 0.0, %v2489
    %v2491 = vpop.f32.mrb[0].mxu0
    %v2492 = vpop.f32.mrb[0].mxu0
    %2493 = vdwg.mxu0
    %v2494 = vadd.f32 %v2407, %v2447
    %v2495 = vadd.f32 %v2408, %v2449
    %v2496 = vadd.f32 %v2409, %v2488
    %v2497 = vadd.f32 %v2410, %v2490
    %v2498 = vxor.u32 %v2494, 2147483648
    %v2499 = vxor.u32 %v2495, 2147483648
    %v2500 = vxor.u32 %v2496, 2147483648
    %v2501 = vmul.f32 %v2498, 1.442695
    %v2502 = vpow.pop %v2501
    %v2503 = vmul.f32 %v2499, 1.442695
    %v2504 = vpow.pop %v2503
    %v2505 = vmul.f32 %v2500, 1.442695
    %v2506 = vpow.pop %v2505
    %v2507 = vadd.f32 %v2502, 1.0
    %v2508 = vadd.f32 %v2504, 1.0
    %v2509 = vadd.f32 %v2506, 1.0
    %v2510 = vrcp.pop %v2507
    %v2511 = vmul.f32 1.0, %v2510
    %v2512 = vrcp.pop %v2508
    %v2513 = vmul.f32 1.0, %v2512
    %v2514 = vrcp.pop %v2509
    %v2515 = vmul.f32 1.0, %v2514
    %v2516 = vtanh.pop %v2497
    %v2517 = vmul.f32 %v2513, %v2398
    %v2518 = vmul.f32 %v2511, %v2516
    %v2519 = vadd.f32 %v2517, %v2518
    %v2520 = vtanh.pop %v2519
    %v2521 = vmul.f32 %v2515, %v2520
    %v2522 = vsel %vm1950, 2, 5
    %vm2523 = vcmp.lt.s32.totalorder %v2522, %v2268
    %v2524 = vsel %vm2523, %v2521, %v2397
    %v2525 = vsel %vm2523, %v2519, %v2398
    %v2526 = vld [vmem:[#allocation2 + $0x60] sm:$0xff]
    %v2527 = vld [vmem:[#allocation2 + $0x68] sm:$0xff]
    %v2528 = vld [vmem:[#allocation2 + $0x70] sm:$0xff]
    %v2529 = vld [vmem:[#allocation2 + $0x78] sm:$0xff]
    %v2530 = vld [vmem:[#allocation3 + $0x80] sm:$0xff]
    %v2531 = vld [vmem:[#allocation3 + $0x88] sm:$0xff]
    %v2532 = vld [vmem:[#allocation3 + $0x90] sm:$0xff]
    %v2533 = vld [vmem:[#allocation3 + $0x98] sm:$0xff]
    %v2534 = vadd.f32 %v2526, %v2530
    %v2535 = vadd.f32 %v2527, %v2531
    %v2536 = vadd.f32 %v2528, %v2532
    %v2537 = vadd.f32 %v2529, %v2533
    %v2538 = vpack.c.bf16 %v2524, %v2524
    %2539 = vmatprep.subr.bf16.mxu0 %v2092
    %2540 = vmatpush1.bf16.msra.mxu0 %v2091
    %2541 = vmatprep.subr.bf16.mxu0 %v2096
    %2542 = vmatpush1.bf16.msra.mxu0 %v2095
    %2543 = vmatprep.subr.bf16.mxu0 %v2100
    %2544 = vmatpush1.bf16.msra.mxu0 %v2099
    %2545 = vmatprep.subr.bf16.mxu0 %v2104
    %2546 = vmatpush1.bf16.msra.mxu0 %v2103
    %2547 = vmatprep.subr.bf16.mxu0 %v2108
    %2548 = vmatpush1.bf16.msra.mxu0 %v2107
    %2549 = vmatprep.subr.bf16.mxu0 %v2112
    %2550 = vmatpush1.bf16.msra.mxu0 %v2111
    %2551 = vmatprep.subr.bf16.mxu0 %v2116
    %2552 = vmatpush1.bf16.msra.mxu0 %v2115
    %2553 = vmatprep.subr.bf16.mxu0 %v2120
    %2554 = vmatpush1.bf16.msra.mxu0 %v2119
    %2555 = vmatprep.subr.bf16.mxu0 0
    %2556 = vmatpush1.bf16.msra.mxu0 0
    %2557 = vmatprep.subr.bf16.mxu0 0
    %2558 = vmatpush1.bf16.msra.mxu0 0
    %2559 = vmatprep.subr.bf16.mxu0 0
    %2560 = vmatpush1.bf16.msra.mxu0 0
    %2561 = vmatprep.subr.bf16.mxu0 0
    %2562 = vmatpush1.bf16.msra.mxu0 0
    %2563 = vmatprep.subr.bf16.mxu0 0
    %2564 = vmatpush1.bf16.msra.mxu0 0
    %2565 = vmatprep.subr.bf16.mxu0 0
    %2566 = vmatpush1.bf16.msra.mxu0 0
    %2567 = vmatprep.subr.bf16.mxu0 0
    %2568 = vmatpush1.bf16.msra.mxu0 0
    %2569 = vmatprep.subr.bf16.mxu0 0
    %2570 = vmatpush1.bf16.msra.mxu0 0
    %2571 = vmatprep.mubr.bf16.mxu0 0
    %2572 = vmatmul.mubr.bf16.gmra.mrb[0].mxu0 %v2538
    %v2573 = vpop.f32.mrb[0].mxu0
    %v2574 = vadd.f32 0.0, %v2573
    %v2575 = vpop.f32.mrb[0].mxu0
    %v2576 = vadd.f32 0.0, %v2575
    %v2577 = vpop.f32.mrb[0].mxu0
    %v2578 = vpop.f32.mrb[0].mxu0
    %2579 = vdwg.mxu0
    %2580 = vmatprep.subr.bf16.mxu0 %v2094
    %2581 = vmatpush1.bf16.msra.mxu0 %v2093
    %2582 = vmatprep.subr.bf16.mxu0 %v2098
    %2583 = vmatpush1.bf16.msra.mxu0 %v2097
    %2584 = vmatprep.subr.bf16.mxu0 %v2102
    %2585 = vmatpush1.bf16.msra.mxu0 %v2101
    %2586 = vmatprep.subr.bf16.mxu0 %v2106
    %2587 = vmatpush1.bf16.msra.mxu0 %v2105
    %2588 = vmatprep.subr.bf16.mxu0 %v2110
    %2589 = vmatpush1.bf16.msra.mxu0 %v2109
    %2590 = vmatprep.subr.bf16.mxu0 %v2114
    %2591 = vmatpush1.bf16.msra.mxu0 %v2113
    %2592 = vmatprep.subr.bf16.mxu0 %v2118
    %2593 = vmatpush1.bf16.msra.mxu0 %v2117
    %2594 = vmatprep.subr.bf16.mxu0 %v2122
    %2595 = vmatpush1.bf16.msra.mxu0 %v2121
    %2596 = vmatprep.subr.bf16.mxu0 0
    %2597 = vmatpush1.bf16.msra.mxu0 0
    %2598 = vmatprep.subr.bf16.mxu0 0
    %2599 = vmatpush1.bf16.msra.mxu0 0
    %2600 = vmatprep.subr.bf16.mxu0 0
    %2601 = vmatpush1.bf16.msra.mxu0 0
    %2602 = vmatprep.subr.bf16.mxu0 0
    %2603 = vmatpush1.bf16.msra.mxu0 0
    %2604 = vmatprep.subr.bf16.mxu0 0
    %2605 = vmatpush1.bf16.msra.mxu0 0
    %2606 = vmatprep.subr.bf16.mxu0 0
    %2607 = vmatpush1.bf16.msra.mxu0 0
    %2608 = vmatprep.subr.bf16.mxu0 0
    %2609 = vmatpush1.bf16.msra.mxu0 0
    %2610 = vmatprep.subr.bf16.mxu0 0
    %2611 = vmatpush1.bf16.msra.mxu0 0
    %2612 = vmatprep.mubr.bf16.mxu0 0
    %2613 = vmatmul.mubr.bf16.gmra.mrb[0].mxu0 %v2538
    %v2614 = vpop.f32.mrb[0].mxu0
    %v2615 = vadd.f32 0.0, %v2614
    %v2616 = vpop.f32.mrb[0].mxu0
    %v2617 = vadd.f32 0.0, %v2616
    %v2618 = vpop.f32.mrb[0].mxu0
    %v2619 = vpop.f32.mrb[0].mxu0
    %2620 = vdwg.mxu0
    %v2621 = vadd.f32 %v2534, %v2574
    %v2622 = vadd.f32 %v2535, %v2576
    %v2623 = vadd.f32 %v2536, %v2615
    %v2624 = vadd.f32 %v2537, %v2617
    %v2625 = vxor.u32 %v2621, 2147483648
    %v2626 = vxor.u32 %v2622, 2147483648
    %v2627 = vxor.u32 %v2623, 2147483648
    %v2628 = vmul.f32 %v2625, 1.442695
    %v2629 = vpow.pop %v2628
    %v2630 = vmul.f32 %v2626, 1.442695
    %v2631 = vpow.pop %v2630
    %v2632 = vmul.f32 %v2627, 1.442695
    %v2633 = vpow.pop %v2632
    %v2634 = vadd.f32 %v2629, 1.0
    %v2635 = vadd.f32 %v2631, 1.0
    %v2636 = vadd.f32 %v2633, 1.0
    %v2637 = vrcp.pop %v2634
    %v2638 = vmul.f32 1.0, %v2637
    %v2639 = vrcp.pop %v2635
    %v2640 = vmul.f32 1.0, %v2639
    %v2641 = vrcp.pop %v2636
    %v2642 = vmul.f32 1.0, %v2641
    %v2643 = vtanh.pop %v2624
    %v2644 = vmul.f32 %v2640, %v2525
    %v2645 = vmul.f32 %v2638, %v2643
    %v2646 = vadd.f32 %v2644, %v2645
    %v2647 = vtanh.pop %v2646
    %v2648 = vmul.f32 %v2642, %v2647
    %v2649 = vsel %vm1950, 3, 4
    %vm2650 = vcmp.lt.s32.totalorder %v2649, %v2268
    %v2651 = vsel %vm2650, %v2648, %v2524
    %v2652 = vsel %vm2650, %v2646, %v2525
    %v2653 = vld [vmem:[#allocation2 + $0x80] sm:$0xff]
    %v2654 = vld [vmem:[#allocation2 + $0x88] sm:$0xff]
    %v2655 = vld [vmem:[#allocation2 + $0x90] sm:$0xff]
    %v2656 = vld [vmem:[#allocation2 + $0x98] sm:$0xff]
    %v2657 = vld [vmem:[#allocation3 + $0x60] sm:$0xff]
    %v2658 = vld [vmem:[#allocation3 + $0x68] sm:$0xff]
    %v2659 = vld [vmem:[#allocation3 + $0x70] sm:$0xff]
    %v2660 = vld [vmem:[#allocation3 + $0x78] sm:$0xff]
    %v2661 = vadd.f32 %v2653, %v2657
    %v2662 = vadd.f32 %v2654, %v2658
    %v2663 = vadd.f32 %v2655, %v2659
    %v2664 = vadd.f32 %v2656, %v2660
    %v2665 = vpack.c.bf16 %v2651, %v2651
    %2666 = vmatprep.subr.bf16.mxu0 %v2092
    %2667 = vmatpush1.bf16.msra.mxu0 %v2091
    %2668 = vmatprep.subr.bf16.mxu0 %v2096
    %2669 = vmatpush1.bf16.msra.mxu0 %v2095
    %2670 = vmatprep.subr.bf16.mxu0 %v2100
    %2671 = vmatpush1.bf16.msra.mxu0 %v2099
    %2672 = vmatprep.subr.bf16.mxu0 %v2104
    %2673 = vmatpush1.bf16.msra.mxu0 %v2103
    %2674 = vmatprep.subr.bf16.mxu0 %v2108
    %2675 = vmatpush1.bf16.msra.mxu0 %v2107
    %2676 = vmatprep.subr.bf16.mxu0 %v2112
    %2677 = vmatpush1.bf16.msra.mxu0 %v2111
    %2678 = vmatprep.subr.bf16.mxu0 %v2116
    %2679 = vmatpush1.bf16.msra.mxu0 %v2115
    %2680 = vmatprep.subr.bf16.mxu0 %v2120
    %2681 = vmatpush1.bf16.msra.mxu0 %v2119
    %2682 = vmatprep.subr.bf16.mxu0 0
    %2683 = vmatpush1.bf16.msra.mxu0 0
    %2684 = vmatprep.subr.bf16.mxu0 0
    %2685 = vmatpush1.bf16.msra.mxu0 0
    %2686 = vmatprep.subr.bf16.mxu0 0
    %2687 = vmatpush1.bf16.msra.mxu0 0
    %2688 = vmatprep.subr.bf16.mxu0 0
    %2689 = vmatpush1.bf16.msra.mxu0 0
    %2690 = vmatprep.subr.bf16.mxu0 0
    %2691 = vmatpush1.bf16.msra.mxu0 0
    %2692 = vmatprep.subr.bf16.mxu0 0
    %2693 = vmatpush1.bf16.msra.mxu0 0
    %2694 = vmatprep.subr.bf16.mxu0 0
    %2695 = vmatpush1.bf16.msra.mxu0 0
    %2696 = vmatprep.subr.bf16.mxu0 0
    %2697 = vmatpush1.bf16.msra.mxu0 0
    %2698 = vmatprep.mubr.bf16.mxu0 0
    %2699 = vmatmul.mubr.bf16.gmra.mrb[0].mxu0 %v2665
    %v2700 = vpop.f32.mrb[0].mxu0
    %v2701 = vadd.f32 0.0, %v2700
    %v2702 = vpop.f32.mrb[0].mxu0
    %v2703 = vadd.f32 0.0, %v2702
    %v2704 = vpop.f32.mrb[0].mxu0
    %v2705 = vpop.f32.mrb[0].mxu0
    %2706 = vdwg.mxu0
    %2707 = vmatprep.subr.bf16.mxu0 %v2094
    %2708 = vmatpush1.bf16.msra.mxu0 %v2093
    %2709 = vmatprep.subr.bf16.mxu0 %v2098
    %2710 = vmatpush1.bf16.msra.mxu0 %v2097
    %2711 = vmatprep.subr.bf16.mxu0 %v2102
    %2712 = vmatpush1.bf16.msra.mxu0 %v2101
    %2713 = vmatprep.subr.bf16.mxu0 %v2106
    %2714 = vmatpush1.bf16.msra.mxu0 %v2105
    %2715 = vmatprep.subr.bf16.mxu0 %v2110
    %2716 = vmatpush1.bf16.msra.mxu0 %v2109
    %2717 = vmatprep.subr.bf16.mxu0 %v2114
    %2718 = vmatpush1.bf16.msra.mxu0 %v2113
    %2719 = vmatprep.subr.bf16.mxu0 %v2118
    %2720 = vmatpush1.bf16.msra.mxu0 %v2117
    %2721 = vmatprep.subr.bf16.mxu0 %v2122
    %2722 = vmatpush1.bf16.msra.mxu0 %v2121
    %2723 = vmatprep.subr.bf16.mxu0 0
    %2724 = vmatpush1.bf16.msra.mxu0 0
    %2725 = vmatprep.subr.bf16.mxu0 0
    %2726 = vmatpush1.bf16.msra.mxu0 0
    %2727 = vmatprep.subr.bf16.mxu0 0
    %2728 = vmatpush1.bf16.msra.mxu0 0
    %2729 = vmatprep.subr.bf16.mxu0 0
    %2730 = vmatpush1.bf16.msra.mxu0 0
    %2731 = vmatprep.subr.bf16.mxu0 0
    %2732 = vmatpush1.bf16.msra.mxu0 0
    %2733 = vmatprep.subr.bf16.mxu0 0
    %2734 = vmatpush1.bf16.msra.mxu0 0
    %2735 = vmatprep.subr.bf16.mxu0 0
    %2736 = vmatpush1.bf16.msra.mxu0 0
    %2737 = vmatprep.subr.bf16.mxu0 0
    %2738 = vmatpush1.bf16.msra.mxu0 0
    %2739 = vmatprep.mubr.bf16.mxu0 0
    %2740 = vmatmul.mubr.bf16.gmra.mrb[0].mxu0 %v2665
    %v2741 = vpop.f32.mrb[0].mxu0
    %v2742 = vadd.f32 0.0, %v2741
    %v2743 = vpop.f32.mrb[0].mxu0
    %v2744 = vadd.f32 0.0, %v2743
    %v2745 = vpop.f32.mrb[0].mxu0
    %v2746 = vpop.f32.mrb[0].mxu0
    %2747 = vdwg.mxu0
    %v2748 = vadd.f32 %v2661, %v2701
    %v2749 = vadd.f32 %v2662, %v2703
    %v2750 = vadd.f32 %v2663, %v2742
    %v2751 = vadd.f32 %v2664, %v2744
    %v2752 = vxor.u32 %v2748, 2147483648
    %v2753 = vxor.u32 %v2749, 2147483648
    %v2754 = vxor.u32 %v2750, 2147483648
    %v2755 = vmul.f32 %v2752, 1.442695
    %v2756 = vpow.pop %v2755
    %v2757 = vmul.f32 %v2753, 1.442695
    %v2758 = vpow.pop %v2757
    %v2759 = vmul.f32 %v2754, 1.442695
    %v2760 = vpow.pop %v2759
    %v2761 = vadd.f32 %v2756, 1.0
    %v2762 = vadd.f32 %v2758, 1.0
    %v2763 = vadd.f32 %v2760, 1.0
    %v2764 = vrcp.pop %v2761
    %v2765 = vmul.f32 1.0, %v2764
    %v2766 = vrcp.pop %v2762
    %v2767 = vmul.f32 1.0, %v2766
    %v2768 = vrcp.pop %v2763
    %v2769 = vmul.f32 1.0, %v2768
    %v2770 = vtanh.pop %v2751
    %v2771 = vmul.f32 %v2767, %v2652
    %v2772 = vmul.f32 %v2765, %v2770
    %v2773 = vadd.f32 %v2771, %v2772
    %v2774 = vtanh.pop %v2773
    %v2775 = vmul.f32 %v2769, %v2774
    %v2776 = vsel %vm1950, 4, 3
    %vm2777 = vcmp.lt.s32.totalorder %v2776, %v2268
    %v2778 = vsel %vm2777, %v2775, %v2651
    %v2779 = vsel %vm2777, %v2773, %v2652
    %v2780 = vld [vmem:[#allocation2 + $0xa0] sm:$0xff]
    %v2781 = vld [vmem:[#allocation2 + $0xa8] sm:$0xff]
    %v2782 = vld [vmem:[#allocation2 + $0xb0] sm:$0xff]
    %v2783 = vld [vmem:[#allocation2 + $0xb8] sm:$0xff]
    %v2784 = vld [vmem:[#allocation3 + $0x40] sm:$0xff]
    %v2785 = vld [vmem:[#allocation3 + $0x48] sm:$0xff]
    %v2786 = vld [vmem:[#allocation3 + $0x50] sm:$0xff]
    %v2787 = vld [vmem:[#allocation3 + $0x58] sm:$0xff]
    %v2788 = vadd.f32 %v2780, %v2784
    %v2789 = vadd.f32 %v2781, %v2785
    %v2790 = vadd.f32 %v2782, %v2786
    %v2791 = vadd.f32 %v2783, %v2787
    %v2792 = vpack.c.bf16 %v2778, %v2778
    %2793 = vmatprep.subr.bf16.mxu0 %v2092
    %2794 = vmatpush1.bf16.msra.mxu0 %v2091
    %2795 = vmatprep.subr.bf16.mxu0 %v2096
    %2796 = vmatpush1.bf16.msra.mxu0 %v2095
    %2797 = vmatprep.subr.bf16.mxu0 %v2100
    %2798 = vmatpush1.bf16.msra.mxu0 %v2099
    %2799 = vmatprep.subr.bf16.mxu0 %v2104
    %2800 = vmatpush1.bf16.msra.mxu0 %v2103
    %2801 = vmatprep.subr.bf16.mxu0 %v2108
    %2802 = vmatpush1.bf16.msra.mxu0 %v2107
    %2803 = vmatprep.subr.bf16.mxu0 %v2112
    %2804 = vmatpush1.bf16.msra.mxu0 %v2111
    %2805 = vmatprep.subr.bf16.mxu0 %v2116
    %2806 = vmatpush1.bf16.msra.mxu0 %v2115
    %2807 = vmatprep.subr.bf16.mxu0 %v2120
    %2808 = vmatpush1.bf16.msra.mxu0 %v2119
    %2809 = vmatprep.subr.bf16.mxu0 0
    %2810 = vmatpush1.bf16.msra.mxu0 0
    %2811 = vmatprep.subr.bf16.mxu0 0
    %2812 = vmatpush1.bf16.msra.mxu0 0
    %2813 = vmatprep.subr.bf16.mxu0 0
    %2814 = vmatpush1.bf16.msra.mxu0 0
    %2815 = vmatprep.subr.bf16.mxu0 0
    %2816 = vmatpush1.bf16.msra.mxu0 0
    %2817 = vmatprep.subr.bf16.mxu0 0
    %2818 = vmatpush1.bf16.msra.mxu0 0
    %2819 = vmatprep.subr.bf16.mxu0 0
    %2820 = vmatpush1.bf16.msra.mxu0 0
    %2821 = vmatprep.subr.bf16.mxu0 0
    %2822 = vmatpush1.bf16.msra.mxu0 0
    %2823 = vmatprep.subr.bf16.mxu0 0
    %2824 = vmatpush1.bf16.msra.mxu0 0
    %2825 = vmatprep.mubr.bf16.mxu0 0
    %2826 = vmatmul.mubr.bf16.gmra.mrb[0].mxu0 %v2792
    %v2827 = vpop.f32.mrb[0].mxu0
    %v2828 = vadd.f32 0.0, %v2827
    %v2829 = vpop.f32.mrb[0].mxu0
    %v2830 = vadd.f32 0.0, %v2829
    %v2831 = vpop.f32.mrb[0].mxu0
    %v2832 = vpop.f32.mrb[0].mxu0
    %2833 = vdwg.mxu0
    %2834 = vmatprep.subr.bf16.mxu0 %v2094
    %2835 = vmatpush1.bf16.msra.mxu0 %v2093
    %2836 = vmatprep.subr.bf16.mxu0 %v2098
    %2837 = vmatpush1.bf16.msra.mxu0 %v2097
    %2838 = vmatprep.subr.bf16.mxu0 %v2102
    %2839 = vmatpush1.bf16.msra.mxu0 %v2101
    %2840 = vmatprep.subr.bf16.mxu0 %v2106
    %2841 = vmatpush1.bf16.msra.mxu0 %v2105
    %2842 = vmatprep.subr.bf16.mxu0 %v2110
    %2843 = vmatpush1.bf16.msra.mxu0 %v2109
    %2844 = vmatprep.subr.bf16.mxu0 %v2114
    %2845 = vmatpush1.bf16.msra.mxu0 %v2113
    %2846 = vmatprep.subr.bf16.mxu0 %v2118
    %2847 = vmatpush1.bf16.msra.mxu0 %v2117
    %2848 = vmatprep.subr.bf16.mxu0 %v2122
    %2849 = vmatpush1.bf16.msra.mxu0 %v2121
    %2850 = vmatprep.subr.bf16.mxu0 0
    %2851 = vmatpush1.bf16.msra.mxu0 0
    %2852 = vmatprep.subr.bf16.mxu0 0
    %2853 = vmatpush1.bf16.msra.mxu0 0
    %2854 = vmatprep.subr.bf16.mxu0 0
    %2855 = vmatpush1.bf16.msra.mxu0 0
    %2856 = vmatprep.subr.bf16.mxu0 0
    %2857 = vmatpush1.bf16.msra.mxu0 0
    %2858 = vmatprep.subr.bf16.mxu0 0
    %2859 = vmatpush1.bf16.msra.mxu0 0
    %2860 = vmatprep.subr.bf16.mxu0 0
    %2861 = vmatpush1.bf16.msra.mxu0 0
    %2862 = vmatprep.subr.bf16.mxu0 0
    %2863 = vmatpush1.bf16.msra.mxu0 0
    %2864 = vmatprep.subr.bf16.mxu0 0
    %2865 = vmatpush1.bf16.msra.mxu0 0
    %2866 = vmatprep.mubr.bf16.mxu0 0
    %2867 = vmatmul.mubr.bf16.gmra.mrb[0].mxu0 %v2792
    %v2868 = vpop.f32.mrb[0].mxu0
    %v2869 = vadd.f32 0.0, %v2868
    %v2870 = vpop.f32.mrb[0].mxu0
    %v2871 = vadd.f32 0.0, %v2870
    %v2872 = vpop.f32.mrb[0].mxu0
    %v2873 = vpop.f32.mrb[0].mxu0
    %2874 = vdwg.mxu0
    %v2875 = vadd.f32 %v2788, %v2828
    %v2876 = vadd.f32 %v2789, %v2830
    %v2877 = vadd.f32 %v2790, %v2869
    %v2878 = vadd.f32 %v2791, %v2871
    %v2879 = vxor.u32 %v2875, 2147483648
    %v2880 = vxor.u32 %v2876, 2147483648
    %v2881 = vxor.u32 %v2877, 2147483648
    %v2882 = vmul.f32 %v2879, 1.442695
    %v2883 = vpow.pop %v2882
    %v2884 = vmul.f32 %v2880, 1.442695
    %v2885 = vpow.pop %v2884
    %v2886 = vmul.f32 %v2881, 1.442695
    %v2887 = vpow.pop %v2886
    %v2888 = vadd.f32 %v2883, 1.0
    %v2889 = vadd.f32 %v2885, 1.0
    %v2890 = vadd.f32 %v2887, 1.0
    %v2891 = vrcp.pop %v2888
    %v2892 = vmul.f32 1.0, %v2891
    %v2893 = vrcp.pop %v2889
    %v2894 = vmul.f32 1.0, %v2893
    %v2895 = vrcp.pop %v2890
    %v2896 = vmul.f32 1.0, %v2895
    %v2897 = vtanh.pop %v2878
    %v2898 = vmul.f32 %v2894, %v2779
    %v2899 = vmul.f32 %v2892, %v2897
    %v2900 = vadd.f32 %v2898, %v2899
    %v2901 = vtanh.pop %v2900
    %v2902 = vmul.f32 %v2896, %v2901
    %v2903 = vsel %vm1950, 5, 2
    %vm2904 = vcmp.lt.s32.totalorder %v2903, %v2268
    %v2905 = vsel %vm2904, %v2902, %v2778
    %v2906 = vsel %vm2904, %v2900, %v2779
    %v2907 = vld [vmem:[#allocation2 + $0xc0] sm:$0xff]
    %v2908 = vld [vmem:[#allocation2 + $0xc8] sm:$0xff]
    %v2909 = vld [vmem:[#allocation2 + $0xd0] sm:$0xff]
    %v2910 = vld [vmem:[#allocation2 + $0xd8] sm:$0xff]
    %v2911 = vld [vmem:[#allocation3 + $0x20] sm:$0xff]
    %v2912 = vld [vmem:[#allocation3 + $0x28] sm:$0xff]
    %v2913 = vld [vmem:[#allocation3 + $0x30] sm:$0xff]
    %v2914 = vld [vmem:[#allocation3 + $0x38] sm:$0xff]
    %v2915 = vadd.f32 %v2907, %v2911
    %v2916 = vadd.f32 %v2908, %v2912
    %v2917 = vadd.f32 %v2909, %v2913
    %v2918 = vadd.f32 %v2910, %v2914
    %v2919 = vpack.c.bf16 %v2905, %v2905
    %2920 = vmatprep.subr.bf16.mxu0 %v2092
    %2921 = vmatpush1.bf16.msra.mxu0 %v2091
    %2922 = vmatprep.subr.bf16.mxu0 %v2096
    %2923 = vmatpush1.bf16.msra.mxu0 %v2095
    %2924 = vmatprep.subr.bf16.mxu0 %v2100
    %2925 = vmatpush1.bf16.msra.mxu0 %v2099
    %2926 = vmatprep.subr.bf16.mxu0 %v2104
    %2927 = vmatpush1.bf16.msra.mxu0 %v2103
    %2928 = vmatprep.subr.bf16.mxu0 %v2108
    %2929 = vmatpush1.bf16.msra.mxu0 %v2107
    %2930 = vmatprep.subr.bf16.mxu0 %v2112
    %2931 = vmatpush1.bf16.msra.mxu0 %v2111
    %2932 = vmatprep.subr.bf16.mxu0 %v2116
    %2933 = vmatpush1.bf16.msra.mxu0 %v2115
    %2934 = vmatprep.subr.bf16.mxu0 %v2120
    %2935 = vmatpush1.bf16.msra.mxu0 %v2119
    %2936 = vmatprep.subr.bf16.mxu0 0
    %2937 = vmatpush1.bf16.msra.mxu0 0
    %2938 = vmatprep.subr.bf16.mxu0 0
    %2939 = vmatpush1.bf16.msra.mxu0 0
    %2940 = vmatprep.subr.bf16.mxu0 0
    %2941 = vmatpush1.bf16.msra.mxu0 0
    %2942 = vmatprep.subr.bf16.mxu0 0
    %2943 = vmatpush1.bf16.msra.mxu0 0
    %2944 = vmatprep.subr.bf16.mxu0 0
    %2945 = vmatpush1.bf16.msra.mxu0 0
    %2946 = vmatprep.subr.bf16.mxu0 0
    %2947 = vmatpush1.bf16.msra.mxu0 0
    %2948 = vmatprep.subr.bf16.mxu0 0
    %2949 = vmatpush1.bf16.msra.mxu0 0
    %2950 = vmatprep.subr.bf16.mxu0 0
    %2951 = vmatpush1.bf16.msra.mxu0 0
    %2952 = vmatprep.mubr.bf16.mxu0 0
    %2953 = vmatmul.mubr.bf16.gmra.mrb[0].mxu0 %v2919
    %v2954 = vpop.f32.mrb[0].mxu0
    %v2955 = vadd.f32 0.0, %v2954
    %v2956 = vpop.f32.mrb[0].mxu0
    %v2957 = vadd.f32 0.0, %v2956
    %v2958 = vpop.f32.mrb[0].mxu0
    %v2959 = vpop.f32.mrb[0].mxu0
    %2960 = vdwg.mxu0
    %2961 = vmatprep.subr.bf16.mxu0 %v2094
    %2962 = vmatpush1.bf16.msra.mxu0 %v2093
    %2963 = vmatprep.subr.bf16.mxu0 %v2098
    %2964 = vmatpush1.bf16.msra.mxu0 %v2097
    %2965 = vmatprep.subr.bf16.mxu0 %v2102
    %2966 = vmatpush1.bf16.msra.mxu0 %v2101
    %2967 = vmatprep.subr.bf16.mxu0 %v2106
    %2968 = vmatpush1.bf16.msra.mxu0 %v2105
    %2969 = vmatprep.subr.bf16.mxu0 %v2110
    %2970 = vmatpush1.bf16.msra.mxu0 %v2109
    %2971 = vmatprep.subr.bf16.mxu0 %v2114
    %2972 = vmatpush1.bf16.msra.mxu0 %v2113
    %2973 = vmatprep.subr.bf16.mxu0 %v2118
    %2974 = vmatpush1.bf16.msra.mxu0 %v2117
    %2975 = vmatprep.subr.bf16.mxu0 %v2122
    %2976 = vmatpush1.bf16.msra.mxu0 %v2121
    %2977 = vmatprep.subr.bf16.mxu0 0
    %2978 = vmatpush1.bf16.msra.mxu0 0
    %2979 = vmatprep.subr.bf16.mxu0 0
    %2980 = vmatpush1.bf16.msra.mxu0 0
    %2981 = vmatprep.subr.bf16.mxu0 0
    %2982 = vmatpush1.bf16.msra.mxu0 0
    %2983 = vmatprep.subr.bf16.mxu0 0
    %2984 = vmatpush1.bf16.msra.mxu0 0
    %2985 = vmatprep.subr.bf16.mxu0 0
    %2986 = vmatpush1.bf16.msra.mxu0 0
    %2987 = vmatprep.subr.bf16.mxu0 0
    %2988 = vmatpush1.bf16.msra.mxu0 0
    %2989 = vmatprep.subr.bf16.mxu0 0
    %2990 = vmatpush1.bf16.msra.mxu0 0
    %2991 = vmatprep.subr.bf16.mxu0 0
    %2992 = vmatpush1.bf16.msra.mxu0 0
    %2993 = vmatprep.mubr.bf16.mxu0 0
    %2994 = vmatmul.mubr.bf16.gmra.mrb[0].mxu0 %v2919
    %v2995 = vpop.f32.mrb[0].mxu0
    %v2996 = vadd.f32 0.0, %v2995
    %v2997 = vpop.f32.mrb[0].mxu0
    %v2998 = vadd.f32 0.0, %v2997
    %v2999 = vpop.f32.mrb[0].mxu0
    %v3000 = vpop.f32.mrb[0].mxu0
    %3001 = vdwg.mxu0
    %v3002 = vadd.f32 %v2915, %v2955
    %v3003 = vadd.f32 %v2916, %v2957
    %v3004 = vadd.f32 %v2917, %v2996
    %v3005 = vadd.f32 %v2918, %v2998
    %v3006 = vxor.u32 %v3002, 2147483648
    %v3007 = vxor.u32 %v3003, 2147483648
    %v3008 = vxor.u32 %v3004, 2147483648
    %v3009 = vmul.f32 %v3006, 1.442695
    %v3010 = vpow.pop %v3009
    %v3011 = vmul.f32 %v3007, 1.442695
    %v3012 = vpow.pop %v3011
    %v3013 = vmul.f32 %v3008, 1.442695
    %v3014 = vpow.pop %v3013
    %v3015 = vadd.f32 %v3010, 1.0
    %v3016 = vadd.f32 %v3012, 1.0
    %v3017 = vadd.f32 %v3014, 1.0
    %v3018 = vrcp.pop %v3015
    %v3019 = vmul.f32 1.0, %v3018
    %v3020 = vrcp.pop %v3016
    %v3021 = vmul.f32 1.0, %v3020
    %v3022 = vrcp.pop %v3017
    %v3023 = vmul.f32 1.0, %v3022
    %v3024 = vtanh.pop %v3005
    %v3025 = vmul.f32 %v3021, %v2906
    %v3026 = vmul.f32 %v3019, %v3024
    %v3027 = vadd.f32 %v3025, %v3026
    %v3028 = vtanh.pop %v3027
    %v3029 = vmul.f32 %v3023, %v3028
    %v3030 = vsel %vm1950, 6, 1
    %vm3031 = vcmp.lt.s32.totalorder %v3030, %v2268
    %v3032 = vsel %vm3031, %v3029, %v2905
    %v3033 = vsel %vm3031, %v3027, %v2906
    %v3034 = vld [vmem:[#allocation2 + $0xe0] sm:$0xff]
    %v3035 = vld [vmem:[#allocation2 + $0xe8] sm:$0xff]
    %v3036 = vld [vmem:[#allocation2 + $0xf0] sm:$0xff]
    %v3037 = vld [vmem:[#allocation2 + $0xf8] sm:$0xff]
    %v3038 = vld [vmem:[#allocation3] sm:$0xff]
    %v3039 = vld [vmem:[#allocation3 + $0x8] sm:$0xff]
    %v3040 = vld [vmem:[#allocation3 + $0x10] sm:$0xff]
    %v3041 = vld [vmem:[#allocation3 + $0x18] sm:$0xff]
    %v3042 = vadd.f32 %v3034, %v3038
    %v3043 = vadd.f32 %v3035, %v3039
    %v3044 = vadd.f32 %v3036, %v3040
    %v3045 = vadd.f32 %v3037, %v3041
    %v3046 = vpack.c.bf16 %v3032, %v3032
    %3047 = vmatprep.subr.bf16.mxu0 %v2092
    %3048 = vmatpush1.bf16.msra.mxu0 %v2091
    %3049 = vmatprep.subr.bf16.mxu0 %v2096
    %3050 = vmatpush1.bf16.msra.mxu0 %v2095
    %3051 = vmatprep.subr.bf16.mxu0 %v2100
    %3052 = vmatpush1.bf16.msra.mxu0 %v2099
    %3053 = vmatprep.subr.bf16.mxu0 %v2104
    %3054 = vmatpush1.bf16.msra.mxu0 %v2103
    %3055 = vmatprep.subr.bf16.mxu0 %v2108
    %3056 = vmatpush1.bf16.msra.mxu0 %v2107
    %3057 = vmatprep.subr.bf16.mxu0 %v2112
    %3058 = vmatpush1.bf16.msra.mxu0 %v2111
    %3059 = vmatprep.subr.bf16.mxu0 %v2116
    %3060 = vmatpush1.bf16.msra.mxu0 %v2115
    %3061 = vmatprep.subr.bf16.mxu0 %v2120
    %3062 = vmatpush1.bf16.msra.mxu0 %v2119
    %3063 = vmatprep.subr.bf16.mxu0 0
    %3064 = vmatpush1.bf16.msra.mxu0 0
    %3065 = vmatprep.subr.bf16.mxu0 0
    %3066 = vmatpush1.bf16.msra.mxu0 0
    %3067 = vmatprep.subr.bf16.mxu0 0
    %3068 = vmatpush1.bf16.msra.mxu0 0
    %3069 = vmatprep.subr.bf16.mxu0 0
    %3070 = vmatpush1.bf16.msra.mxu0 0
    %3071 = vmatprep.subr.bf16.mxu0 0
    %3072 = vmatpush1.bf16.msra.mxu0 0
    %3073 = vmatprep.subr.bf16.mxu0 0
    %3074 = vmatpush1.bf16.msra.mxu0 0
    %3075 = vmatprep.subr.bf16.mxu0 0
    %3076 = vmatpush1.bf16.msra.mxu0 0
    %3077 = vmatprep.subr.bf16.mxu0 0
    %3078 = vmatpush1.bf16.msra.mxu0 0
    %3079 = vmatprep.mubr.bf16.mxu0 0
    %3080 = vmatmul.mubr.bf16.gmra.mrb[0].mxu0 %v3046
    %v3081 = vpop.f32.mrb[0].mxu0
    %v3082 = vadd.f32 0.0, %v3081
    %v3083 = vpop.f32.mrb[0].mxu0
    %v3084 = vadd.f32 0.0, %v3083
    %v3085 = vpop.f32.mrb[0].mxu0
    %v3086 = vpop.f32.mrb[0].mxu0
    %3087 = vdwg.mxu0
    %3088 = vmatprep.subr.bf16.mxu0 %v2094
    %3089 = vmatpush1.bf16.msra.mxu0 %v2093
    %3090 = vmatprep.subr.bf16.mxu0 %v2098
    %3091 = vmatpush1.bf16.msra.mxu0 %v2097
    %3092 = vmatprep.subr.bf16.mxu0 %v2102
    %3093 = vmatpush1.bf16.msra.mxu0 %v2101
    %3094 = vmatprep.subr.bf16.mxu0 %v2106
    %3095 = vmatpush1.bf16.msra.mxu0 %v2105
    %3096 = vmatprep.subr.bf16.mxu0 %v2110
    %3097 = vmatpush1.bf16.msra.mxu0 %v2109
    %3098 = vmatprep.subr.bf16.mxu0 %v2114
    %3099 = vmatpush1.bf16.msra.mxu0 %v2113
    %3100 = vmatprep.subr.bf16.mxu0 %v2118
    %3101 = vmatpush1.bf16.msra.mxu0 %v2117
    %3102 = vmatprep.subr.bf16.mxu0 %v2122
    %3103 = vmatpush1.bf16.msra.mxu0 %v2121
    %3104 = vmatprep.subr.bf16.mxu0 0
    %3105 = vmatpush1.bf16.msra.mxu0 0
    %3106 = vmatprep.subr.bf16.mxu0 0
    %3107 = vmatpush1.bf16.msra.mxu0 0
    %3108 = vmatprep.subr.bf16.mxu0 0
    %3109 = vmatpush1.bf16.msra.mxu0 0
    %3110 = vmatprep.subr.bf16.mxu0 0
    %3111 = vmatpush1.bf16.msra.mxu0 0
    %3112 = vmatprep.subr.bf16.mxu0 0
    %3113 = vmatpush1.bf16.msra.mxu0 0
    %3114 = vmatprep.subr.bf16.mxu0 0
    %3115 = vmatpush1.bf16.msra.mxu0 0
    %3116 = vmatprep.subr.bf16.mxu0 0
    %3117 = vmatpush1.bf16.msra.mxu0 0
    %3118 = vmatprep.subr.bf16.mxu0 0
    %3119 = vmatpush1.bf16.msra.mxu0 0
    %3120 = vmatprep.mubr.bf16.mxu0 0
    %3121 = vmatmul.mubr.bf16.gmra.mrb[0].mxu0 %v3046
    %v3122 = vpop.f32.mrb[0].mxu0
    %v3123 = vadd.f32 0.0, %v3122
    %v3124 = vpop.f32.mrb[0].mxu0
    %v3125 = vadd.f32 0.0, %v3124
    %v3126 = vpop.f32.mrb[0].mxu0
    %v3127 = vpop.f32.mrb[0].mxu0
    %3128 = vdwg.mxu0
    %v3129 = vadd.f32 %v3042, %v3082
    %v3130 = vadd.f32 %v3043, %v3084
    %v3131 = vadd.f32 %v3044, %v3123
    %v3132 = vadd.f32 %v3045, %v3125
    %v3133 = vxor.u32 %v3129, 2147483648
    %v3134 = vxor.u32 %v3130, 2147483648
    %v3135 = vxor.u32 %v3131, 2147483648
    %v3136 = vmul.f32 %v3133, 1.442695
    %v3137 = vpow.pop %v3136
    %v3138 = vmul.f32 %v3134, 1.442695
    %v3139 = vpow.pop %v3138
    %v3140 = vmul.f32 %v3135, 1.442695
    %v3141 = vpow.pop %v3140
    %v3142 = vadd.f32 %v3137, 1.0
    %v3143 = vadd.f32 %v3139, 1.0
    %v3144 = vadd.f32 %v3141, 1.0
    %v3145 = vrcp.pop %v3142
    %v3146 = vmul.f32 1.0, %v3145
    %v3147 = vrcp.pop %v3143
    %v3148 = vmul.f32 1.0, %v3147
    %v3149 = vrcp.pop %v3144
    %v3150 = vmul.f32 1.0, %v3149
    %v3151 = vtanh.pop %v3132
    %v3152 = vmul.f32 %v3148, %v3033
    %v3153 = vmul.f32 %v3146, %v3151
    %v3154 = vadd.f32 %v3152, %v3153
    %v3155 = vtanh.pop %v3154
    %v3156 = vmul.f32 %v3150, %v3155
    %v3157 = vsel %vm1950, 7, 0
    %vm3158 = vcmp.lt.s32.totalorder %v3157, %v2268
    %v3159 = vsel %vm3158, %v3156, %v3032
    %3160 = vst [vmem:[#allocation13] sm:$0xff] %v3159
    // Predicated region
    $region66: #{tpu_custom_call.1} parent=1 // pred_check
      _
    $region67: #{tpu_custom_call.1} parent=1 // pred_check_branch
      %3162 = sbr.rel (0) target = $region69
    $region68: #{tpu_custom_call.1} parent=1 // pred_region
      %s3164 = ssub.s32 128, 128
      %3165 = vsyncadd [#allocation6], %s3164
      %s3167 = sshll.u32 [#allocation13], 4
      %s3168 = int_to_ptr.vmem [resolvable:$true] %s3167
      %3170 = dma.vmem_to_hbm [thread:$0]  %s3168, 128, %s11, [#allocation6]
    $region69: #{tpu_custom_call.1} parent=1 // pred_fallthru
      _
    // Predicated region
    $region70: #{tpu_custom_call.1} parent=1 // pred_check
      _
    $region71: #{tpu_custom_call.1} parent=1 // pred_check_branch
      %3172 = sbr.rel (0) target = $region73
    $region72: #{tpu_custom_call.1} parent=1 // pred_region
      %3173 = dma.done [#allocation6], 128
    $region73: #{tpu_custom_call.1} parent=1 // pred_fallthru
      _
    %3174 = vsyncpa [#allocation5], 1
    %3175 = vsyncpa [#allocation8], 1
    %3176 = vsyncpa [#allocation11], 1
    %3177 = vsyncpa [#allocation6], 1

</llo_original>
